<compile_context>
chip_gen: v7x
topology: tpu7x:2x2x1
jax: 0.10.0
libtpu: 0.0.40
codegen_flags: <defaults>
</compile_context>

<pallas_src>
import math

import jax
import jax.numpy as jnp
from jax.experimental import pallas as pl
from jax.experimental.pallas import tpu as pltpu

# Set to jnp.bfloat16 on v6e/v7x for higher MXU throughput (loosen the numeric tolerance in
# the self-check accordingly).  float32 keeps parity with the f32 reference at 1e-4.
_MM_DTYPE = jnp.float32


def _round_up(x, m):
    return (x + m - 1) // m * m


def _layout(S):
    """Flattened, 8-aligned layout constants for a zero-padded SxS feature map.

    Feature (i, j) lives at flat row  base + i*R + j  of a (nrows, C) VMEM buffer whose
    remaining rows stay zero (that zero region IS the conv's pad=1 padding).
    """
    R = _round_up(S + 2, 8)          # row stride (multiple of 8 -> aligned row stores)
    base = R + 8                     # first feature row (multiple of 8, room for top pad)
    L = (S - 1) * R + S              # rows of each tap's lhs / of the conv accumulator
    slab = _round_up(L + 16, 8)      # per-dy aligned slab read length
    nrows = (base + R - 8) + slab    # buffer rows (covers the largest slab read)
    return R, base, L, slab, nrows


def _make_kernel(S1, C):
    """Build the fused 4-block kernel for square inputs of size S1 (divisible by 16)."""
    S_list = [S1 // 2, S1 // 4, S1 // 8]           # conv output sizes of blocks 2..4
    layouts = [_layout(s) for s in S_list]

    def pool_and_store(y, row_stride, S, vbuf, store_row):
        """2x2 stride-2 max-pool of y (rows = h*row_stride + w, valid w < S, h < S)."""
        P = S // 2
        for i in range(P):
            r0 = y[2 * i * row_stride:2 * i * row_stride + S, :]
            r1 = y[(2 * i + 1) * row_stride:(2 * i + 1) * row_stride + S, :]
            m = jnp.maximum(r0, r1)                          # (S, C), height-pooled
            if P == 1:
                prow = jnp.maximum(m[0:1, :], m[1:2, :])
            else:
                vbuf[pl.ds(0, S), :] = m
                even = vbuf[pl.ds(0, P, stride=2), :]
                odd = vbuf[pl.ds(1, P, stride=2), :]
                prow = jnp.maximum(even, odd)                # (P, C), width-pooled
            store_row(i, prow)

    def conv3x3_bn_relu(pin, w_ref, k, scale, bias, S):
        """Batched-row 3x3 conv over the padded flat buffer + fused BN affine + ReLU."""
        R, base, L, slab_len, _ = _layout(S)
        acc = jnp.zeros((L, C), jnp.float32)
        for dy in range(3):
            # One aligned slab read per dy; the dx shifts are cheap value slices.
            slab = pin[pl.ds(base + (dy - 1) * R - 8, slab_len), :]
            for dx in range(3):
                lhs = slab[7 + dx:7 + dx + L, :]
                acc = acc + jnp.dot(lhs.astype(_MM_DTYPE),
                                    w_ref[k, 3 * dy + dx].astype(_MM_DTYPE),
                                    preferred_element_type=jnp.float32)
        return jnp.maximum(acc * scale + bias, 0.0)

    def kernel(xcols_ref, w1_ref, w234_ref, scale_ref, bias_ref, o_ref,
               vbuf, p2, p3, p4):
        # Zero the padded feature-map buffers: supplies the conv pad=1 zeros and the
        # (never-read) overshoot region.  ~75 KB of VMEM stores per image -> negligible.
        p2[...] = jnp.zeros_like(p2)
        p3[...] = jnp.zeros_like(p3)
        p4[...] = jnp.zeros_like(p4)

        bufs = (p2, p3, p4)

        def store_into(buf, R, base):
            def store_row(i, prow):
                buf[pl.ds(base + i * R, prow.shape[0]), :] = prow
            return store_row

        # ---- Block 1: im2col'd input -> a single (H*W, 9*Cin) @ (9*Cin, C) matmul ----
        y = jnp.dot(xcols_ref[0].astype(_MM_DTYPE), w1_ref[...].astype(_MM_DTYPE),
                    preferred_element_type=jnp.float32)
        s0 = scale_ref[0]
        b0 = bias_ref[0]
        y = jnp.maximum(y * s0 + b0, 0.0)
        pool_and_store(y, S1, S1, vbuf,
                       store_into(p2, layouts[0][0], layouts[0][1]))

        # ---- Blocks 2..4: VMEM-resident, batched-row tap matmuls ----
        for k in range(3):
            S = S_list[k]
            R, base, _, _, _ = layouts[k]
            y = conv3x3_bn_relu(bufs[k], w234_ref, k,
                                scale_ref[k + 1], bias_ref[k + 1], S)
            if k < 2:
                Rn, basen, _, _, _ = layouts[k + 1]
                pool_and_store(y, R, S, vbuf, store_into(bufs[k + 1], Rn, basen))
            else:
                def store_out(i, prow, P=S // 2):
                    o_ref[0, pl.ds(i * P, P), :] = prow.astype(o_ref.dtype)
                pool_and_store(y, R, S, vbuf, store_out)

    return kernel


def proto_net_embedding(x_nchw, params):
    """ProtoNetEmbedding.forward: 4 fused ConvBlocks, then flatten in NCHW order."""
    N, cin, H, W = x_nchw.shape
    if H != W or H % 16 != 0:
        raise ValueError("fused kernel expects square spatial dims divisible by 16")
    C = params[0][0].shape[-1]
    assert all(p[0].shape[-1] == C for p in params), "uniform channel width required"

    # Block-1 im2col in the wrapper (Cin is tiny): the kernel sees a lane-dense K=9*Cin lhs.
    x_nhwc = jnp.transpose(x_nchw, (0, 2, 3, 1)).astype(jnp.float32)
    xp = jnp.pad(x_nhwc, ((0, 0), (1, 1), (1, 1), (0, 0)))
    cols = jnp.concatenate(
        [xp[:, dy:dy + H, dx:dx + W, :] for dy in range(3) for dx in range(3)], axis=-1)
    K = 9 * cin
    Kp = _round_up(K, 8)
    x_cols = cols.reshape(N, H * W, K)
    w1 = params[0][0].reshape(K, C).astype(jnp.float32)
    if Kp != K:
        x_cols = jnp.pad(x_cols, ((0, 0), (0, 0), (0, Kp - K)))
        w1 = jnp.pad(w1, ((0, Kp - K), (0, 0)))

    w234 = jnp.stack([params[k][0].reshape(9, C, C) for k in range(1, 4)]).astype(jnp.float32)
    scales = jnp.stack([p[1].reshape(1, C) for p in params]).astype(jnp.float32)
    biases = jnp.stack([p[2].reshape(1, C) for p in params]).astype(jnp.float32)

    S1 = H
    Pf = H // 16                     # final spatial size after four 2x2 pools
    Ff = Pf * Pf
    nrows = [_layout(S1 // 2)[4], _layout(S1 // 4)[4], _layout(S1 // 8)[4]]

    out = pl.pallas_call(
        _make_kernel(S1, C),
        out_shape=jax.ShapeDtypeStruct((N, Ff, C), jnp.float32),
        grid_spec=pltpu.PrefetchScalarGridSpec(
            num_scalar_prefetch=0,
            grid=(N,),
            in_specs=[
                pl.BlockSpec((1, H * W, Kp), lambda n: (n, 0, 0)),
                pl.BlockSpec((Kp, C), lambda n: (0, 0)),
                pl.BlockSpec((3, 9, C, C), lambda n: (0, 0, 0, 0)),
                pl.BlockSpec((4, 1, C), lambda n: (0, 0, 0)),
                pl.BlockSpec((4, 1, C), lambda n: (0, 0, 0)),
            ],
            out_specs=pl.BlockSpec((1, Ff, C), lambda n: (n, 0, 0)),
            scratch_shapes=[
                pltpu.VMEM((S1, C), jnp.float32),        # width-pool scratch
                pltpu.VMEM((nrows[0], C), jnp.float32),  # block-2 padded feature map
                pltpu.VMEM((nrows[1], C), jnp.float32),  # block-3 padded feature map
                pltpu.VMEM((nrows[2], C), jnp.float32),  # block-4 padded feature map
            ],
        ),
        compiler_params=pltpu.CompilerParams(
            dimension_semantics=("parallel",)),
    )(x_cols, w1, w234, scales, biases)

    # PyTorch's x.view(N, -1) flattens NCHW (channel-major, then spatial).
    return jnp.transpose(out, (0, 2, 1)).reshape(N, C * Ff)


def _reference_block(x_nhwc, w_hwio, scale, bias):
    y = jax.lax.conv_general_dilated(
        x_nhwc, w_hwio, window_strides=(1, 1), padding="SAME",
        dimension_numbers=("NHWC", "HWIO", "NHWC"))
    y = y * scale + bias
    y = jnp.maximum(y, 0.0)
    return jax.lax.reduce_window(y, -jnp.inf, jax.lax.max,
                                 (1, 2, 2, 1), (1, 2, 2, 1), "VALID")


if __name__ == "__main__":
    # Small shapes consistent with the module: x_dim=3, h_dim=z_dim=64, 16x16 input.
    N, x_dim, Hs, Ws = 2, 3, 16, 16
    h_dim = z_dim = 64
    channels = [x_dim, h_dim, h_dim, h_dim, z_dim]

    key = jax.random.PRNGKey(0)
    key, kx = jax.random.split(key)
    x_nchw = jax.random.normal(kx, (N, x_dim, Hs, Ws), jnp.float32)

    # Deterministic parameter init matching the module's __init__:
    #   conv weight ~ N(0, sqrt(2 / (k*k*out_channels))), BN gamma=1, beta=0.
    eps = 1e-5
    params = []
    for i in range(4):
        cin, cout = channels[i], channels[i + 1]
        key, kw = jax.random.split(key)
        std = math.sqrt(2.0 / (3 * 3 * cout))
        w_oihw = jax.random.normal(kw, (cout, cin, 3, 3), jnp.float32) * std
        w_hwio = jnp.transpose(w_oihw, (2, 3, 1, 0))    # (3, 3, Cin, Cout)
        gamma = jnp.ones((cout,), jnp.float32)
        beta = jnp.zeros((cout,), jnp.float32)
        running_mean = jnp.zeros((cout,), jnp.float32)
        running_var = jnp.ones((cout,), jnp.float32)
        scale = gamma / jnp.sqrt(running_var + eps)
        bias = beta - running_mean * scale
        params.append((w_hwio, scale, bias))

    emb = jax.jit(proto_net_embedding)(x_nchw, params)
    emb = jax.block_until_ready(emb)

    # Pure-JAX reference for correctness.
    xr = jnp.transpose(x_nchw, (0, 2, 3, 1))
    for (w_hwio, scale, bias) in params:
        xr = _reference_block(xr, w_hwio, scale, bias)
    ref = jnp.transpose(xr, (0, 3, 1, 2)).reshape(N, -1)

    assert emb.shape == (N, z_dim * (Hs // 16) * (Ws // 16)), emb.shape
    assert jnp.allclose(emb, ref, rtol=1e-4, atol=1e-4), float(jnp.max(jnp.abs(emb - ref)))
    print("KERNEL_OK")
</pallas_src>

<mosaic_0001>
module attributes {stable_mosaic.version = 11 : i64} {
  func.func @kernel(%arg0: i32, %arg1: memref<1x256x32xf32, #tpu.memory_space<vmem>>, %arg2: memref<32x64xf32, #tpu.memory_space<vmem>>, %arg3: memref<3x9x64x64xf32, #tpu.memory_space<vmem>>, %arg4: memref<4x1x64xf32, #tpu.memory_space<vmem>>, %arg5: memref<4x1x64xf32, #tpu.memory_space<vmem>>, %arg6: memref<1x1x64xf32, #tpu.memory_space<vmem>>, %arg7: memref<16x64xf32, #tpu.memory_space<vmem>>, %arg8: memref<168x64xf32, #tpu.memory_space<vmem>>, %arg9: memref<64x64xf32, #tpu.memory_space<vmem>>, %arg10: memref<48x64xf32, #tpu.memory_space<vmem>>) attributes {dimension_semantics = [#tpu.dimension_semantics<parallel>], iteration_bounds = array<i64: 2>, scalar_prefetch = 0 : i64, scratch_operands = 4 : i64, tpu.core_type = #tpu.core_type<tc>, window_params = [{transform_indices = @transform_0, window_bounds = array<i64: 1, 256, 32>}, {pipeline_mode = #tpu.pipeline_mode<synchronous>, transform_indices = @transform_1, window_bounds = array<i64: 32, 64>}, {pipeline_mode = #tpu.pipeline_mode<synchronous>, transform_indices = @transform_2, window_bounds = array<i64: 3, 9, 64, 64>}, {pipeline_mode = #tpu.pipeline_mode<synchronous>, transform_indices = @transform_3, window_bounds = array<i64: 4, 1, 64>}, {pipeline_mode = #tpu.pipeline_mode<synchronous>, transform_indices = @transform_4, window_bounds = array<i64: 4, 1, 64>}, {transform_indices = @transform_5, window_bounds = array<i64: 1, 1, 64>}]} {
    %cst = arith.constant 0.000000e+00 : f32
    %0 = vector.broadcast %cst : f32 to vector<168x64xf32>
    %c0 = arith.constant 0 : index
    %c0_0 = arith.constant 0 : index
    %1 = vector.load %arg8[%c0, %c0_0] : memref<168x64xf32, #tpu.memory_space<vmem>>, vector<168x64xf32>
    tpu.vector_store %arg8[%c0, %c0_0], %0 {strides = array<i32>} : memref<168x64xf32, #tpu.memory_space<vmem>>, vector<168x64xf32>,
    %cst_1 = arith.constant 0.000000e+00 : f32
    %2 = vector.broadcast %cst_1 : f32 to vector<64x64xf32>
    %c0_2 = arith.constant 0 : index
    %c0_3 = arith.constant 0 : index
    %3 = vector.load %arg9[%c0_2, %c0_3] : memref<64x64xf32, #tpu.memory_space<vmem>>, vector<64x64xf32>
    tpu.vector_store %arg9[%c0_2, %c0_3], %2 {strides = array<i32>} : memref<64x64xf32, #tpu.memory_space<vmem>>, vector<64x64xf32>,
    %cst_4 = arith.constant 0.000000e+00 : f32
    %4 = vector.broadcast %cst_4 : f32 to vector<48x64xf32>
    %c0_5 = arith.constant 0 : index
    %c0_6 = arith.constant 0 : index
    %5 = vector.load %arg10[%c0_5, %c0_6] : memref<48x64xf32, #tpu.memory_space<vmem>>, vector<48x64xf32>
    tpu.vector_store %arg10[%c0_5, %c0_6], %4 {strides = array<i32>} : memref<48x64xf32, #tpu.memory_space<vmem>>, vector<48x64xf32>,
    %c0_7 = arith.constant 0 : index
    %c0_8 = arith.constant 0 : index
    %c0_9 = arith.constant 0 : index
    %6 = vector.load %arg1[%c0_7, %c0_8, %c0_9] : memref<1x256x32xf32, #tpu.memory_space<vmem>>, vector<1x256x32xf32>
    %7 = vector.shape_cast %6 : vector<1x256x32xf32> to vector<256x32xf32>
    %c0_10 = arith.constant 0 : index
    %c0_11 = arith.constant 0 : index
    %8 = vector.load %arg2[%c0_10, %c0_11] : memref<32x64xf32, #tpu.memory_space<vmem>>, vector<32x64xf32>
    %cst_12 = arith.constant dense<0.000000e+00> : vector<256x64xf32>
    %9 = tpu.matmul %7, %8, %cst_12 {dimension_numbers = #tpu.dot_dimension_numbers<[1], [0], [0], [1], [0, 0, 1, 1], [], []>} : vector<256x32xf32>, vector<32x64xf32>, vector<256x64xf32> -> vector<256x64xf32>
    %c0_13 = arith.constant 0 : index
    %c0_14 = arith.constant 0 : index
    %c0_15 = arith.constant 0 : index
    %10 = vector.load %arg4[%c0_13, %c0_14, %c0_15] : memref<4x1x64xf32, #tpu.memory_space<vmem>>, vector<1x1x64xf32>
    %11 = vector.shape_cast %10 : vector<1x1x64xf32> to vector<1x64xf32>
    %c0_16 = arith.constant 0 : index
    %c0_17 = arith.constant 0 : index
    %c0_18 = arith.constant 0 : index
    %12 = vector.load %arg5[%c0_16, %c0_17, %c0_18] : memref<4x1x64xf32, #tpu.memory_space<vmem>>, vector<1x1x64xf32>
    %13 = vector.shape_cast %12 : vector<1x1x64xf32> to vector<1x64xf32>
    %14 = vector.broadcast %11 : vector<1x64xf32> to vector<256x64xf32>
    %15 = arith.mulf %9, %14 : vector<256x64xf32>
    %16 = vector.broadcast %13 : vector<1x64xf32> to vector<256x64xf32>
    %17 = arith.addf %15, %16 : vector<256x64xf32>
    %cst_19 = arith.constant 0.000000e+00 : f32
    %18 = vector.broadcast %cst_19 : f32 to vector<256x64xf32>
    %19 = arith.maximumf %17, %18 : vector<256x64xf32>
    %20 = vector.extract_strided_slice %19 {offsets = [0, 0], sizes = [16, 64], strides = [1, 1]} : vector<256x64xf32> to vector<16x64xf32>
    %21 = vector.extract_strided_slice %19 {offsets = [16, 0], sizes = [16, 64], strides = [1, 1]} : vector<256x64xf32> to vector<16x64xf32>
    %22 = arith.maximumf %20, %21 : vector<16x64xf32>
    %c0_20 = arith.constant 0 : index
    %c0_21 = arith.constant 0 : index
    %23 = vector.load %arg7[%c0_20, %c0_21] : memref<16x64xf32, #tpu.memory_space<vmem>>, vector<16x64xf32>
    tpu.vector_store %arg7[%c0_20, %c0_21], %22 {strides = array<i32>} : memref<16x64xf32, #tpu.memory_space<vmem>>, vector<16x64xf32>,
    %c0_22 = arith.constant 0 : index
    %c0_23 = arith.constant 0 : index
    %24 = tpu.strided_load %arg7[%c0_22, %c0_23] {strides = array<i32: 2, 1>} : memref<16x64xf32, #tpu.memory_space<vmem>>, vector<8x64xf32>
    %c1 = arith.constant 1 : index
    %c0_24 = arith.constant 0 : index
    %25 = tpu.strided_load %arg7[%c1, %c0_24] {strides = array<i32: 2, 1>} : memref<16x64xf32, #tpu.memory_space<vmem>>, vector<8x64xf32>
    %26 = arith.maximumf %24, %25 : vector<8x64xf32>
    %c24 = arith.constant 24 : index
    %c0_25 = arith.constant 0 : index
    %27 = vector.load %arg8[%c24, %c0_25] : memref<168x64xf32, #tpu.memory_space<vmem>>, vector<8x64xf32>
    tpu.vector_store %arg8[%c24, %c0_25], %26 {strides = array<i32>} : memref<168x64xf32, #tpu.memory_space<vmem>>, vector<8x64xf32>,
    %28 = vector.extract_strided_slice %19 {offsets = [32, 0], sizes = [16, 64], strides = [1, 1]} : vector<256x64xf32> to vector<16x64xf32>
    %29 = vector.extract_strided_slice %19 {offsets = [48, 0], sizes = [16, 64], strides = [1, 1]} : vector<256x64xf32> to vector<16x64xf32>
    %30 = arith.maximumf %28, %29 : vector<16x64xf32>
    %c0_26 = arith.constant 0 : index
    %c0_27 = arith.constant 0 : index
    %31 = vector.load %arg7[%c0_26, %c0_27] : memref<16x64xf32, #tpu.memory_space<vmem>>, vector<16x64xf32>
    tpu.vector_store %arg7[%c0_26, %c0_27], %30 {strides = array<i32>} : memref<16x64xf32, #tpu.memory_space<vmem>>, vector<16x64xf32>,
    %c0_28 = arith.constant 0 : index
    %c0_29 = arith.constant 0 : index
    %32 = tpu.strided_load %arg7[%c0_28, %c0_29] {strides = array<i32: 2, 1>} : memref<16x64xf32, #tpu.memory_space<vmem>>, vector<8x64xf32>
    %c1_30 = arith.constant 1 : index
    %c0_31 = arith.constant 0 : index
    %33 = tpu.strided_load %arg7[%c1_30, %c0_31] {strides = array<i32: 2, 1>} : memref<16x64xf32, #tpu.memory_space<vmem>>, vector<8x64xf32>
    %34 = arith.maximumf %32, %33 : vector<8x64xf32>
    %c40 = arith.constant 40 : index
    %c0_32 = arith.constant 0 : index
    %35 = vector.load %arg8[%c40, %c0_32] : memref<168x64xf32, #tpu.memory_space<vmem>>, vector<8x64xf32>
    tpu.vector_store %arg8[%c40, %c0_32], %34 {strides = array<i32>} : memref<168x64xf32, #tpu.memory_space<vmem>>, vector<8x64xf32>,
    %36 = vector.extract_strided_slice %19 {offsets = [64, 0], sizes = [16, 64], strides = [1, 1]} : vector<256x64xf32> to vector<16x64xf32>
    %37 = vector.extract_strided_slice %19 {offsets = [80, 0], sizes = [16, 64], strides = [1, 1]} : vector<256x64xf32> to vector<16x64xf32>
    %38 = arith.maximumf %36, %37 : vector<16x64xf32>
    %c0_33 = arith.constant 0 : index
    %c0_34 = arith.constant 0 : index
    %39 = vector.load %arg7[%c0_33, %c0_34] : memref<16x64xf32, #tpu.memory_space<vmem>>, vector<16x64xf32>
    tpu.vector_store %arg7[%c0_33, %c0_34], %38 {strides = array<i32>} : memref<16x64xf32, #tpu.memory_space<vmem>>, vector<16x64xf32>,
    %c0_35 = arith.constant 0 : index
    %c0_36 = arith.constant 0 : index
    %40 = tpu.strided_load %arg7[%c0_35, %c0_36] {strides = array<i32: 2, 1>} : memref<16x64xf32, #tpu.memory_space<vmem>>, vector<8x64xf32>
    %c1_37 = arith.constant 1 : index
    %c0_38 = arith.constant 0 : index
    %41 = tpu.strided_load %arg7[%c1_37, %c0_38] {strides = array<i32: 2, 1>} : memref<16x64xf32, #tpu.memory_space<vmem>>, vector<8x64xf32>
    %42 = arith.maximumf %40, %41 : vector<8x64xf32>
    %c56 = arith.constant 56 : index
    %c0_39 = arith.constant 0 : index
    %43 = vector.load %arg8[%c56, %c0_39] : memref<168x64xf32, #tpu.memory_space<vmem>>, vector<8x64xf32>
    tpu.vector_store %arg8[%c56, %c0_39], %42 {strides = array<i32>} : memref<168x64xf32, #tpu.memory_space<vmem>>, vector<8x64xf32>,
    %44 = vector.extract_strided_slice %19 {offsets = [96, 0], sizes = [16, 64], strides = [1, 1]} : vector<256x64xf32> to vector<16x64xf32>
    %45 = vector.extract_strided_slice %19 {offsets = [112, 0], sizes = [16, 64], strides = [1, 1]} : vector<256x64xf32> to vector<16x64xf32>
    %46 = arith.maximumf %44, %45 : vector<16x64xf32>
    %c0_40 = arith.constant 0 : index
    %c0_41 = arith.constant 0 : index
    %47 = vector.load %arg7[%c0_40, %c0_41] : memref<16x64xf32, #tpu.memory_space<vmem>>, vector<16x64xf32>
    tpu.vector_store %arg7[%c0_40, %c0_41], %46 {strides = array<i32>} : memref<16x64xf32, #tpu.memory_space<vmem>>, vector<16x64xf32>,
    %c0_42 = arith.constant 0 : index
    %c0_43 = arith.constant 0 : index
    %48 = tpu.strided_load %arg7[%c0_42, %c0_43] {strides = array<i32: 2, 1>} : memref<16x64xf32, #tpu.memory_space<vmem>>, vector<8x64xf32>
    %c1_44 = arith.constant 1 : index
    %c0_45 = arith.constant 0 : index
    %49 = tpu.strided_load %arg7[%c1_44, %c0_45] {strides = array<i32: 2, 1>} : memref<16x64xf32, #tpu.memory_space<vmem>>, vector<8x64xf32>
    %50 = arith.maximumf %48, %49 : vector<8x64xf32>
    %c72 = arith.constant 72 : index
    %c0_46 = arith.constant 0 : index
    %51 = vector.load %arg8[%c72, %c0_46] : memref<168x64xf32, #tpu.memory_space<vmem>>, vector<8x64xf32>
    tpu.vector_store %arg8[%c72, %c0_46], %50 {strides = array<i32>} : memref<168x64xf32, #tpu.memory_space<vmem>>, vector<8x64xf32>,
    %52 = vector.extract_strided_slice %19 {offsets = [128, 0], sizes = [16, 64], strides = [1, 1]} : vector<256x64xf32> to vector<16x64xf32>
    %53 = vector.extract_strided_slice %19 {offsets = [144, 0], sizes = [16, 64], strides = [1, 1]} : vector<256x64xf32> to vector<16x64xf32>
    %54 = arith.maximumf %52, %53 : vector<16x64xf32>
    %c0_47 = arith.constant 0 : index
    %c0_48 = arith.constant 0 : index
    %55 = vector.load %arg7[%c0_47, %c0_48] : memref<16x64xf32, #tpu.memory_space<vmem>>, vector<16x64xf32>
    tpu.vector_store %arg7[%c0_47, %c0_48], %54 {strides = array<i32>} : memref<16x64xf32, #tpu.memory_space<vmem>>, vector<16x64xf32>,
    %c0_49 = arith.constant 0 : index
    %c0_50 = arith.constant 0 : index
    %56 = tpu.strided_load %arg7[%c0_49, %c0_50] {strides = array<i32: 2, 1>} : memref<16x64xf32, #tpu.memory_space<vmem>>, vector<8x64xf32>
    %c1_51 = arith.constant 1 : index
    %c0_52 = arith.constant 0 : index
    %57 = tpu.strided_load %arg7[%c1_51, %c0_52] {strides = array<i32: 2, 1>} : memref<16x64xf32, #tpu.memory_space<vmem>>, vector<8x64xf32>
    %58 = arith.maximumf %56, %57 : vector<8x64xf32>
    %c88 = arith.constant 88 : index
    %c0_53 = arith.constant 0 : index
    %59 = vector.load %arg8[%c88, %c0_53] : memref<168x64xf32, #tpu.memory_space<vmem>>, vector<8x64xf32>
    tpu.vector_store %arg8[%c88, %c0_53], %58 {strides = array<i32>} : memref<168x64xf32, #tpu.memory_space<vmem>>, vector<8x64xf32>,
    %60 = vector.extract_strided_slice %19 {offsets = [160, 0], sizes = [16, 64], strides = [1, 1]} : vector<256x64xf32> to vector<16x64xf32>
    %61 = vector.extract_strided_slice %19 {offsets = [176, 0], sizes = [16, 64], strides = [1, 1]} : vector<256x64xf32> to vector<16x64xf32>
    %62 = arith.maximumf %60, %61 : vector<16x64xf32>
    %c0_54 = arith.constant 0 : index
    %c0_55 = arith.constant 0 : index
    %63 = vector.load %arg7[%c0_54, %c0_55] : memref<16x64xf32, #tpu.memory_space<vmem>>, vector<16x64xf32>
    tpu.vector_store %arg7[%c0_54, %c0_55], %62 {strides = array<i32>} : memref<16x64xf32, #tpu.memory_space<vmem>>, vector<16x64xf32>,
    %c0_56 = arith.constant 0 : index
    %c0_57 = arith.constant 0 : index
    %64 = tpu.strided_load %arg7[%c0_56, %c0_57] {strides = array<i32: 2, 1>} : memref<16x64xf32, #tpu.memory_space<vmem>>, vector<8x64xf32>
    %c1_58 = arith.constant 1 : index
    %c0_59 = arith.constant 0 : index
    %65 = tpu.strided_load %arg7[%c1_58, %c0_59] {strides = array<i32: 2, 1>} : memref<16x64xf32, #tpu.memory_space<vmem>>, vector<8x64xf32>
    %66 = arith.maximumf %64, %65 : vector<8x64xf32>
    %c104 = arith.constant 104 : index
    %c0_60 = arith.constant 0 : index
    %67 = vector.load %arg8[%c104, %c0_60] : memref<168x64xf32, #tpu.memory_space<vmem>>, vector<8x64xf32>
    tpu.vector_store %arg8[%c104, %c0_60], %66 {strides = array<i32>} : memref<168x64xf32, #tpu.memory_space<vmem>>, vector<8x64xf32>,
    %68 = vector.extract_strided_slice %19 {offsets = [192, 0], sizes = [16, 64], strides = [1, 1]} : vector<256x64xf32> to vector<16x64xf32>
    %69 = vector.extract_strided_slice %19 {offsets = [208, 0], sizes = [16, 64], strides = [1, 1]} : vector<256x64xf32> to vector<16x64xf32>
    %70 = arith.maximumf %68, %69 : vector<16x64xf32>
    %c0_61 = arith.constant 0 : index
    %c0_62 = arith.constant 0 : index
    %71 = vector.load %arg7[%c0_61, %c0_62] : memref<16x64xf32, #tpu.memory_space<vmem>>, vector<16x64xf32>
    tpu.vector_store %arg7[%c0_61, %c0_62], %70 {strides = array<i32>} : memref<16x64xf32, #tpu.memory_space<vmem>>, vector<16x64xf32>,
    %c0_63 = arith.constant 0 : index
    %c0_64 = arith.constant 0 : index
    %72 = tpu.strided_load %arg7[%c0_63, %c0_64] {strides = array<i32: 2, 1>} : memref<16x64xf32, #tpu.memory_space<vmem>>, vector<8x64xf32>
    %c1_65 = arith.constant 1 : index
    %c0_66 = arith.constant 0 : index
    %73 = tpu.strided_load %arg7[%c1_65, %c0_66] {strides = array<i32: 2, 1>} : memref<16x64xf32, #tpu.memory_space<vmem>>, vector<8x64xf32>
    %74 = arith.maximumf %72, %73 : vector<8x64xf32>
    %c120 = arith.constant 120 : index
    %c0_67 = arith.constant 0 : index
    %75 = vector.load %arg8[%c120, %c0_67] : memref<168x64xf32, #tpu.memory_space<vmem>>, vector<8x64xf32>
    tpu.vector_store %arg8[%c120, %c0_67], %74 {strides = array<i32>} : memref<168x64xf32, #tpu.memory_space<vmem>>, vector<8x64xf32>,
    %76 = vector.extract_strided_slice %19 {offsets = [224, 0], sizes = [16, 64], strides = [1, 1]} : vector<256x64xf32> to vector<16x64xf32>
    %77 = vector.extract_strided_slice %19 {offsets = [240, 0], sizes = [16, 64], strides = [1, 1]} : vector<256x64xf32> to vector<16x64xf32>
    %78 = arith.maximumf %76, %77 : vector<16x64xf32>
    %c0_68 = arith.constant 0 : index
    %c0_69 = arith.constant 0 : index
    %79 = vector.load %arg7[%c0_68, %c0_69] : memref<16x64xf32, #tpu.memory_space<vmem>>, vector<16x64xf32>
    tpu.vector_store %arg7[%c0_68, %c0_69], %78 {strides = array<i32>} : memref<16x64xf32, #tpu.memory_space<vmem>>, vector<16x64xf32>,
    %c0_70 = arith.constant 0 : index
    %c0_71 = arith.constant 0 : index
    %80 = tpu.strided_load %arg7[%c0_70, %c0_71] {strides = array<i32: 2, 1>} : memref<16x64xf32, #tpu.memory_space<vmem>>, vector<8x64xf32>
    %c1_72 = arith.constant 1 : index
    %c0_73 = arith.constant 0 : index
    %81 = tpu.strided_load %arg7[%c1_72, %c0_73] {strides = array<i32: 2, 1>} : memref<16x64xf32, #tpu.memory_space<vmem>>, vector<8x64xf32>
    %82 = arith.maximumf %80, %81 : vector<8x64xf32>
    %c136 = arith.constant 136 : index
    %c0_74 = arith.constant 0 : index
    %83 = vector.load %arg8[%c136, %c0_74] : memref<168x64xf32, #tpu.memory_space<vmem>>, vector<8x64xf32>
    tpu.vector_store %arg8[%c136, %c0_74], %82 {strides = array<i32>} : memref<168x64xf32, #tpu.memory_space<vmem>>, vector<8x64xf32>,
    %c1_75 = arith.constant 1 : index
    %c0_76 = arith.constant 0 : index
    %c0_77 = arith.constant 0 : index
    %84 = vector.load %arg4[%c1_75, %c0_76, %c0_77] : memref<4x1x64xf32, #tpu.memory_space<vmem>>, vector<1x1x64xf32>
    %85 = vector.shape_cast %84 : vector<1x1x64xf32> to vector<1x64xf32>
    %c1_78 = arith.constant 1 : index
    %c0_79 = arith.constant 0 : index
    %c0_80 = arith.constant 0 : index
    %86 = vector.load %arg5[%c1_78, %c0_79, %c0_80] : memref<4x1x64xf32, #tpu.memory_space<vmem>>, vector<1x1x64xf32>
    %87 = vector.shape_cast %86 : vector<1x1x64xf32> to vector<1x64xf32>
    %cst_81 = arith.constant 0.000000e+00 : f32
    %88 = vector.broadcast %cst_81 : f32 to vector<120x64xf32>
    %c0_82 = arith.constant 0 : index
    %c0_83 = arith.constant 0 : index
    %89 = vector.load %arg8[%c0_82, %c0_83] : memref<168x64xf32, #tpu.memory_space<vmem>>, vector<136x64xf32>
    %90 = vector.extract_strided_slice %89 {offsets = [7, 0], sizes = [120, 64], strides = [1, 1]} : vector<136x64xf32> to vector<120x64xf32>
    %c0_84 = arith.constant 0 : index
    %c0_85 = arith.constant 0 : index
    %c0_86 = arith.constant 0 : index
    %c0_87 = arith.constant 0 : index
    %91 = vector.load %arg3[%c0_84, %c0_85, %c0_86, %c0_87] : memref<3x9x64x64xf32, #tpu.memory_space<vmem>>, vector<1x1x64x64xf32>
    %92 = vector.shape_cast %91 : vector<1x1x64x64xf32> to vector<64x64xf32>
    %cst_88 = arith.constant dense<0.000000e+00> : vector<120x64xf32>
    %93 = tpu.matmul %90, %92, %cst_88 {dimension_numbers = #tpu.dot_dimension_numbers<[1], [0], [0], [1], [0, 0, 1, 1], [], []>} : vector<120x64xf32>, vector<64x64xf32>, vector<120x64xf32> -> vector<120x64xf32>
    %94 = arith.addf %88, %93 : vector<120x64xf32>
    %95 = vector.extract_strided_slice %89 {offsets = [8, 0], sizes = [120, 64], strides = [1, 1]} : vector<136x64xf32> to vector<120x64xf32>
    %c0_89 = arith.constant 0 : index
    %c1_90 = arith.constant 1 : index
    %c0_91 = arith.constant 0 : index
    %c0_92 = arith.constant 0 : index
    %96 = vector.load %arg3[%c0_89, %c1_90, %c0_91, %c0_92] : memref<3x9x64x64xf32, #tpu.memory_space<vmem>>, vector<1x1x64x64xf32>
    %97 = vector.shape_cast %96 : vector<1x1x64x64xf32> to vector<64x64xf32>
    %cst_93 = arith.constant dense<0.000000e+00> : vector<120x64xf32>
    %98 = tpu.matmul %95, %97, %cst_93 {dimension_numbers = #tpu.dot_dimension_numbers<[1], [0], [0], [1], [0, 0, 1, 1], [], []>} : vector<120x64xf32>, vector<64x64xf32>, vector<120x64xf32> -> vector<120x64xf32>
    %99 = arith.addf %94, %98 : vector<120x64xf32>
    %100 = vector.extract_strided_slice %89 {offsets = [9, 0], sizes = [120, 64], strides = [1, 1]} : vector<136x64xf32> to vector<120x64xf32>
    %c0_94 = arith.constant 0 : index
    %c2 = arith.constant 2 : index
    %c0_95 = arith.constant 0 : index
    %c0_96 = arith.constant 0 : index
    %101 = vector.load %arg3[%c0_94, %c2, %c0_95, %c0_96] : memref<3x9x64x64xf32, #tpu.memory_space<vmem>>, vector<1x1x64x64xf32>
    %102 = vector.shape_cast %101 : vector<1x1x64x64xf32> to vector<64x64xf32>
    %cst_97 = arith.constant dense<0.000000e+00> : vector<120x64xf32>
    %103 = tpu.matmul %100, %102, %cst_97 {dimension_numbers = #tpu.dot_dimension_numbers<[1], [0], [0], [1], [0, 0, 1, 1], [], []>} : vector<120x64xf32>, vector<64x64xf32>, vector<120x64xf32> -> vector<120x64xf32>
    %104 = arith.addf %99, %103 : vector<120x64xf32>
    %c16 = arith.constant 16 : index
    %c0_98 = arith.constant 0 : index
    %105 = vector.load %arg8[%c16, %c0_98] : memref<168x64xf32, #tpu.memory_space<vmem>>, vector<136x64xf32>
    %106 = vector.extract_strided_slice %105 {offsets = [7, 0], sizes = [120, 64], strides = [1, 1]} : vector<136x64xf32> to vector<120x64xf32>
    %c0_99 = arith.constant 0 : index
    %c3 = arith.constant 3 : index
    %c0_100 = arith.constant 0 : index
    %c0_101 = arith.constant 0 : index
    %107 = vector.load %arg3[%c0_99, %c3, %c0_100, %c0_101] : memref<3x9x64x64xf32, #tpu.memory_space<vmem>>, vector<1x1x64x64xf32>
    %108 = vector.shape_cast %107 : vector<1x1x64x64xf32> to vector<64x64xf32>
    %cst_102 = arith.constant dense<0.000000e+00> : vector<120x64xf32>
    %109 = tpu.matmul %106, %108, %cst_102 {dimension_numbers = #tpu.dot_dimension_numbers<[1], [0], [0], [1], [0, 0, 1, 1], [], []>} : vector<120x64xf32>, vector<64x64xf32>, vector<120x64xf32> -> vector<120x64xf32>
    %110 = arith.addf %104, %109 : vector<120x64xf32>
    %111 = vector.extract_strided_slice %105 {offsets = [8, 0], sizes = [120, 64], strides = [1, 1]} : vector<136x64xf32> to vector<120x64xf32>
    %c0_103 = arith.constant 0 : index
    %c4 = arith.constant 4 : index
    %c0_104 = arith.constant 0 : index
    %c0_105 = arith.constant 0 : index
    %112 = vector.load %arg3[%c0_103, %c4, %c0_104, %c0_105] : memref<3x9x64x64xf32, #tpu.memory_space<vmem>>, vector<1x1x64x64xf32>
    %113 = vector.shape_cast %112 : vector<1x1x64x64xf32> to vector<64x64xf32>
    %cst_106 = arith.constant dense<0.000000e+00> : vector<120x64xf32>
    %114 = tpu.matmul %111, %113, %cst_106 {dimension_numbers = #tpu.dot_dimension_numbers<[1], [0], [0], [1], [0, 0, 1, 1], [], []>} : vector<120x64xf32>, vector<64x64xf32>, vector<120x64xf32> -> vector<120x64xf32>
    %115 = arith.addf %110, %114 : vector<120x64xf32>
    %116 = vector.extract_strided_slice %105 {offsets = [9, 0], sizes = [120, 64], strides = [1, 1]} : vector<136x64xf32> to vector<120x64xf32>
    %c0_107 = arith.constant 0 : index
    %c5 = arith.constant 5 : index
    %c0_108 = arith.constant 0 : index
    %c0_109 = arith.constant 0 : index
    %117 = vector.load %arg3[%c0_107, %c5, %c0_108, %c0_109] : memref<3x9x64x64xf32, #tpu.memory_space<vmem>>, vector<1x1x64x64xf32>
    %118 = vector.shape_cast %117 : vector<1x1x64x64xf32> to vector<64x64xf32>
    %cst_110 = arith.constant dense<0.000000e+00> : vector<120x64xf32>
    %119 = tpu.matmul %116, %118, %cst_110 {dimension_numbers = #tpu.dot_dimension_numbers<[1], [0], [0], [1], [0, 0, 1, 1], [], []>} : vector<120x64xf32>, vector<64x64xf32>, vector<120x64xf32> -> vector<120x64xf32>
    %120 = arith.addf %115, %119 : vector<120x64xf32>
    %c32 = arith.constant 32 : index
    %c0_111 = arith.constant 0 : index
    %121 = vector.load %arg8[%c32, %c0_111] : memref<168x64xf32, #tpu.memory_space<vmem>>, vector<136x64xf32>
    %122 = vector.extract_strided_slice %121 {offsets = [7, 0], sizes = [120, 64], strides = [1, 1]} : vector<136x64xf32> to vector<120x64xf32>
    %c0_112 = arith.constant 0 : index
    %c6 = arith.constant 6 : index
    %c0_113 = arith.constant 0 : index
    %c0_114 = arith.constant 0 : index
    %123 = vector.load %arg3[%c0_112, %c6, %c0_113, %c0_114] : memref<3x9x64x64xf32, #tpu.memory_space<vmem>>, vector<1x1x64x64xf32>
    %124 = vector.shape_cast %123 : vector<1x1x64x64xf32> to vector<64x64xf32>
    %cst_115 = arith.constant dense<0.000000e+00> : vector<120x64xf32>
    %125 = tpu.matmul %122, %124, %cst_115 {dimension_numbers = #tpu.dot_dimension_numbers<[1], [0], [0], [1], [0, 0, 1, 1], [], []>} : vector<120x64xf32>, vector<64x64xf32>, vector<120x64xf32> -> vector<120x64xf32>
    %126 = arith.addf %120, %125 : vector<120x64xf32>
    %127 = vector.extract_strided_slice %121 {offsets = [8, 0], sizes = [120, 64], strides = [1, 1]} : vector<136x64xf32> to vector<120x64xf32>
    %c0_116 = arith.constant 0 : index
    %c7 = arith.constant 7 : index
    %c0_117 = arith.constant 0 : index
    %c0_118 = arith.constant 0 : index
    %128 = vector.load %arg3[%c0_116, %c7, %c0_117, %c0_118] : memref<3x9x64x64xf32, #tpu.memory_space<vmem>>, vector<1x1x64x64xf32>
    %129 = vector.shape_cast %128 : vector<1x1x64x64xf32> to vector<64x64xf32>
    %cst_119 = arith.constant dense<0.000000e+00> : vector<120x64xf32>
    %130 = tpu.matmul %127, %129, %cst_119 {dimension_numbers = #tpu.dot_dimension_numbers<[1], [0], [0], [1], [0, 0, 1, 1], [], []>} : vector<120x64xf32>, vector<64x64xf32>, vector<120x64xf32> -> vector<120x64xf32>
    %131 = arith.addf %126, %130 : vector<120x64xf32>
    %132 = vector.extract_strided_slice %121 {offsets = [9, 0], sizes = [120, 64], strides = [1, 1]} : vector<136x64xf32> to vector<120x64xf32>
    %c0_120 = arith.constant 0 : index
    %c8 = arith.constant 8 : index
    %c0_121 = arith.constant 0 : index
    %c0_122 = arith.constant 0 : index
    %133 = vector.load %arg3[%c0_120, %c8, %c0_121, %c0_122] : memref<3x9x64x64xf32, #tpu.memory_space<vmem>>, vector<1x1x64x64xf32>
    %134 = vector.shape_cast %133 : vector<1x1x64x64xf32> to vector<64x64xf32>
    %cst_123 = arith.constant dense<0.000000e+00> : vector<120x64xf32>
    %135 = tpu.matmul %132, %134, %cst_123 {dimension_numbers = #tpu.dot_dimension_numbers<[1], [0], [0], [1], [0, 0, 1, 1], [], []>} : vector<120x64xf32>, vector<64x64xf32>, vector<120x64xf32> -> vector<120x64xf32>
    %136 = arith.addf %131, %135 : vector<120x64xf32>
    %137 = vector.broadcast %85 : vector<1x64xf32> to vector<120x64xf32>
    %138 = arith.mulf %136, %137 : vector<120x64xf32>
    %139 = vector.broadcast %87 : vector<1x64xf32> to vector<120x64xf32>
    %140 = arith.addf %138, %139 : vector<120x64xf32>
    %cst_124 = arith.constant 0.000000e+00 : f32
    %141 = vector.broadcast %cst_124 : f32 to vector<120x64xf32>
    %142 = arith.maximumf %140, %141 : vector<120x64xf32>
    %143 = vector.extract_strided_slice %142 {offsets = [0, 0], sizes = [8, 64], strides = [1, 1]} : vector<120x64xf32> to vector<8x64xf32>
    %144 = vector.extract_strided_slice %142 {offsets = [16, 0], sizes = [8, 64], strides = [1, 1]} : vector<120x64xf32> to vector<8x64xf32>
    %145 = arith.maximumf %143, %144 : vector<8x64xf32>
    %c0_125 = arith.constant 0 : index
    %c0_126 = arith.constant 0 : index
    %146 = vector.load %arg7[%c0_125, %c0_126] : memref<16x64xf32, #tpu.memory_space<vmem>>, vector<8x64xf32>
    tpu.vector_store %arg7[%c0_125, %c0_126], %145 {strides = array<i32>} : memref<16x64xf32, #tpu.memory_space<vmem>>, vector<8x64xf32>,
    %c0_127 = arith.constant 0 : index
    %c0_128 = arith.constant 0 : index
    %147 = tpu.strided_load %arg7[%c0_127, %c0_128] {strides = array<i32: 2, 1>} : memref<16x64xf32, #tpu.memory_space<vmem>>, vector<4x64xf32>
    %c1_129 = arith.constant 1 : index
    %c0_130 = arith.constant 0 : index
    %148 = tpu.strided_load %arg7[%c1_129, %c0_130] {strides = array<i32: 2, 1>} : memref<16x64xf32, #tpu.memory_space<vmem>>, vector<4x64xf32>
    %149 = arith.maximumf %147, %148 : vector<4x64xf32>
    %c16_131 = arith.constant 16 : index
    %c0_132 = arith.constant 0 : index
    %150 = vector.load %arg9[%c16_131, %c0_132] : memref<64x64xf32, #tpu.memory_space<vmem>>, vector<4x64xf32>
    tpu.vector_store %arg9[%c16_131, %c0_132], %149 {strides = array<i32>} : memref<64x64xf32, #tpu.memory_space<vmem>>, vector<4x64xf32>,
    %151 = vector.extract_strided_slice %142 {offsets = [32, 0], sizes = [8, 64], strides = [1, 1]} : vector<120x64xf32> to vector<8x64xf32>
    %152 = vector.extract_strided_slice %142 {offsets = [48, 0], sizes = [8, 64], strides = [1, 1]} : vector<120x64xf32> to vector<8x64xf32>
    %153 = arith.maximumf %151, %152 : vector<8x64xf32>
    %c0_133 = arith.constant 0 : index
    %c0_134 = arith.constant 0 : index
    %154 = vector.load %arg7[%c0_133, %c0_134] : memref<16x64xf32, #tpu.memory_space<vmem>>, vector<8x64xf32>
    tpu.vector_store %arg7[%c0_133, %c0_134], %153 {strides = array<i32>} : memref<16x64xf32, #tpu.memory_space<vmem>>, vector<8x64xf32>,
    %c0_135 = arith.constant 0 : index
    %c0_136 = arith.constant 0 : index
    %155 = tpu.strided_load %arg7[%c0_135, %c0_136] {strides = array<i32: 2, 1>} : memref<16x64xf32, #tpu.memory_space<vmem>>, vector<4x64xf32>
    %c1_137 = arith.constant 1 : index
    %c0_138 = arith.constant 0 : index
    %156 = tpu.strided_load %arg7[%c1_137, %c0_138] {strides = array<i32: 2, 1>} : memref<16x64xf32, #tpu.memory_space<vmem>>, vector<4x64xf32>
    %157 = arith.maximumf %155, %156 : vector<4x64xf32>
    %c24_139 = arith.constant 24 : index
    %c0_140 = arith.constant 0 : index
    %158 = vector.load %arg9[%c24_139, %c0_140] : memref<64x64xf32, #tpu.memory_space<vmem>>, vector<4x64xf32>
    tpu.vector_store %arg9[%c24_139, %c0_140], %157 {strides = array<i32>} : memref<64x64xf32, #tpu.memory_space<vmem>>, vector<4x64xf32>,
    %159 = vector.extract_strided_slice %142 {offsets = [64, 0], sizes = [8, 64], strides = [1, 1]} : vector<120x64xf32> to vector<8x64xf32>
    %160 = vector.extract_strided_slice %142 {offsets = [80, 0], sizes = [8, 64], strides = [1, 1]} : vector<120x64xf32> to vector<8x64xf32>
    %161 = arith.maximumf %159, %160 : vector<8x64xf32>
    %c0_141 = arith.constant 0 : index
    %c0_142 = arith.constant 0 : index
    %162 = vector.load %arg7[%c0_141, %c0_142] : memref<16x64xf32, #tpu.memory_space<vmem>>, vector<8x64xf32>
    tpu.vector_store %arg7[%c0_141, %c0_142], %161 {strides = array<i32>} : memref<16x64xf32, #tpu.memory_space<vmem>>, vector<8x64xf32>,
    %c0_143 = arith.constant 0 : index
    %c0_144 = arith.constant 0 : index
    %163 = tpu.strided_load %arg7[%c0_143, %c0_144] {strides = array<i32: 2, 1>} : memref<16x64xf32, #tpu.memory_space<vmem>>, vector<4x64xf32>
    %c1_145 = arith.constant 1 : index
    %c0_146 = arith.constant 0 : index
    %164 = tpu.strided_load %arg7[%c1_145, %c0_146] {strides = array<i32: 2, 1>} : memref<16x64xf32, #tpu.memory_space<vmem>>, vector<4x64xf32>
    %165 = arith.maximumf %163, %164 : vector<4x64xf32>
    %c32_147 = arith.constant 32 : index
    %c0_148 = arith.constant 0 : index
    %166 = vector.load %arg9[%c32_147, %c0_148] : memref<64x64xf32, #tpu.memory_space<vmem>>, vector<4x64xf32>
    tpu.vector_store %arg9[%c32_147, %c0_148], %165 {strides = array<i32>} : memref<64x64xf32, #tpu.memory_space<vmem>>, vector<4x64xf32>,
    %167 = vector.extract_strided_slice %142 {offsets = [96, 0], sizes = [8, 64], strides = [1, 1]} : vector<120x64xf32> to vector<8x64xf32>
    %168 = vector.extract_strided_slice %142 {offsets = [112, 0], sizes = [8, 64], strides = [1, 1]} : vector<120x64xf32> to vector<8x64xf32>
    %169 = arith.maximumf %167, %168 : vector<8x64xf32>
    %c0_149 = arith.constant 0 : index
    %c0_150 = arith.constant 0 : index
    %170 = vector.load %arg7[%c0_149, %c0_150] : memref<16x64xf32, #tpu.memory_space<vmem>>, vector<8x64xf32>
    tpu.vector_store %arg7[%c0_149, %c0_150], %169 {strides = array<i32>} : memref<16x64xf32, #tpu.memory_space<vmem>>, vector<8x64xf32>,
    %c0_151 = arith.constant 0 : index
    %c0_152 = arith.constant 0 : index
    %171 = tpu.strided_load %arg7[%c0_151, %c0_152] {strides = array<i32: 2, 1>} : memref<16x64xf32, #tpu.memory_space<vmem>>, vector<4x64xf32>
    %c1_153 = arith.constant 1 : index
    %c0_154 = arith.constant 0 : index
    %172 = tpu.strided_load %arg7[%c1_153, %c0_154] {strides = array<i32: 2, 1>} : memref<16x64xf32, #tpu.memory_space<vmem>>, vector<4x64xf32>
    %173 = arith.maximumf %171, %172 : vector<4x64xf32>
    %c40_155 = arith.constant 40 : index
    %c0_156 = arith.constant 0 : index
    %174 = vector.load %arg9[%c40_155, %c0_156] : memref<64x64xf32, #tpu.memory_space<vmem>>, vector<4x64xf32>
    tpu.vector_store %arg9[%c40_155, %c0_156], %173 {strides = array<i32>} : memref<64x64xf32, #tpu.memory_space<vmem>>, vector<4x64xf32>,
    %c2_157 = arith.constant 2 : index
    %c0_158 = arith.constant 0 : index
    %c0_159 = arith.constant 0 : index
    %175 = vector.load %arg4[%c2_157, %c0_158, %c0_159] : memref<4x1x64xf32, #tpu.memory_space<vmem>>, vector<1x1x64xf32>
    %176 = vector.shape_cast %175 : vector<1x1x64xf32> to vector<1x64xf32>
    %c2_160 = arith.constant 2 : index
    %c0_161 = arith.constant 0 : index
    %c0_162 = arith.constant 0 : index
    %177 = vector.load %arg5[%c2_160, %c0_161, %c0_162] : memref<4x1x64xf32, #tpu.memory_space<vmem>>, vector<1x1x64xf32>
    %178 = vector.shape_cast %177 : vector<1x1x64xf32> to vector<1x64xf32>
    %cst_163 = arith.constant 0.000000e+00 : f32
    %179 = vector.broadcast %cst_163 : f32 to vector<28x64xf32>
    %c0_164 = arith.constant 0 : index
    %c0_165 = arith.constant 0 : index
    %180 = vector.load %arg9[%c0_164, %c0_165] : memref<64x64xf32, #tpu.memory_space<vmem>>, vector<48x64xf32>
    %181 = vector.extract_strided_slice %180 {offsets = [7, 0], sizes = [28, 64], strides = [1, 1]} : vector<48x64xf32> to vector<28x64xf32>
    %c1_166 = arith.constant 1 : index
    %c0_167 = arith.constant 0 : index
    %c0_168 = arith.constant 0 : index
    %c0_169 = arith.constant 0 : index
    %182 = vector.load %arg3[%c1_166, %c0_167, %c0_168, %c0_169] : memref<3x9x64x64xf32, #tpu.memory_space<vmem>>, vector<1x1x64x64xf32>
    %183 = vector.shape_cast %182 : vector<1x1x64x64xf32> to vector<64x64xf32>
    %cst_170 = arith.constant dense<0.000000e+00> : vector<28x64xf32>
    %184 = tpu.matmul %181, %183, %cst_170 {dimension_numbers = #tpu.dot_dimension_numbers<[1], [0], [0], [1], [0, 0, 1, 1], [], []>} : vector<28x64xf32>, vector<64x64xf32>, vector<28x64xf32> -> vector<28x64xf32>
    %185 = arith.addf %179, %184 : vector<28x64xf32>
    %186 = vector.extract_strided_slice %180 {offsets = [8, 0], sizes = [28, 64], strides = [1, 1]} : vector<48x64xf32> to vector<28x64xf32>
    %c1_171 = arith.constant 1 : index
    %c1_172 = arith.constant 1 : index
    %c0_173 = arith.constant 0 : index
    %c0_174 = arith.constant 0 : index
    %187 = vector.load %arg3[%c1_171, %c1_172, %c0_173, %c0_174] : memref<3x9x64x64xf32, #tpu.memory_space<vmem>>, vector<1x1x64x64xf32>
    %188 = vector.shape_cast %187 : vector<1x1x64x64xf32> to vector<64x64xf32>
    %cst_175 = arith.constant dense<0.000000e+00> : vector<28x64xf32>
    %189 = tpu.matmul %186, %188, %cst_175 {dimension_numbers = #tpu.dot_dimension_numbers<[1], [0], [0], [1], [0, 0, 1, 1], [], []>} : vector<28x64xf32>, vector<64x64xf32>, vector<28x64xf32> -> vector<28x64xf32>
    %190 = arith.addf %185, %189 : vector<28x64xf32>
    %191 = vector.extract_strided_slice %180 {offsets = [9, 0], sizes = [28, 64], strides = [1, 1]} : vector<48x64xf32> to vector<28x64xf32>
    %c1_176 = arith.constant 1 : index
    %c2_177 = arith.constant 2 : index
    %c0_178 = arith.constant 0 : index
    %c0_179 = arith.constant 0 : index
    %192 = vector.load %arg3[%c1_176, %c2_177, %c0_178, %c0_179] : memref<3x9x64x64xf32, #tpu.memory_space<vmem>>, vector<1x1x64x64xf32>
    %193 = vector.shape_cast %192 : vector<1x1x64x64xf32> to vector<64x64xf32>
    %cst_180 = arith.constant dense<0.000000e+00> : vector<28x64xf32>
    %194 = tpu.matmul %191, %193, %cst_180 {dimension_numbers = #tpu.dot_dimension_numbers<[1], [0], [0], [1], [0, 0, 1, 1], [], []>} : vector<28x64xf32>, vector<64x64xf32>, vector<28x64xf32> -> vector<28x64xf32>
    %195 = arith.addf %190, %194 : vector<28x64xf32>
    %c8_181 = arith.constant 8 : index
    %c0_182 = arith.constant 0 : index
    %196 = vector.load %arg9[%c8_181, %c0_182] : memref<64x64xf32, #tpu.memory_space<vmem>>, vector<48x64xf32>
    %197 = vector.extract_strided_slice %196 {offsets = [7, 0], sizes = [28, 64], strides = [1, 1]} : vector<48x64xf32> to vector<28x64xf32>
    %c1_183 = arith.constant 1 : index
    %c3_184 = arith.constant 3 : index
    %c0_185 = arith.constant 0 : index
    %c0_186 = arith.constant 0 : index
    %198 = vector.load %arg3[%c1_183, %c3_184, %c0_185, %c0_186] : memref<3x9x64x64xf32, #tpu.memory_space<vmem>>, vector<1x1x64x64xf32>
    %199 = vector.shape_cast %198 : vector<1x1x64x64xf32> to vector<64x64xf32>
    %cst_187 = arith.constant dense<0.000000e+00> : vector<28x64xf32>
    %200 = tpu.matmul %197, %199, %cst_187 {dimension_numbers = #tpu.dot_dimension_numbers<[1], [0], [0], [1], [0, 0, 1, 1], [], []>} : vector<28x64xf32>, vector<64x64xf32>, vector<28x64xf32> -> vector<28x64xf32>
    %201 = arith.addf %195, %200 : vector<28x64xf32>
    %202 = vector.extract_strided_slice %196 {offsets = [8, 0], sizes = [28, 64], strides = [1, 1]} : vector<48x64xf32> to vector<28x64xf32>
    %c1_188 = arith.constant 1 : index
    %c4_189 = arith.constant 4 : index
    %c0_190 = arith.constant 0 : index
    %c0_191 = arith.constant 0 : index
    %203 = vector.load %arg3[%c1_188, %c4_189, %c0_190, %c0_191] : memref<3x9x64x64xf32, #tpu.memory_space<vmem>>, vector<1x1x64x64xf32>
    %204 = vector.shape_cast %203 : vector<1x1x64x64xf32> to vector<64x64xf32>
    %cst_192 = arith.constant dense<0.000000e+00> : vector<28x64xf32>
    %205 = tpu.matmul %202, %204, %cst_192 {dimension_numbers = #tpu.dot_dimension_numbers<[1], [0], [0], [1], [0, 0, 1, 1], [], []>} : vector<28x64xf32>, vector<64x64xf32>, vector<28x64xf32> -> vector<28x64xf32>
    %206 = arith.addf %201, %205 : vector<28x64xf32>
    %207 = vector.extract_strided_slice %196 {offsets = [9, 0], sizes = [28, 64], strides = [1, 1]} : vector<48x64xf32> to vector<28x64xf32>
    %c1_193 = arith.constant 1 : index
    %c5_194 = arith.constant 5 : index
    %c0_195 = arith.constant 0 : index
    %c0_196 = arith.constant 0 : index
    %208 = vector.load %arg3[%c1_193, %c5_194, %c0_195, %c0_196] : memref<3x9x64x64xf32, #tpu.memory_space<vmem>>, vector<1x1x64x64xf32>
    %209 = vector.shape_cast %208 : vector<1x1x64x64xf32> to vector<64x64xf32>
    %cst_197 = arith.constant dense<0.000000e+00> : vector<28x64xf32>
    %210 = tpu.matmul %207, %209, %cst_197 {dimension_numbers = #tpu.dot_dimension_numbers<[1], [0], [0], [1], [0, 0, 1, 1], [], []>} : vector<28x64xf32>, vector<64x64xf32>, vector<28x64xf32> -> vector<28x64xf32>
    %211 = arith.addf %206, %210 : vector<28x64xf32>
    %c16_198 = arith.constant 16 : index
    %c0_199 = arith.constant 0 : index
    %212 = vector.load %arg9[%c16_198, %c0_199] : memref<64x64xf32, #tpu.memory_space<vmem>>, vector<48x64xf32>
    %213 = vector.extract_strided_slice %212 {offsets = [7, 0], sizes = [28, 64], strides = [1, 1]} : vector<48x64xf32> to vector<28x64xf32>
    %c1_200 = arith.constant 1 : index
    %c6_201 = arith.constant 6 : index
    %c0_202 = arith.constant 0 : index
    %c0_203 = arith.constant 0 : index
    %214 = vector.load %arg3[%c1_200, %c6_201, %c0_202, %c0_203] : memref<3x9x64x64xf32, #tpu.memory_space<vmem>>, vector<1x1x64x64xf32>
    %215 = vector.shape_cast %214 : vector<1x1x64x64xf32> to vector<64x64xf32>
    %cst_204 = arith.constant dense<0.000000e+00> : vector<28x64xf32>
    %216 = tpu.matmul %213, %215, %cst_204 {dimension_numbers = #tpu.dot_dimension_numbers<[1], [0], [0], [1], [0, 0, 1, 1], [], []>} : vector<28x64xf32>, vector<64x64xf32>, vector<28x64xf32> -> vector<28x64xf32>
    %217 = arith.addf %211, %216 : vector<28x64xf32>
    %218 = vector.extract_strided_slice %212 {offsets = [8, 0], sizes = [28, 64], strides = [1, 1]} : vector<48x64xf32> to vector<28x64xf32>
    %c1_205 = arith.constant 1 : index
    %c7_206 = arith.constant 7 : index
    %c0_207 = arith.constant 0 : index
    %c0_208 = arith.constant 0 : index
    %219 = vector.load %arg3[%c1_205, %c7_206, %c0_207, %c0_208] : memref<3x9x64x64xf32, #tpu.memory_space<vmem>>, vector<1x1x64x64xf32>
    %220 = vector.shape_cast %219 : vector<1x1x64x64xf32> to vector<64x64xf32>
    %cst_209 = arith.constant dense<0.000000e+00> : vector<28x64xf32>
    %221 = tpu.matmul %218, %220, %cst_209 {dimension_numbers = #tpu.dot_dimension_numbers<[1], [0], [0], [1], [0, 0, 1, 1], [], []>} : vector<28x64xf32>, vector<64x64xf32>, vector<28x64xf32> -> vector<28x64xf32>
    %222 = arith.addf %217, %221 : vector<28x64xf32>
    %223 = vector.extract_strided_slice %212 {offsets = [9, 0], sizes = [28, 64], strides = [1, 1]} : vector<48x64xf32> to vector<28x64xf32>
    %c1_210 = arith.constant 1 : index
    %c8_211 = arith.constant 8 : index
    %c0_212 = arith.constant 0 : index
    %c0_213 = arith.constant 0 : index
    %224 = vector.load %arg3[%c1_210, %c8_211, %c0_212, %c0_213] : memref<3x9x64x64xf32, #tpu.memory_space<vmem>>, vector<1x1x64x64xf32>
    %225 = vector.shape_cast %224 : vector<1x1x64x64xf32> to vector<64x64xf32>
    %cst_214 = arith.constant dense<0.000000e+00> : vector<28x64xf32>
    %226 = tpu.matmul %223, %225, %cst_214 {dimension_numbers = #tpu.dot_dimension_numbers<[1], [0], [0], [1], [0, 0, 1, 1], [], []>} : vector<28x64xf32>, vector<64x64xf32>, vector<28x64xf32> -> vector<28x64xf32>
    %227 = arith.addf %222, %226 : vector<28x64xf32>
    %228 = vector.broadcast %176 : vector<1x64xf32> to vector<28x64xf32>
    %229 = arith.mulf %227, %228 : vector<28x64xf32>
    %230 = vector.broadcast %178 : vector<1x64xf32> to vector<28x64xf32>
    %231 = arith.addf %229, %230 : vector<28x64xf32>
    %cst_215 = arith.constant 0.000000e+00 : f32
    %232 = vector.broadcast %cst_215 : f32 to vector<28x64xf32>
    %233 = arith.maximumf %231, %232 : vector<28x64xf32>
    %234 = vector.extract_strided_slice %233 {offsets = [0, 0], sizes = [4, 64], strides = [1, 1]} : vector<28x64xf32> to vector<4x64xf32>
    %235 = vector.extract_strided_slice %233 {offsets = [8, 0], sizes = [4, 64], strides = [1, 1]} : vector<28x64xf32> to vector<4x64xf32>
    %236 = arith.maximumf %234, %235 : vector<4x64xf32>
    %c0_216 = arith.constant 0 : index
    %c0_217 = arith.constant 0 : index
    %237 = vector.load %arg7[%c0_216, %c0_217] : memref<16x64xf32, #tpu.memory_space<vmem>>, vector<4x64xf32>
    tpu.vector_store %arg7[%c0_216, %c0_217], %236 {strides = array<i32>} : memref<16x64xf32, #tpu.memory_space<vmem>>, vector<4x64xf32>,
    %c0_218 = arith.constant 0 : index
    %c0_219 = arith.constant 0 : index
    %238 = tpu.strided_load %arg7[%c0_218, %c0_219] {strides = array<i32: 2, 1>} : memref<16x64xf32, #tpu.memory_space<vmem>>, vector<2x64xf32>
    %c1_220 = arith.constant 1 : index
    %c0_221 = arith.constant 0 : index
    %239 = tpu.strided_load %arg7[%c1_220, %c0_221] {strides = array<i32: 2, 1>} : memref<16x64xf32, #tpu.memory_space<vmem>>, vector<2x64xf32>
    %240 = arith.maximumf %238, %239 : vector<2x64xf32>
    %c16_222 = arith.constant 16 : index
    %c0_223 = arith.constant 0 : index
    %241 = vector.load %arg10[%c16_222, %c0_223] : memref<48x64xf32, #tpu.memory_space<vmem>>, vector<2x64xf32>
    tpu.vector_store %arg10[%c16_222, %c0_223], %240 {strides = array<i32>} : memref<48x64xf32, #tpu.memory_space<vmem>>, vector<2x64xf32>,
    %242 = vector.extract_strided_slice %233 {offsets = [16, 0], sizes = [4, 64], strides = [1, 1]} : vector<28x64xf32> to vector<4x64xf32>
    %243 = vector.extract_strided_slice %233 {offsets = [24, 0], sizes = [4, 64], strides = [1, 1]} : vector<28x64xf32> to vector<4x64xf32>
    %244 = arith.maximumf %242, %243 : vector<4x64xf32>
    %c0_224 = arith.constant 0 : index
    %c0_225 = arith.constant 0 : index
    %245 = vector.load %arg7[%c0_224, %c0_225] : memref<16x64xf32, #tpu.memory_space<vmem>>, vector<4x64xf32>
    tpu.vector_store %arg7[%c0_224, %c0_225], %244 {strides = array<i32>} : memref<16x64xf32, #tpu.memory_space<vmem>>, vector<4x64xf32>,
    %c0_226 = arith.constant 0 : index
    %c0_227 = arith.constant 0 : index
    %246 = tpu.strided_load %arg7[%c0_226, %c0_227] {strides = array<i32: 2, 1>} : memref<16x64xf32, #tpu.memory_space<vmem>>, vector<2x64xf32>
    %c1_228 = arith.constant 1 : index
    %c0_229 = arith.constant 0 : index
    %247 = tpu.strided_load %arg7[%c1_228, %c0_229] {strides = array<i32: 2, 1>} : memref<16x64xf32, #tpu.memory_space<vmem>>, vector<2x64xf32>
    %248 = arith.maximumf %246, %247 : vector<2x64xf32>
    %c24_230 = arith.constant 24 : index
    %c0_231 = arith.constant 0 : index
    %249 = vector.load %arg10[%c24_230, %c0_231] : memref<48x64xf32, #tpu.memory_space<vmem>>, vector<2x64xf32>
    tpu.vector_store %arg10[%c24_230, %c0_231], %248 {strides = array<i32>} : memref<48x64xf32, #tpu.memory_space<vmem>>, vector<2x64xf32>,
    %c3_232 = arith.constant 3 : index
    %c0_233 = arith.constant 0 : index
    %c0_234 = arith.constant 0 : index
    %250 = vector.load %arg4[%c3_232, %c0_233, %c0_234] : memref<4x1x64xf32, #tpu.memory_space<vmem>>, vector<1x1x64xf32>
    %251 = vector.shape_cast %250 : vector<1x1x64xf32> to vector<1x64xf32>
    %c3_235 = arith.constant 3 : index
    %c0_236 = arith.constant 0 : index
    %c0_237 = arith.constant 0 : index
    %252 = vector.load %arg5[%c3_235, %c0_236, %c0_237] : memref<4x1x64xf32, #tpu.memory_space<vmem>>, vector<1x1x64xf32>
    %253 = vector.shape_cast %252 : vector<1x1x64xf32> to vector<1x64xf32>
    %cst_238 = arith.constant 0.000000e+00 : f32
    %254 = vector.broadcast %cst_238 : f32 to vector<10x64xf32>
    %c0_239 = arith.constant 0 : index
    %c0_240 = arith.constant 0 : index
    %255 = vector.load %arg10[%c0_239, %c0_240] : memref<48x64xf32, #tpu.memory_space<vmem>>, vector<32x64xf32>
    %256 = vector.extract_strided_slice %255 {offsets = [7, 0], sizes = [10, 64], strides = [1, 1]} : vector<32x64xf32> to vector<10x64xf32>
    %c2_241 = arith.constant 2 : index
    %c0_242 = arith.constant 0 : index
    %c0_243 = arith.constant 0 : index
    %c0_244 = arith.constant 0 : index
    %257 = vector.load %arg3[%c2_241, %c0_242, %c0_243, %c0_244] : memref<3x9x64x64xf32, #tpu.memory_space<vmem>>, vector<1x1x64x64xf32>
    %258 = vector.shape_cast %257 : vector<1x1x64x64xf32> to vector<64x64xf32>
    %cst_245 = arith.constant dense<0.000000e+00> : vector<10x64xf32>
    %259 = tpu.matmul %256, %258, %cst_245 {dimension_numbers = #tpu.dot_dimension_numbers<[1], [0], [0], [1], [0, 0, 1, 1], [], []>} : vector<10x64xf32>, vector<64x64xf32>, vector<10x64xf32> -> vector<10x64xf32>
    %260 = arith.addf %254, %259 : vector<10x64xf32>
    %261 = vector.extract_strided_slice %255 {offsets = [8, 0], sizes = [10, 64], strides = [1, 1]} : vector<32x64xf32> to vector<10x64xf32>
    %c2_246 = arith.constant 2 : index
    %c1_247 = arith.constant 1 : index
    %c0_248 = arith.constant 0 : index
    %c0_249 = arith.constant 0 : index
    %262 = vector.load %arg3[%c2_246, %c1_247, %c0_248, %c0_249] : memref<3x9x64x64xf32, #tpu.memory_space<vmem>>, vector<1x1x64x64xf32>
    %263 = vector.shape_cast %262 : vector<1x1x64x64xf32> to vector<64x64xf32>
    %cst_250 = arith.constant dense<0.000000e+00> : vector<10x64xf32>
    %264 = tpu.matmul %261, %263, %cst_250 {dimension_numbers = #tpu.dot_dimension_numbers<[1], [0], [0], [1], [0, 0, 1, 1], [], []>} : vector<10x64xf32>, vector<64x64xf32>, vector<10x64xf32> -> vector<10x64xf32>
    %265 = arith.addf %260, %264 : vector<10x64xf32>
    %266 = vector.extract_strided_slice %255 {offsets = [9, 0], sizes = [10, 64], strides = [1, 1]} : vector<32x64xf32> to vector<10x64xf32>
    %c2_251 = arith.constant 2 : index
    %c2_252 = arith.constant 2 : index
    %c0_253 = arith.constant 0 : index
    %c0_254 = arith.constant 0 : index
    %267 = vector.load %arg3[%c2_251, %c2_252, %c0_253, %c0_254] : memref<3x9x64x64xf32, #tpu.memory_space<vmem>>, vector<1x1x64x64xf32>
    %268 = vector.shape_cast %267 : vector<1x1x64x64xf32> to vector<64x64xf32>
    %cst_255 = arith.constant dense<0.000000e+00> : vector<10x64xf32>
    %269 = tpu.matmul %266, %268, %cst_255 {dimension_numbers = #tpu.dot_dimension_numbers<[1], [0], [0], [1], [0, 0, 1, 1], [], []>} : vector<10x64xf32>, vector<64x64xf32>, vector<10x64xf32> -> vector<10x64xf32>
    %270 = arith.addf %265, %269 : vector<10x64xf32>
    %c8_256 = arith.constant 8 : index
    %c0_257 = arith.constant 0 : index
    %271 = vector.load %arg10[%c8_256, %c0_257] : memref<48x64xf32, #tpu.memory_space<vmem>>, vector<32x64xf32>
    %272 = vector.extract_strided_slice %271 {offsets = [7, 0], sizes = [10, 64], strides = [1, 1]} : vector<32x64xf32> to vector<10x64xf32>
    %c2_258 = arith.constant 2 : index
    %c3_259 = arith.constant 3 : index
    %c0_260 = arith.constant 0 : index
    %c0_261 = arith.constant 0 : index
    %273 = vector.load %arg3[%c2_258, %c3_259, %c0_260, %c0_261] : memref<3x9x64x64xf32, #tpu.memory_space<vmem>>, vector<1x1x64x64xf32>
    %274 = vector.shape_cast %273 : vector<1x1x64x64xf32> to vector<64x64xf32>
    %cst_262 = arith.constant dense<0.000000e+00> : vector<10x64xf32>
    %275 = tpu.matmul %272, %274, %cst_262 {dimension_numbers = #tpu.dot_dimension_numbers<[1], [0], [0], [1], [0, 0, 1, 1], [], []>} : vector<10x64xf32>, vector<64x64xf32>, vector<10x64xf32> -> vector<10x64xf32>
    %276 = arith.addf %270, %275 : vector<10x64xf32>
    %277 = vector.extract_strided_slice %271 {offsets = [8, 0], sizes = [10, 64], strides = [1, 1]} : vector<32x64xf32> to vector<10x64xf32>
    %c2_263 = arith.constant 2 : index
    %c4_264 = arith.constant 4 : index
    %c0_265 = arith.constant 0 : index
    %c0_266 = arith.constant 0 : index
    %278 = vector.load %arg3[%c2_263, %c4_264, %c0_265, %c0_266] : memref<3x9x64x64xf32, #tpu.memory_space<vmem>>, vector<1x1x64x64xf32>
    %279 = vector.shape_cast %278 : vector<1x1x64x64xf32> to vector<64x64xf32>
    %cst_267 = arith.constant dense<0.000000e+00> : vector<10x64xf32>
    %280 = tpu.matmul %277, %279, %cst_267 {dimension_numbers = #tpu.dot_dimension_numbers<[1], [0], [0], [1], [0, 0, 1, 1], [], []>} : vector<10x64xf32>, vector<64x64xf32>, vector<10x64xf32> -> vector<10x64xf32>
    %281 = arith.addf %276, %280 : vector<10x64xf32>
    %282 = vector.extract_strided_slice %271 {offsets = [9, 0], sizes = [10, 64], strides = [1, 1]} : vector<32x64xf32> to vector<10x64xf32>
    %c2_268 = arith.constant 2 : index
    %c5_269 = arith.constant 5 : index
    %c0_270 = arith.constant 0 : index
    %c0_271 = arith.constant 0 : index
    %283 = vector.load %arg3[%c2_268, %c5_269, %c0_270, %c0_271] : memref<3x9x64x64xf32, #tpu.memory_space<vmem>>, vector<1x1x64x64xf32>
    %284 = vector.shape_cast %283 : vector<1x1x64x64xf32> to vector<64x64xf32>
    %cst_272 = arith.constant dense<0.000000e+00> : vector<10x64xf32>
    %285 = tpu.matmul %282, %284, %cst_272 {dimension_numbers = #tpu.dot_dimension_numbers<[1], [0], [0], [1], [0, 0, 1, 1], [], []>} : vector<10x64xf32>, vector<64x64xf32>, vector<10x64xf32> -> vector<10x64xf32>
    %286 = arith.addf %281, %285 : vector<10x64xf32>
    %c16_273 = arith.constant 16 : index
    %c0_274 = arith.constant 0 : index
    %287 = vector.load %arg10[%c16_273, %c0_274] : memref<48x64xf32, #tpu.memory_space<vmem>>, vector<32x64xf32>
    %288 = vector.extract_strided_slice %287 {offsets = [7, 0], sizes = [10, 64], strides = [1, 1]} : vector<32x64xf32> to vector<10x64xf32>
    %c2_275 = arith.constant 2 : index
    %c6_276 = arith.constant 6 : index
    %c0_277 = arith.constant 0 : index
    %c0_278 = arith.constant 0 : index
    %289 = vector.load %arg3[%c2_275, %c6_276, %c0_277, %c0_278] : memref<3x9x64x64xf32, #tpu.memory_space<vmem>>, vector<1x1x64x64xf32>
    %290 = vector.shape_cast %289 : vector<1x1x64x64xf32> to vector<64x64xf32>
    %cst_279 = arith.constant dense<0.000000e+00> : vector<10x64xf32>
    %291 = tpu.matmul %288, %290, %cst_279 {dimension_numbers = #tpu.dot_dimension_numbers<[1], [0], [0], [1], [0, 0, 1, 1], [], []>} : vector<10x64xf32>, vector<64x64xf32>, vector<10x64xf32> -> vector<10x64xf32>
    %292 = arith.addf %286, %291 : vector<10x64xf32>
    %293 = vector.extract_strided_slice %287 {offsets = [8, 0], sizes = [10, 64], strides = [1, 1]} : vector<32x64xf32> to vector<10x64xf32>
    %c2_280 = arith.constant 2 : index
    %c7_281 = arith.constant 7 : index
    %c0_282 = arith.constant 0 : index
    %c0_283 = arith.constant 0 : index
    %294 = vector.load %arg3[%c2_280, %c7_281, %c0_282, %c0_283] : memref<3x9x64x64xf32, #tpu.memory_space<vmem>>, vector<1x1x64x64xf32>
    %295 = vector.shape_cast %294 : vector<1x1x64x64xf32> to vector<64x64xf32>
    %cst_284 = arith.constant dense<0.000000e+00> : vector<10x64xf32>
    %296 = tpu.matmul %293, %295, %cst_284 {dimension_numbers = #tpu.dot_dimension_numbers<[1], [0], [0], [1], [0, 0, 1, 1], [], []>} : vector<10x64xf32>, vector<64x64xf32>, vector<10x64xf32> -> vector<10x64xf32>
    %297 = arith.addf %292, %296 : vector<10x64xf32>
    %298 = vector.extract_strided_slice %287 {offsets = [9, 0], sizes = [10, 64], strides = [1, 1]} : vector<32x64xf32> to vector<10x64xf32>
    %c2_285 = arith.constant 2 : index
    %c8_286 = arith.constant 8 : index
    %c0_287 = arith.constant 0 : index
    %c0_288 = arith.constant 0 : index
    %299 = vector.load %arg3[%c2_285, %c8_286, %c0_287, %c0_288] : memref<3x9x64x64xf32, #tpu.memory_space<vmem>>, vector<1x1x64x64xf32>
    %300 = vector.shape_cast %299 : vector<1x1x64x64xf32> to vector<64x64xf32>
    %cst_289 = arith.constant dense<0.000000e+00> : vector<10x64xf32>
    %301 = tpu.matmul %298, %300, %cst_289 {dimension_numbers = #tpu.dot_dimension_numbers<[1], [0], [0], [1], [0, 0, 1, 1], [], []>} : vector<10x64xf32>, vector<64x64xf32>, vector<10x64xf32> -> vector<10x64xf32>
    %302 = arith.addf %297, %301 : vector<10x64xf32>
    %303 = vector.broadcast %251 : vector<1x64xf32> to vector<10x64xf32>
    %304 = arith.mulf %302, %303 : vector<10x64xf32>
    %305 = vector.broadcast %253 : vector<1x64xf32> to vector<10x64xf32>
    %306 = arith.addf %304, %305 : vector<10x64xf32>
    %cst_290 = arith.constant 0.000000e+00 : f32
    %307 = vector.broadcast %cst_290 : f32 to vector<10x64xf32>
    %308 = arith.maximumf %306, %307 : vector<10x64xf32>
    %309 = vector.extract_strided_slice %308 {offsets = [0, 0], sizes = [2, 64], strides = [1, 1]} : vector<10x64xf32> to vector<2x64xf32>
    %310 = vector.extract_strided_slice %308 {offsets = [8, 0], sizes = [2, 64], strides = [1, 1]} : vector<10x64xf32> to vector<2x64xf32>
    %311 = arith.maximumf %309, %310 : vector<2x64xf32>
    %312 = vector.extract_strided_slice %311 {offsets = [0, 0], sizes = [1, 64], strides = [1, 1]} : vector<2x64xf32> to vector<1x64xf32>
    %313 = vector.extract_strided_slice %311 {offsets = [1, 0], sizes = [1, 64], strides = [1, 1]} : vector<2x64xf32> to vector<1x64xf32>
    %314 = arith.maximumf %312, %313 : vector<1x64xf32>
    %c0_291 = arith.constant 0 : index
    %c0_292 = arith.constant 0 : index
    %c0_293 = arith.constant 0 : index
    %315 = vector.load %arg6[%c0_291, %c0_292, %c0_293] : memref<1x1x64xf32, #tpu.memory_space<vmem>>, vector<1x1x64xf32>
    %316 = vector.shape_cast %315 : vector<1x1x64xf32> to vector<1x64xf32>
    %317 = vector.shape_cast %314 : vector<1x64xf32> to vector<1x1x64xf32>
    tpu.vector_store %arg6[%c0_291, %c0_292, %c0_293], %317 {strides = array<i32>} : memref<1x1x64xf32, #tpu.memory_space<vmem>>, vector<1x1x64xf32>,
    return
  }
  func.func @transform_0(%arg0: i32) -> (i32, i32, i32) {
    %c0_i32 = arith.constant 0 : i32
    %c0_i32_0 = arith.constant 0 : i32
    %c0_i32_1 = arith.constant 0 : i32
    return %arg0, %c0_i32, %c0_i32_0 : i32, i32, i32
  }
  func.func @transform_1(%arg0: i32) -> (i32, i32) {
    %c0_i32 = arith.constant 0 : i32
    %c0_i32_0 = arith.constant 0 : i32
    %c0_i32_1 = arith.constant 0 : i32
    return %c0_i32, %c0_i32_0 : i32, i32
  }
  func.func @transform_2(%arg0: i32) -> (i32, i32, i32, i32) {
    %c0_i32 = arith.constant 0 : i32
    %c0_i32_0 = arith.constant 0 : i32
    %c0_i32_1 = arith.constant 0 : i32
    %c0_i32_2 = arith.constant 0 : i32
    %c0_i32_3 = arith.constant 0 : i32
    return %c0_i32, %c0_i32_0, %c0_i32_1, %c0_i32_2 : i32, i32, i32, i32
  }
  func.func @transform_3(%arg0: i32) -> (i32, i32, i32) {
    %c0_i32 = arith.constant 0 : i32
    %c0_i32_0 = arith.constant 0 : i32
    %c0_i32_1 = arith.constant 0 : i32
    %c0_i32_2 = arith.constant 0 : i32
    return %c0_i32, %c0_i32_0, %c0_i32_1 : i32, i32, i32
  }
  func.func @transform_4(%arg0: i32) -> (i32, i32, i32) {
    %c0_i32 = arith.constant 0 : i32
    %c0_i32_0 = arith.constant 0 : i32
    %c0_i32_1 = arith.constant 0 : i32
    %c0_i32_2 = arith.constant 0 : i32
    return %c0_i32, %c0_i32_0, %c0_i32_1 : i32, i32, i32
  }
  func.func @transform_5(%arg0: i32) -> (i32, i32, i32) {
    %c0_i32 = arith.constant 0 : i32
    %c0_i32_0 = arith.constant 0 : i32
    %c0_i32_1 = arith.constant 0 : i32
    return %arg0, %c0_i32, %c0_i32_0 : i32, i32, i32
  }
}

</mosaic_0001>

<llo_original>
// kernel: proto_net_embedding.1
$region0: #{proto_net_embedding.1}
  #allocation0 [shape = 'u32[]', space=smem, size = 0x4, offset = 0x4, fixed_abs, tag = 'smem constant byte address 0x4 - core index']
  #allocation1 [shape = 'u32[144,128]{1,0:T(1,128)}', space=vmem, size = 0x12000, scoped, tag = 'internal scratch']
  #allocation2 [shape = 'f32[16,64]{1,0:T(8,128)}', space=vmem, size = 0x2000, scoped, tag = 'scratch operand']
  #allocation3 [shape = 'f32[168,64]{1,0:T(8,128)}', space=vmem, size = 0x15000, scoped, tag = 'scratch operand']
  #allocation4 [shape = 'f32[64,64]{1,0:T(8,128)}', space=vmem, size = 0x8000, scoped, tag = 'scratch operand']
  #allocation5 [shape = 'f32[48,64]{1,0:T(8,128)}', space=vmem, size = 0x6000, scoped, tag = 'scratch operand']
  %s0 = inlined_call_operand.vmem [shape: f32[2,256,32], index: 0, kind: input, shape index: {}]
  %s1 = inlined_call_operand.vmem [shape: f32[32,64], index: 1, kind: input, shape index: {}]
  %s2 = inlined_call_operand.vmem [shape: f32[3,9,64,64], index: 2, kind: input, shape index: {}]
  %s3 = inlined_call_operand.vmem [shape: f32[4,1,64], index: 3, kind: input, shape index: {}]
  %s4 = inlined_call_operand.vmem [shape: f32[4,1,64], index: 4, kind: input, shape index: {}]
  %s5 = inlined_call_operand.hbm [shape: f32[2,1,64], index: 5, kind: output, shape index: {}]
  %s6 = sld [smem:[#allocation0]]
  $region53: #{proto_net_embedding.1} parent=0
    _
  %s8 = ssub.s32 1, %s6
  %s9 = scalar_select 0, %s8, %s6
  $region1: #{proto_net_embedding.1} parent=0
    #allocation6 [shape = 'u8[1024]{0}', space=vmem, size = 0x400, scoped, tag = 'output window, operand 0']
    #allocation7 [shape = 's32[2]{0}', space=sflag, size = 0x8, scoped, tag = 'scoped memory for proto_net_embedding.1']
    %10 = vsyncpa [#allocation7], 0
    %s11 = scalar_lea.sflag [#allocation7], 1
    %12 = vsyncpa %s11, 0
    loop: start=0, step=1, limit=4
    $region2: #{proto_net_embedding.1} parent=1 // loop_pre_header
      _
    $region3: #{proto_net_embedding.1} parent=1 // loop_header
      %s14 = sphi 0, %s18
      %p15 = scmp.ge.s32.totalorder %s14, 4
      %s24 = sphi 0, %s26
      %s27 = sphi 0, %s24
      %s28 = sphi 0, %s27
      %s44 = sphi 0, %s28
      %s48 = sphi 0, %s48
      %s50 = sphi 0, %s48
      %s51 = sphi 0, %s50
      %s65 = sphi 0, %s51
      %s69 = sphi 0, %s69
      %s71 = sphi 0, %s69
      %s72 = sphi 0, %s71
      %s86 = sphi 0, %s72
      %s90 = sphi 0, %s90
      %s92 = sphi 0, %s90
      %s93 = sphi 0, %s92
      %s107 = sphi 0, %s93
      %s111 = sphi 0, %s111
      %s113 = sphi 0, %s111
      %s114 = sphi 0, %s113
      %s128 = sphi 0, %s114
      %s134 = sphi 0, %s136
      %s137 = sphi 0, %s134
      %s138 = sphi 0, %s137
      %s154 = sphi 0, %s138
    $region4: #{proto_net_embedding.1} parent=1 // loop_header_branch
      %17 = sbr.rel (%p15) target = $region8
    $region5: #{proto_net_embedding.1} parent=1 // loop_body
      %s19 = ssub.s32 %s14, 1
      %s20 = ssub.s32 %s14, 2
      %s21 = sadd.s32 %s14, 1
      %s22 = ssub.s32 %s14, %s21
      %p23 = scmp.eq.s32.totalorder %s22, 0
      %s25 = sadd.s32 %s24, 1
      %s26 = scalar_select %p23, %s24, %s25
      %p29 = pneg %p23
      %p30 = scmp.eq.s32.totalorder %s14, 1
      %p31 = por %p29, %p30
      %p32 = scmp.ne.s32.totalorder %s24, %s27
      %p33 = scmp.eq.s32.totalorder %s14, 0
      %p34 = por %p32, %p33
      %p35 = scmp.ne.s32.totalorder %s24, %s27
      %p36 = scmp.eq.s32.totalorder %s19, 1
      %p37 = por %p35, %p36
      %p38 = scmp.ne.s32.totalorder %s27, %s28
      %p39 = scmp.eq.s32.totalorder %s19, 0
      %p40 = por %p38, %p39
      %p41 = scmp.ne.s32.totalorder %s27, %s28
      %p42 = scmp.eq.s32.totalorder %s20, 1
      %p43 = por %p41, %p42
      %p45 = scmp.ne.s32.totalorder %s28, %s44
      %p46 = scmp.eq.s32.totalorder %s20, 0
      %p47 = por %p45, %p46
      %s49 = sadd.s32 %s48, 1
      %p52 = scmp.eq.s32.totalorder %s14, 1
      %p53 = scmp.ne.s32.totalorder %s48, %s50
      %p54 = scmp.eq.s32.totalorder %s14, 0
      %p55 = por %p53, %p54
      %p56 = scmp.ne.s32.totalorder %s48, %s50
      %p57 = scmp.eq.s32.totalorder %s19, 1
      %p58 = por %p56, %p57
      %p59 = scmp.ne.s32.totalorder %s50, %s51
      %p60 = scmp.eq.s32.totalorder %s19, 0
      %p61 = por %p59, %p60
      %p62 = scmp.ne.s32.totalorder %s50, %s51
      %p63 = scmp.eq.s32.totalorder %s20, 1
      %p64 = por %p62, %p63
      %p66 = scmp.ne.s32.totalorder %s51, %s65
      %p67 = scmp.eq.s32.totalorder %s20, 0
      %p68 = por %p66, %p67
      %s70 = sadd.s32 %s69, 1
      %p73 = scmp.eq.s32.totalorder %s14, 1
      %p74 = scmp.ne.s32.totalorder %s69, %s71
      %p75 = scmp.eq.s32.totalorder %s14, 0
      %p76 = por %p74, %p75
      %p77 = scmp.ne.s32.totalorder %s69, %s71
      %p78 = scmp.eq.s32.totalorder %s19, 1
      %p79 = por %p77, %p78
      %p80 = scmp.ne.s32.totalorder %s71, %s72
      %p81 = scmp.eq.s32.totalorder %s19, 0
      %p82 = por %p80, %p81
      %p83 = scmp.ne.s32.totalorder %s71, %s72
      %p84 = scmp.eq.s32.totalorder %s20, 1
      %p85 = por %p83, %p84
      %p87 = scmp.ne.s32.totalorder %s72, %s86
      %p88 = scmp.eq.s32.totalorder %s20, 0
      %p89 = por %p87, %p88
      %s91 = sadd.s32 %s90, 1
      %p94 = scmp.eq.s32.totalorder %s14, 1
      %p95 = scmp.ne.s32.totalorder %s90, %s92
      %p96 = scmp.eq.s32.totalorder %s14, 0
      %p97 = por %p95, %p96
      %p98 = scmp.ne.s32.totalorder %s90, %s92
      %p99 = scmp.eq.s32.totalorder %s19, 1
      %p100 = por %p98, %p99
      %p101 = scmp.ne.s32.totalorder %s92, %s93
      %p102 = scmp.eq.s32.totalorder %s19, 0
      %p103 = por %p101, %p102
      %p104 = scmp.ne.s32.totalorder %s92, %s93
      %p105 = scmp.eq.s32.totalorder %s20, 1
      %p106 = por %p104, %p105
      %p108 = scmp.ne.s32.totalorder %s93, %s107
      %p109 = scmp.eq.s32.totalorder %s20, 0
      %p110 = por %p108, %p109
      %s112 = sadd.s32 %s111, 1
      %p115 = scmp.eq.s32.totalorder %s14, 1
      %p116 = scmp.ne.s32.totalorder %s111, %s113
      %p117 = scmp.eq.s32.totalorder %s14, 0
      %p118 = por %p116, %p117
      %p119 = scmp.ne.s32.totalorder %s111, %s113
      %p120 = scmp.eq.s32.totalorder %s19, 1
      %p121 = por %p119, %p120
      %p122 = scmp.ne.s32.totalorder %s113, %s114
      %p123 = scmp.eq.s32.totalorder %s19, 0
      %p124 = por %p122, %p123
      %p125 = scmp.ne.s32.totalorder %s113, %s114
      %p126 = scmp.eq.s32.totalorder %s20, 1
      %p127 = por %p125, %p126
      %p129 = scmp.ne.s32.totalorder %s114, %s128
      %p130 = scmp.eq.s32.totalorder %s20, 0
      %p131 = por %p129, %p130
      %s132 = ssub.s32 %s14, %s21
      %p133 = scmp.eq.s32.totalorder %s132, 0
      %s135 = sadd.s32 %s134, 1
      %s136 = scalar_select %p133, %s134, %s135
      %p139 = pneg %p133
      %p140 = scmp.eq.s32.totalorder %s14, 1
      %p141 = por %p139, %p140
      %p142 = scmp.ne.s32.totalorder %s134, %s137
      %p143 = scmp.eq.s32.totalorder %s14, 0
      %p144 = por %p142, %p143
      %p145 = scmp.ne.s32.totalorder %s134, %s137
      %p146 = scmp.eq.s32.totalorder %s19, 1
      %p147 = por %p145, %p146
      %p148 = scmp.ne.s32.totalorder %s137, %s138
      %p149 = scmp.eq.s32.totalorder %s19, 0
      %p150 = por %p148, %p149
      %p151 = scmp.ne.s32.totalorder %s137, %s138
      %p152 = scmp.eq.s32.totalorder %s20, 1
      %p153 = por %p151, %p152
      %p155 = scmp.ne.s32.totalorder %s138, %s154
      %p156 = scmp.eq.s32.totalorder %s20, 0
      %p157 = por %p155, %p156
      %p158 = scmp.le.s32.totalorder 1, %s14
      %p159 = scmp.lt.s32.totalorder %s14, 3
      %p160 = pnand %p158, %p159
      %p161 = pneg %p160
      // Predicated region
      $region9: #{proto_net_embedding.1} parent=5 // pred_check
        _
      $region10: #{proto_net_embedding.1} parent=5 // pred_check_branch
        %163 = sbr.rel (%p160) target = $region12
      $region11: #{proto_net_embedding.1} parent=5 // pred_region
        %s164 = ssub.s32 %s14, 1
        // Predicated region
        $region13: #{proto_net_embedding.1} parent=11 // pred_check
          %p165 = pneg %p61
        $region14: #{proto_net_embedding.1} parent=11 // pred_check_branch
          %167 = sbr.rel (%p165) target = $region16
        $region15: #{proto_net_embedding.1} parent=11 // pred_region
          _
        $region16: #{proto_net_embedding.1} parent=11 // pred_fallthru
          _
        // Predicated region
        $region17: #{proto_net_embedding.1} parent=11 // pred_check
          %p168 = pneg %p82
        $region18: #{proto_net_embedding.1} parent=11 // pred_check_branch
          %170 = sbr.rel (%p168) target = $region20
        $region19: #{proto_net_embedding.1} parent=11 // pred_region
          _
        $region20: #{proto_net_embedding.1} parent=11 // pred_fallthru
          _
        // Predicated region
        $region21: #{proto_net_embedding.1} parent=11 // pred_check
          %p171 = pneg %p103
        $region22: #{proto_net_embedding.1} parent=11 // pred_check_branch
          %173 = sbr.rel (%p171) target = $region24
        $region23: #{proto_net_embedding.1} parent=11 // pred_region
          _
        $region24: #{proto_net_embedding.1} parent=11 // pred_fallthru
          _
        // Predicated region
        $region25: #{proto_net_embedding.1} parent=11 // pred_check
          %p174 = pneg %p124
        $region26: #{proto_net_embedding.1} parent=11 // pred_check_branch
          %176 = sbr.rel (%p174) target = $region28
        $region27: #{proto_net_embedding.1} parent=11 // pred_region
          _
        $region28: #{proto_net_embedding.1} parent=11 // pred_fallthru
          _
      $region12: #{proto_net_embedding.1} parent=5 // pred_fallthru
        _
      %p177 = scmp.lt.s32.totalorder %s14, 2
      // Predicated region
      $region29: #{proto_net_embedding.1} parent=5 // pred_check
        %p178 = pneg %p177
      $region30: #{proto_net_embedding.1} parent=5 // pred_check_branch
        %180 = sbr.rel (%p178) target = $region32
      $region31: #{proto_net_embedding.1} parent=5 // pred_region
        // Predicated region
        $region33: #{proto_net_embedding.1} parent=31 // pred_check
          %p181 = pneg %p34
        $region34: #{proto_net_embedding.1} parent=31 // pred_check_branch
          %183 = sbr.rel (%p181) target = $region36
        $region35: #{proto_net_embedding.1} parent=31 // pred_region
          %p184 = scmp.lt.s32.totalorder %s14, 1
          %s185 = scalar_select %p184, %s14, 1
          %s186 = smul.addr %s185, 32
          %s187 = smul.addr %s186, 8
          %s188 = scalar_lea.vmem %s0, %s187
        $region36: #{proto_net_embedding.1} parent=31 // pred_fallthru
          _
      $region32: #{proto_net_embedding.1} parent=5 // pred_fallthru
        _
      %p189 = scmp.le.s32.totalorder 1, %s14
      %p190 = scmp.lt.s32.totalorder %s14, 3
      %p191 = pnand %p189, %p190
      %p192 = pneg %p191
      // Predicated region
      $region37: #{proto_net_embedding.1} parent=5 // pred_check
        _
      $region38: #{proto_net_embedding.1} parent=5 // pred_check_branch
        %194 = sbr.rel (%p191) target = $region40
      $region39: #{proto_net_embedding.1} parent=5 // pred_region
        %s195 = ssub.s32 %s14, 1
        %p196 = scmp.lt.s32.totalorder %s19, 1
        %s197 = scalar_select %p196, %s19, 1
        %s198 = smul.addr %s197, 32
        %s199 = smul.addr %s198, 8
        %s200 = scalar_lea.vmem %s0, %s199
        %p201 = pneg %p40
        %p202 = pneg %p37
        %p203 = pneg %p61
        %p204 = pneg %p58
        %p205 = pneg %p82
        %p206 = pneg %p79
        %p207 = pneg %p103
        %p208 = pneg %p100
        %p209 = pneg %p124
        %p210 = pneg %p121
        %p211 = pneg %p150
        %p212 = pneg %p147
        %s213 = sand.u32 %s137, 1
        %s214 = scalar_lea.sflag [#allocation7], %s213
        %s215 = sand.u32 %s137, 1
        %s216 = scalar_lea.vmem [#allocation6], %s215
        %p217 = scmp.lt.s32.totalorder %s19, 1
        %s218 = scalar_select %p217, %s19, 1
        %s219 = smul.addr %s218, 32
        %s220 = smul.addr %s219, 8
        %s221 = scalar_lea.vmem %s0, %s220
        %vm222 = vcmask 523264
        %223 = vst.msk [vmem:[#allocation3] sm:$0xff] %vm222, 0.0
        %224 = vst.msk [vmem:[#allocation3 + $0x8] sm:$0xff] %vm222, 0.0
        %225 = vst.msk [vmem:[#allocation3 + $0x10] sm:$0xff] %vm222, 0.0
        %226 = vst.msk [vmem:[#allocation3 + $0x18] sm:$0xff] %vm222, 0.0
        %227 = vst.msk [vmem:[#allocation3 + $0x20] sm:$0xff] %vm222, 0.0
        %228 = vst.msk [vmem:[#allocation3 + $0x28] sm:$0xff] %vm222, 0.0
        %229 = vst.msk [vmem:[#allocation3 + $0x30] sm:$0xff] %vm222, 0.0
        %230 = vst.msk [vmem:[#allocation3 + $0x38] sm:$0xff] %vm222, 0.0
        %231 = vst.msk [vmem:[#allocation3 + $0x40] sm:$0xff] %vm222, 0.0
        %232 = vst.msk [vmem:[#allocation3 + $0x48] sm:$0xff] %vm222, 0.0
        %233 = vst.msk [vmem:[#allocation3 + $0x50] sm:$0xff] %vm222, 0.0
        %234 = vst.msk [vmem:[#allocation3 + $0x58] sm:$0xff] %vm222, 0.0
        %235 = vst.msk [vmem:[#allocation3 + $0x60] sm:$0xff] %vm222, 0.0
        %236 = vst.msk [vmem:[#allocation3 + $0x68] sm:$0xff] %vm222, 0.0
        %237 = vst.msk [vmem:[#allocation3 + $0x70] sm:$0xff] %vm222, 0.0
        %238 = vst.msk [vmem:[#allocation3 + $0x78] sm:$0xff] %vm222, 0.0
        %239 = vst.msk [vmem:[#allocation3 + $0x80] sm:$0xff] %vm222, 0.0
        %240 = vst.msk [vmem:[#allocation3 + $0x88] sm:$0xff] %vm222, 0.0
        %241 = vst.msk [vmem:[#allocation3 + $0x90] sm:$0xff] %vm222, 0.0
        %242 = vst.msk [vmem:[#allocation3 + $0x98] sm:$0xff] %vm222, 0.0
        %243 = vst.msk [vmem:[#allocation3 + $0xa0] sm:$0xff] %vm222, 0.0
        %244 = vst.msk [vmem:[#allocation4] sm:$0xff] %vm222, 0.0
        %245 = vst.msk [vmem:[#allocation4 + $0x8] sm:$0xff] %vm222, 0.0
        %246 = vst.msk [vmem:[#allocation4 + $0x10] sm:$0xff] %vm222, 0.0
        %247 = vst.msk [vmem:[#allocation4 + $0x18] sm:$0xff] %vm222, 0.0
        %248 = vst.msk [vmem:[#allocation4 + $0x20] sm:$0xff] %vm222, 0.0
        %249 = vst.msk [vmem:[#allocation4 + $0x28] sm:$0xff] %vm222, 0.0
        %250 = vst.msk [vmem:[#allocation4 + $0x30] sm:$0xff] %vm222, 0.0
        %251 = vst.msk [vmem:[#allocation4 + $0x38] sm:$0xff] %vm222, 0.0
        %252 = vst.msk [vmem:[#allocation5] sm:$0xff] %vm222, 0.0
        %253 = vst.msk [vmem:[#allocation5 + $0x8] sm:$0xff] %vm222, 0.0
        %254 = vst.msk [vmem:[#allocation5 + $0x10] sm:$0xff] %vm222, 0.0
        %255 = vst.msk [vmem:[#allocation5 + $0x18] sm:$0xff] %vm222, 0.0
        %256 = vst.msk [vmem:[#allocation5 + $0x20] sm:$0xff] %vm222, 0.0
        %257 = vst.msk [vmem:[#allocation5 + $0x28] sm:$0xff] %vm222, 0.0
        %v258 = vld [vmem:[%s221] sm:$0xff]
        %v259 = vld [vmem:[%s221 + $0x8] sm:$0xff]
        %v260 = vld [vmem:[%s221 + $0x10] sm:$0xff]
        %v261 = vld [vmem:[%s221 + $0x18] sm:$0xff]
        %v262 = vld [vmem:[%s221 + $0x20] sm:$0xff]
        %v263 = vld [vmem:[%s221 + $0x28] sm:$0xff]
        %v264 = vld [vmem:[%s221 + $0x30] sm:$0xff]
        %v265 = vld [vmem:[%s221 + $0x38] sm:$0xff]
        %v266 = vld [vmem:[%s221 + $0x40] sm:$0xff]
        %v267 = vld [vmem:[%s221 + $0x48] sm:$0xff]
        %v268 = vld [vmem:[%s221 + $0x50] sm:$0xff]
        %v269 = vld [vmem:[%s221 + $0x58] sm:$0xff]
        %v270 = vld [vmem:[%s221 + $0x60] sm:$0xff]
        %v271 = vld [vmem:[%s221 + $0x68] sm:$0xff]
        %v272 = vld [vmem:[%s221 + $0x70] sm:$0xff]
        %v273 = vld [vmem:[%s221 + $0x78] sm:$0xff]
        %v274 = vld [vmem:[%s221 + $0x80] sm:$0xff]
        %v275 = vld [vmem:[%s221 + $0x88] sm:$0xff]
        %v276 = vld [vmem:[%s221 + $0x90] sm:$0xff]
        %v277 = vld [vmem:[%s221 + $0x98] sm:$0xff]
        %v278 = vld [vmem:[%s221 + $0xa0] sm:$0xff]
        %v279 = vld [vmem:[%s221 + $0xa8] sm:$0xff]
        %v280 = vld [vmem:[%s221 + $0xb0] sm:$0xff]
        %v281 = vld [vmem:[%s221 + $0xb8] sm:$0xff]
        %v282 = vld [vmem:[%s221 + $0xc0] sm:$0xff]
        %v283 = vld [vmem:[%s221 + $0xc8] sm:$0xff]
        %v284 = vld [vmem:[%s221 + $0xd0] sm:$0xff]
        %v285 = vld [vmem:[%s221 + $0xd8] sm:$0xff]
        %v286 = vld [vmem:[%s221 + $0xe0] sm:$0xff]
        %v287 = vld [vmem:[%s221 + $0xe8] sm:$0xff]
        %v288 = vld [vmem:[%s221 + $0xf0] sm:$0xff]
        %v289 = vld [vmem:[%s221 + $0xf8] sm:$0xff]
        %v290 = vld [vmem:[%s1] sm:$0xff]
        %v291 = vld [vmem:[%s1 + $0x8] sm:$0xff]
        %v292 = vld [vmem:[%s1 + $0x10] sm:$0xff]
        %v293 = vld [vmem:[%s1 + $0x18] sm:$0xff]
        %vm294 = vcmask 261120
        %v296 = vsel %vm294, %v258, 0
        %v299 = vsel %vm294, %v259, 0
        %v302 = vsel %vm294, %v260, 0
        %v305 = vsel %vm294, %v261, 0
        %v308 = vsel %vm294, %v262, 0
        %v311 = vsel %vm294, %v263, 0
        %v314 = vsel %vm294, %v264, 0
        %v317 = vsel %vm294, %v265, 0
        %v320 = vsel %vm294, %v266, 0
        %v323 = vsel %vm294, %v267, 0
        %v326 = vsel %vm294, %v268, 0
        %v329 = vsel %vm294, %v269, 0
        %v332 = vsel %vm294, %v270, 0
        %v335 = vsel %vm294, %v271, 0
        %v338 = vsel %vm294, %v272, 0
        %v341 = vsel %vm294, %v273, 0
        %v344 = vsel %vm294, %v274, 0
        %v347 = vsel %vm294, %v275, 0
        %v350 = vsel %vm294, %v276, 0
        %v353 = vsel %vm294, %v277, 0
        %v356 = vsel %vm294, %v278, 0
        %v359 = vsel %vm294, %v279, 0
        %v362 = vsel %vm294, %v280, 0
        %v365 = vsel %vm294, %v281, 0
        %v368 = vsel %vm294, %v282, 0
        %v371 = vsel %vm294, %v283, 0
        %v374 = vsel %vm294, %v284, 0
        %v377 = vsel %vm294, %v285, 0
        %v380 = vsel %vm294, %v286, 0
        %v383 = vsel %vm294, %v287, 0
        %v386 = vsel %vm294, %v288, 0
        %v389 = vsel %vm294, %v289, 0
        %391 = vmatprep.subr.mxu0 0.0
        %392 = vmatpush1.msra.mxu0 %v290
        %393 = vmatprep.subr.mxu0 0.0
        %394 = vmatpush1.msra.mxu0 %v291
        %395 = vmatprep.subr.mxu0 0.0
        %396 = vmatpush1.msra.mxu0 %v292
        %397 = vmatprep.subr.mxu0 0.0
        %398 = vmatpush1.msra.mxu0 %v293
        %399 = vmatprep.subr.mxu0 0.0
        %400 = vmatpush1.msra.mxu0 0.0
        %401 = vmatprep.subr.mxu0 0.0
        %402 = vmatpush1.msra.mxu0 0.0
        %403 = vmatprep.subr.mxu0 0.0
        %404 = vmatpush1.msra.mxu0 0.0
        %405 = vmatprep.subr.mxu0 0.0
        %406 = vmatpush1.msra.mxu0 0.0
        %407 = vmatprep.subr.mxu0 0.0
        %408 = vmatpush1.msra.mxu0 0.0
        %409 = vmatprep.subr.mxu0 0.0
        %410 = vmatpush1.msra.mxu0 0.0
        %411 = vmatprep.subr.mxu0 0.0
        %412 = vmatpush1.msra.mxu0 0.0
        %413 = vmatprep.subr.mxu0 0.0
        %414 = vmatpush1.msra.mxu0 0.0
        %415 = vmatprep.subr.mxu0 0.0
        %416 = vmatpush1.msra.mxu0 0.0
        %417 = vmatprep.subr.mxu0 0.0
        %418 = vmatpush1.msra.mxu0 0.0
        %419 = vmatprep.subr.mxu0 0.0
        %420 = vmatpush1.msra.mxu0 0.0
        %421 = vmatprep.subr.mxu0 0.0
        %422 = vmatpush1.msra.mxu0 0.0
        %423 = vmatprep.subr.mxu0 0.0
        %424 = vmatpush1.msra.mxu0 0.0
        %425 = vmatprep.subr.mxu0 0.0
        %426 = vmatpush1.msra.mxu0 0.0
        %427 = vmatprep.subr.mxu0 0.0
        %428 = vmatpush1.msra.mxu0 0.0
        %429 = vmatprep.subr.mxu0 0.0
        %430 = vmatpush1.msra.mxu0 0.0
        %431 = vmatprep.subr.mxu0 0.0
        %432 = vmatpush1.msra.mxu0 0.0
        %433 = vmatprep.subr.mxu0 0.0
        %434 = vmatpush1.msra.mxu0 0.0
        %435 = vmatprep.subr.mxu0 0.0
        %436 = vmatpush1.msra.mxu0 0.0
        %437 = vmatprep.subr.mxu0 0.0
        %438 = vmatpush1.msra.mxu0 0.0
        %439 = vmatprep.subr.mxu0 0.0
        %440 = vmatpush1.msra.mxu0 0.0
        %441 = vmatprep.subr.mxu0 0.0
        %442 = vmatpush1.msra.mxu0 0.0
        %443 = vmatprep.subr.mxu0 0.0
        %444 = vmatpush1.msra.mxu0 0.0
        %445 = vmatprep.subr.mxu0 0.0
        %446 = vmatpush1.msra.mxu0 0.0
        %447 = vmatprep.subr.mxu0 0.0
        %448 = vmatpush1.msra.mxu0 0.0
        %449 = vmatprep.subr.mxu0 0.0
        %450 = vmatpush1.msra.mxu0 0.0
        %451 = vmatprep.subr.mxu0 0.0
        %452 = vmatpush1.msra.mxu0 0.0
        %453 = vmatprep.subr.mxu0 0.0
        %454 = vmatpush1.msra.mxu0 0.0
        %455 = vmatprep.mubr.f32.mxu0 0.0
        %456 = vmatmul.mubr.f32.gmra.mrb[0].mxu0 %v296
        %v457 = vpop.f32.mrb[0].mxu0
        %v458 = vadd.f32 0.0, %v457
        %v459 = vpop.f32.mrb[0].mxu0
        %460 = vmatprep.mubr.f32.mxu0 0.0
        %461 = vmatmul.mubr.f32.gmra.mrb[0].mxu0 %v299
        %v462 = vpop.f32.mrb[0].mxu0
        %v463 = vadd.f32 0.0, %v462
        %v464 = vpop.f32.mrb[0].mxu0
        %465 = vmatprep.mubr.f32.mxu0 0.0
        %466 = vmatmul.mubr.f32.gmra.mrb[0].mxu0 %v302
        %v467 = vpop.f32.mrb[0].mxu0
        %v468 = vadd.f32 0.0, %v467
        %v469 = vpop.f32.mrb[0].mxu0
        %470 = vmatprep.mubr.f32.mxu0 0.0
        %471 = vmatmul.mubr.f32.gmra.mrb[0].mxu0 %v305
        %v472 = vpop.f32.mrb[0].mxu0
        %v473 = vadd.f32 0.0, %v472
        %v474 = vpop.f32.mrb[0].mxu0
        %475 = vmatprep.mubr.f32.mxu0 0.0
        %476 = vmatmul.mubr.f32.gmra.mrb[0].mxu0 %v308
        %v477 = vpop.f32.mrb[0].mxu0
        %v478 = vadd.f32 0.0, %v477
        %v479 = vpop.f32.mrb[0].mxu0
        %480 = vmatprep.mubr.f32.mxu0 0.0
        %481 = vmatmul.mubr.f32.gmra.mrb[0].mxu0 %v311
        %v482 = vpop.f32.mrb[0].mxu0
        %v483 = vadd.f32 0.0, %v482
        %v484 = vpop.f32.mrb[0].mxu0
        %485 = vmatprep.mubr.f32.mxu0 0.0
        %486 = vmatmul.mubr.f32.gmra.mrb[0].mxu0 %v314
        %v487 = vpop.f32.mrb[0].mxu0
        %v488 = vadd.f32 0.0, %v487
        %v489 = vpop.f32.mrb[0].mxu0
        %490 = vmatprep.mubr.f32.mxu0 0.0
        %491 = vmatmul.mubr.f32.gmra.mrb[0].mxu0 %v317
        %v492 = vpop.f32.mrb[0].mxu0
        %v493 = vadd.f32 0.0, %v492
        %v494 = vpop.f32.mrb[0].mxu0
        %495 = vmatprep.mubr.f32.mxu0 0.0
        %496 = vmatmul.mubr.f32.gmra.mrb[0].mxu0 %v320
        %v497 = vpop.f32.mrb[0].mxu0
        %v498 = vadd.f32 0.0, %v497
        %v499 = vpop.f32.mrb[0].mxu0
        %500 = vmatprep.mubr.f32.mxu0 0.0
        %501 = vmatmul.mubr.f32.gmra.mrb[0].mxu0 %v323
        %v502 = vpop.f32.mrb[0].mxu0
        %v503 = vadd.f32 0.0, %v502
        %v504 = vpop.f32.mrb[0].mxu0
        %505 = vmatprep.mubr.f32.mxu0 0.0
        %506 = vmatmul.mubr.f32.gmra.mrb[0].mxu0 %v326
        %v507 = vpop.f32.mrb[0].mxu0
        %v508 = vadd.f32 0.0, %v507
        %v509 = vpop.f32.mrb[0].mxu0
        %510 = vmatprep.mubr.f32.mxu0 0.0
        %511 = vmatmul.mubr.f32.gmra.mrb[0].mxu0 %v329
        %v512 = vpop.f32.mrb[0].mxu0
        %v513 = vadd.f32 0.0, %v512
        %v514 = vpop.f32.mrb[0].mxu0
        %515 = vmatprep.mubr.f32.mxu0 0.0
        %516 = vmatmul.mubr.f32.gmra.mrb[0].mxu0 %v332
        %v517 = vpop.f32.mrb[0].mxu0
        %v518 = vadd.f32 0.0, %v517
        %v519 = vpop.f32.mrb[0].mxu0
        %520 = vmatprep.mubr.f32.mxu0 0.0
        %521 = vmatmul.mubr.f32.gmra.mrb[0].mxu0 %v335
        %v522 = vpop.f32.mrb[0].mxu0
        %v523 = vadd.f32 0.0, %v522
        %v524 = vpop.f32.mrb[0].mxu0
        %525 = vmatprep.mubr.f32.mxu0 0.0
        %526 = vmatmul.mubr.f32.gmra.mrb[0].mxu0 %v338
        %v527 = vpop.f32.mrb[0].mxu0
        %v528 = vadd.f32 0.0, %v527
        %v529 = vpop.f32.mrb[0].mxu0
        %530 = vmatprep.mubr.f32.mxu0 0.0
        %531 = vmatmul.mubr.f32.gmra.mrb[0].mxu0 %v341
        %v532 = vpop.f32.mrb[0].mxu0
        %v533 = vadd.f32 0.0, %v532
        %v534 = vpop.f32.mrb[0].mxu0
        %535 = vmatprep.mubr.f32.mxu0 0.0
        %536 = vmatmul.mubr.f32.gmra.mrb[0].mxu0 %v344
        %v537 = vpop.f32.mrb[0].mxu0
        %v538 = vadd.f32 0.0, %v537
        %v539 = vpop.f32.mrb[0].mxu0
        %540 = vmatprep.mubr.f32.mxu0 0.0
        %541 = vmatmul.mubr.f32.gmra.mrb[0].mxu0 %v347
        %v542 = vpop.f32.mrb[0].mxu0
        %v543 = vadd.f32 0.0, %v542
        %v544 = vpop.f32.mrb[0].mxu0
        %545 = vmatprep.mubr.f32.mxu0 0.0
        %546 = vmatmul.mubr.f32.gmra.mrb[0].mxu0 %v350
        %v547 = vpop.f32.mrb[0].mxu0
        %v548 = vadd.f32 0.0, %v547
        %v549 = vpop.f32.mrb[0].mxu0
        %550 = vmatprep.mubr.f32.mxu0 0.0
        %551 = vmatmul.mubr.f32.gmra.mrb[0].mxu0 %v353
        %v552 = vpop.f32.mrb[0].mxu0
        %v553 = vadd.f32 0.0, %v552
        %v554 = vpop.f32.mrb[0].mxu0
        %555 = vmatprep.mubr.f32.mxu0 0.0
        %556 = vmatmul.mubr.f32.gmra.mrb[0].mxu0 %v356
        %v557 = vpop.f32.mrb[0].mxu0
        %v558 = vadd.f32 0.0, %v557
        %v559 = vpop.f32.mrb[0].mxu0
        %560 = vmatprep.mubr.f32.mxu0 0.0
        %561 = vmatmul.mubr.f32.gmra.mrb[0].mxu0 %v359
        %v562 = vpop.f32.mrb[0].mxu0
        %v563 = vadd.f32 0.0, %v562
        %v564 = vpop.f32.mrb[0].mxu0
        %565 = vmatprep.mubr.f32.mxu0 0.0
        %566 = vmatmul.mubr.f32.gmra.mrb[0].mxu0 %v362
        %v567 = vpop.f32.mrb[0].mxu0
        %v568 = vadd.f32 0.0, %v567
        %v569 = vpop.f32.mrb[0].mxu0
        %570 = vmatprep.mubr.f32.mxu0 0.0
        %571 = vmatmul.mubr.f32.gmra.mrb[0].mxu0 %v365
        %v572 = vpop.f32.mrb[0].mxu0
        %v573 = vadd.f32 0.0, %v572
        %v574 = vpop.f32.mrb[0].mxu0
        %575 = vmatprep.mubr.f32.mxu0 0.0
        %576 = vmatmul.mubr.f32.gmra.mrb[0].mxu0 %v368
        %v577 = vpop.f32.mrb[0].mxu0
        %v578 = vadd.f32 0.0, %v577
        %v579 = vpop.f32.mrb[0].mxu0
        %580 = vmatprep.mubr.f32.mxu0 0.0
        %581 = vmatmul.mubr.f32.gmra.mrb[0].mxu0 %v371
        %v582 = vpop.f32.mrb[0].mxu0
        %v583 = vadd.f32 0.0, %v582
        %v584 = vpop.f32.mrb[0].mxu0
        %585 = vmatprep.mubr.f32.mxu0 0.0
        %586 = vmatmul.mubr.f32.gmra.mrb[0].mxu0 %v374
        %v587 = vpop.f32.mrb[0].mxu0
        %v588 = vadd.f32 0.0, %v587
        %v589 = vpop.f32.mrb[0].mxu0
        %590 = vmatprep.mubr.f32.mxu0 0.0
        %591 = vmatmul.mubr.f32.gmra.mrb[0].mxu0 %v377
        %v592 = vpop.f32.mrb[0].mxu0
        %v593 = vadd.f32 0.0, %v592
        %v594 = vpop.f32.mrb[0].mxu0
        %595 = vmatprep.mubr.f32.mxu0 0.0
        %596 = vmatmul.mubr.f32.gmra.mrb[0].mxu0 %v380
        %v597 = vpop.f32.mrb[0].mxu0
        %v598 = vadd.f32 0.0, %v597
        %v599 = vpop.f32.mrb[0].mxu0
        %600 = vmatprep.mubr.f32.mxu0 0.0
        %601 = vmatmul.mubr.f32.gmra.mrb[0].mxu0 %v383
        %v602 = vpop.f32.mrb[0].mxu0
        %v603 = vadd.f32 0.0, %v602
        %v604 = vpop.f32.mrb[0].mxu0
        %605 = vmatprep.mubr.f32.mxu0 0.0
        %606 = vmatmul.mubr.f32.gmra.mrb[0].mxu0 %v386
        %v607 = vpop.f32.mrb[0].mxu0
        %v608 = vadd.f32 0.0, %v607
        %v609 = vpop.f32.mrb[0].mxu0
        %610 = vmatprep.mubr.f32.mxu0 0.0
        %611 = vmatmul.mubr.f32.gmra.mrb[0].mxu0 %v389
        %v612 = vpop.f32.mrb[0].mxu0
        %v613 = vadd.f32 0.0, %v612
        %v614 = vpop.f32.mrb[0].mxu0
        %615 = vdwg.mxu0
        %v616 = vld [vmem:[%s3] sm:$0x1]
        %v617 = vld [vmem:[%s4] sm:$0x1]
        %v619 = vlaneseq
        %v620 = vshrl.u32 %v619, 7
        %v621 = vsub.s32 0, %v620
        %v622 = vrot.slane %v616, %v621
        %v624 = vmul.f32 %v458, %v622
        %v625 = vmul.f32 %v463, %v622
        %v626 = vmul.f32 %v468, %v622
        %v627 = vmul.f32 %v473, %v622
        %v628 = vmul.f32 %v478, %v622
        %v629 = vmul.f32 %v483, %v622
        %v630 = vmul.f32 %v488, %v622
        %v631 = vmul.f32 %v493, %v622
        %v632 = vmul.f32 %v498, %v622
        %v633 = vmul.f32 %v503, %v622
        %v634 = vmul.f32 %v508, %v622
        %v635 = vmul.f32 %v513, %v622
        %v636 = vmul.f32 %v518, %v622
        %v637 = vmul.f32 %v523, %v622
        %v638 = vmul.f32 %v528, %v622
        %v639 = vmul.f32 %v533, %v622
        %v640 = vmul.f32 %v538, %v622
        %v641 = vmul.f32 %v543, %v622
        %v642 = vmul.f32 %v548, %v622
        %v643 = vmul.f32 %v553, %v622
        %v644 = vmul.f32 %v558, %v622
        %v645 = vmul.f32 %v563, %v622
        %v646 = vmul.f32 %v568, %v622
        %v647 = vmul.f32 %v573, %v622
        %v648 = vmul.f32 %v578, %v622
        %v649 = vmul.f32 %v583, %v622
        %v650 = vmul.f32 %v588, %v622
        %v651 = vmul.f32 %v593, %v622
        %v652 = vmul.f32 %v598, %v622
        %v653 = vmul.f32 %v603, %v622
        %v654 = vmul.f32 %v608, %v622
        %v655 = vmul.f32 %v613, %v622
        %v657 = vlaneseq
        %v658 = vshrl.u32 %v657, 7
        %v659 = vsub.s32 0, %v658
        %v660 = vrot.slane %v617, %v659
        %v662 = vadd.f32 %v624, %v660
        %v663 = vadd.f32 %v625, %v660
        %v664 = vadd.f32 %v626, %v660
        %v665 = vadd.f32 %v627, %v660
        %v666 = vadd.f32 %v628, %v660
        %v667 = vadd.f32 %v629, %v660
        %v668 = vadd.f32 %v630, %v660
        %v669 = vadd.f32 %v631, %v660
        %v670 = vadd.f32 %v632, %v660
        %v671 = vadd.f32 %v633, %v660
        %v672 = vadd.f32 %v634, %v660
        %v673 = vadd.f32 %v635, %v660
        %v674 = vadd.f32 %v636, %v660
        %v675 = vadd.f32 %v637, %v660
        %v676 = vadd.f32 %v638, %v660
        %v677 = vadd.f32 %v639, %v660
        %v678 = vadd.f32 %v640, %v660
        %v679 = vadd.f32 %v641, %v660
        %v680 = vadd.f32 %v642, %v660
        %v681 = vadd.f32 %v643, %v660
        %v682 = vadd.f32 %v644, %v660
        %v683 = vadd.f32 %v645, %v660
        %v684 = vadd.f32 %v646, %v660
        %v685 = vadd.f32 %v647, %v660
        %v686 = vadd.f32 %v648, %v660
        %v687 = vadd.f32 %v649, %v660
        %v688 = vadd.f32 %v650, %v660
        %v689 = vadd.f32 %v651, %v660
        %v690 = vadd.f32 %v652, %v660
        %v691 = vadd.f32 %v653, %v660
        %v692 = vadd.f32 %v654, %v660
        %v693 = vadd.f32 %v655, %v660
        %v694 = vmax.f32 %v662, 0.0
        %v695 = vmax.f32 %v663, 0.0
        %v696 = vmax.f32 %v664, 0.0
        %v697 = vmax.f32 %v665, 0.0
        %v698 = vmax.f32 %v666, 0.0
        %v699 = vmax.f32 %v667, 0.0
        %v700 = vmax.f32 %v668, 0.0
        %v701 = vmax.f32 %v669, 0.0
        %v702 = vmax.f32 %v670, 0.0
        %v703 = vmax.f32 %v671, 0.0
        %v704 = vmax.f32 %v672, 0.0
        %v705 = vmax.f32 %v673, 0.0
        %v706 = vmax.f32 %v674, 0.0
        %v707 = vmax.f32 %v675, 0.0
        %v708 = vmax.f32 %v676, 0.0
        %v709 = vmax.f32 %v677, 0.0
        %v710 = vmax.f32 %v678, 0.0
        %v711 = vmax.f32 %v679, 0.0
        %v712 = vmax.f32 %v680, 0.0
        %v713 = vmax.f32 %v681, 0.0
        %v714 = vmax.f32 %v682, 0.0
        %v715 = vmax.f32 %v683, 0.0
        %v716 = vmax.f32 %v684, 0.0
        %v717 = vmax.f32 %v685, 0.0
        %v718 = vmax.f32 %v686, 0.0
        %v719 = vmax.f32 %v687, 0.0
        %v720 = vmax.f32 %v688, 0.0
        %v721 = vmax.f32 %v689, 0.0
        %v722 = vmax.f32 %v690, 0.0
        %v723 = vmax.f32 %v691, 0.0
        %v724 = vmax.f32 %v692, 0.0
        %v725 = vmax.f32 %v693, 0.0
        %v726 = vmax.f32 %v694, %v696
        %v727 = vmax.f32 %v695, %v697
        %728 = vst.msk [vmem:[#allocation2] sm:$0xff] %vm222, %v726
        %729 = vst.msk [vmem:[#allocation2 + $0x8] sm:$0xff] %vm222, %v727
        %v730 = vld [vmem:[#allocation2] ss:$2 sm:$0xff]
        %s731 = scalar_lea.vmem [#allocation2], 1
        %v732 = vld [vmem:[%s731] ss:$2 sm:$0xff]
        %v733 = vmax.f32 %v730, %v732
        %734 = vst.msk [vmem:[#allocation3 + $0x18] sm:$0xff] %vm222, %v733
        %v735 = vmax.f32 %v698, %v700
        %v736 = vmax.f32 %v699, %v701
        %737 = vst.msk [vmem:[#allocation2] sm:$0xff] %vm222, %v735
        %738 = vst.msk [vmem:[#allocation2 + $0x8] sm:$0xff] %vm222, %v736
        %v739 = vld [vmem:[#allocation2] ss:$2 sm:$0xff]
        %v740 = vld [vmem:[%s731] ss:$2 sm:$0xff]
        %v741 = vmax.f32 %v739, %v740
        %742 = vst.msk [vmem:[#allocation3 + $0x28] sm:$0xff] %vm222, %v741
        %v743 = vmax.f32 %v702, %v704
        %v744 = vmax.f32 %v703, %v705
        %745 = vst.msk [vmem:[#allocation2] sm:$0xff] %vm222, %v743
        %746 = vst.msk [vmem:[#allocation2 + $0x8] sm:$0xff] %vm222, %v744
        %v747 = vld [vmem:[#allocation2] ss:$2 sm:$0xff]
        %v748 = vld [vmem:[%s731] ss:$2 sm:$0xff]
        %v749 = vmax.f32 %v747, %v748
        %750 = vst.msk [vmem:[#allocation3 + $0x38] sm:$0xff] %vm222, %v749
        %v751 = vmax.f32 %v706, %v708
        %v752 = vmax.f32 %v707, %v709
        %753 = vst.msk [vmem:[#allocation2] sm:$0xff] %vm222, %v751
        %754 = vst.msk [vmem:[#allocation2 + $0x8] sm:$0xff] %vm222, %v752
        %v755 = vld [vmem:[#allocation2] ss:$2 sm:$0xff]
        %v756 = vld [vmem:[%s731] ss:$2 sm:$0xff]
        %v757 = vmax.f32 %v755, %v756
        %758 = vst.msk [vmem:[#allocation3 + $0x48] sm:$0xff] %vm222, %v757
        %v759 = vmax.f32 %v710, %v712
        %v760 = vmax.f32 %v711, %v713
        %761 = vst.msk [vmem:[#allocation2] sm:$0xff] %vm222, %v759
        %762 = vst.msk [vmem:[#allocation2 + $0x8] sm:$0xff] %vm222, %v760
        %v763 = vld [vmem:[#allocation2] ss:$2 sm:$0xff]
        %v764 = vld [vmem:[%s731] ss:$2 sm:$0xff]
        %v765 = vmax.f32 %v763, %v764
        %766 = vst.msk [vmem:[#allocation3 + $0x58] sm:$0xff] %vm222, %v765
        %v767 = vmax.f32 %v714, %v716
        %v768 = vmax.f32 %v715, %v717
        %769 = vst.msk [vmem:[#allocation2] sm:$0xff] %vm222, %v767
        %770 = vst.msk [vmem:[#allocation2 + $0x8] sm:$0xff] %vm222, %v768
        %v771 = vld [vmem:[#allocation2] ss:$2 sm:$0xff]
        %v772 = vld [vmem:[%s731] ss:$2 sm:$0xff]
        %v773 = vmax.f32 %v771, %v772
        %774 = vst.msk [vmem:[#allocation3 + $0x68] sm:$0xff] %vm222, %v773
        %v775 = vmax.f32 %v718, %v720
        %v776 = vmax.f32 %v719, %v721
        %777 = vst.msk [vmem:[#allocation2] sm:$0xff] %vm222, %v775
        %778 = vst.msk [vmem:[#allocation2 + $0x8] sm:$0xff] %vm222, %v776
        %v779 = vld [vmem:[#allocation2] ss:$2 sm:$0xff]
        %v780 = vld [vmem:[%s731] ss:$2 sm:$0xff]
        %v781 = vmax.f32 %v779, %v780
        %782 = vst.msk [vmem:[#allocation3 + $0x78] sm:$0xff] %vm222, %v781
        %v783 = vmax.f32 %v722, %v724
        %v784 = vmax.f32 %v723, %v725
        %785 = vst.msk [vmem:[#allocation2] sm:$0xff] %vm222, %v783
        %786 = vst.msk [vmem:[#allocation2 + $0x8] sm:$0xff] %vm222, %v784
        %v787 = vld [vmem:[#allocation2] ss:$2 sm:$0xff]
        %v788 = vld [vmem:[%s731] ss:$2 sm:$0xff]
        %v789 = vmax.f32 %v787, %v788
        %790 = vst.msk [vmem:[#allocation3 + $0x88] sm:$0xff] %vm222, %v789
        %s791 = scalar_lea.vmem %s3, 1
        %v792 = vld [vmem:[%s791] sm:$0x1]
        %s793 = scalar_lea.vmem %s4, 1
        %v794 = vld [vmem:[%s793] sm:$0x1]
        %v795 = vld [vmem:[#allocation3] sm:$0xff]
        %v796 = vld [vmem:[#allocation3 + $0x8] sm:$0xff]
        %v797 = vld [vmem:[#allocation3 + $0x10] sm:$0xff]
        %v798 = vld [vmem:[#allocation3 + $0x18] sm:$0xff]
        %v799 = vld [vmem:[#allocation3 + $0x20] sm:$0xff]
        %v800 = vld [vmem:[#allocation3 + $0x28] sm:$0xff]
        %v801 = vld [vmem:[#allocation3 + $0x30] sm:$0xff]
        %v802 = vld [vmem:[#allocation3 + $0x38] sm:$0xff]
        %v803 = vld [vmem:[#allocation3 + $0x40] sm:$0xff]
        %v804 = vld [vmem:[#allocation3 + $0x48] sm:$0xff]
        %v805 = vld [vmem:[#allocation3 + $0x50] sm:$0xff]
        %v806 = vld [vmem:[#allocation3 + $0x58] sm:$0xff]
        %v807 = vld [vmem:[#allocation3 + $0x60] sm:$0xff]
        %v808 = vld [vmem:[#allocation3 + $0x68] sm:$0xff]
        %v809 = vld [vmem:[#allocation3 + $0x70] sm:$0xff]
        %v810 = vld [vmem:[#allocation3 + $0x78] sm:$0xff]
        %v811 = vld [vmem:[#allocation3 + $0x80] sm:$0xff]
        %v812 = vld [vmem:[%s2] sm:$0xff]
        %v813 = vld [vmem:[%s2 + $0x8] sm:$0xff]
        %v814 = vld [vmem:[%s2 + $0x10] sm:$0xff]
        %v815 = vld [vmem:[%s2 + $0x18] sm:$0xff]
        %v816 = vld [vmem:[%s2 + $0x20] sm:$0xff]
        %v817 = vld [vmem:[%s2 + $0x28] sm:$0xff]
        %v818 = vld [vmem:[%s2 + $0x30] sm:$0xff]
        %v819 = vld [vmem:[%s2 + $0x38] sm:$0xff]
        %s820 = scalar_lea.vmem %s2, 64
        %v821 = vld [vmem:[%s820] sm:$0xff]
        %v822 = vld [vmem:[%s820 + $0x8] sm:$0xff]
        %v823 = vld [vmem:[%s820 + $0x10] sm:$0xff]
        %v824 = vld [vmem:[%s820 + $0x18] sm:$0xff]
        %v825 = vld [vmem:[%s820 + $0x20] sm:$0xff]
        %v826 = vld [vmem:[%s820 + $0x28] sm:$0xff]
        %v827 = vld [vmem:[%s820 + $0x30] sm:$0xff]
        %v828 = vld [vmem:[%s820 + $0x38] sm:$0xff]
        %v830 = vsel %vm222, %v796, 0
        %v833 = vsel %vm222, %v797, 0
        %v836 = vsel %vm222, %v798, 0
        %v839 = vsel %vm222, %v799, 0
        %v842 = vsel %vm222, %v800, 0
        %v845 = vsel %vm222, %v801, 0
        %v848 = vsel %vm222, %v802, 0
        %v851 = vsel %vm222, %v803, 0
        %v854 = vsel %vm222, %v804, 0
        %v857 = vsel %vm222, %v805, 0
        %v860 = vsel %vm222, %v806, 0
        %v863 = vsel %vm222, %v807, 0
        %v866 = vsel %vm222, %v808, 0
        %v869 = vsel %vm222, %v809, 0
        %v872 = vsel %vm222, %v810, 0
        %874 = vmatprep.subr.mxu0 0.0
        %875 = vmatpush1.msra.mxu0 %v821
        %876 = vmatprep.subr.mxu0 0.0
        %877 = vmatpush1.msra.mxu0 %v822
        %878 = vmatprep.subr.mxu0 0.0
        %879 = vmatpush1.msra.mxu0 %v823
        %880 = vmatprep.subr.mxu0 0.0
        %881 = vmatpush1.msra.mxu0 %v824
        %882 = vmatprep.subr.mxu0 0.0
        %883 = vmatpush1.msra.mxu0 %v825
        %884 = vmatprep.subr.mxu0 0.0
        %885 = vmatpush1.msra.mxu0 %v826
        %886 = vmatprep.subr.mxu0 0.0
        %887 = vmatpush1.msra.mxu0 %v827
        %888 = vmatprep.subr.mxu0 0.0
        %889 = vmatpush1.msra.mxu0 %v828
        %890 = vmatprep.subr.mxu0 0.0
        %891 = vmatpush1.msra.mxu0 0.0
        %892 = vmatprep.subr.mxu0 0.0
        %893 = vmatpush1.msra.mxu0 0.0
        %894 = vmatprep.subr.mxu0 0.0
        %895 = vmatpush1.msra.mxu0 0.0
        %896 = vmatprep.subr.mxu0 0.0
        %897 = vmatpush1.msra.mxu0 0.0
        %898 = vmatprep.subr.mxu0 0.0
        %899 = vmatpush1.msra.mxu0 0.0
        %900 = vmatprep.subr.mxu0 0.0
        %901 = vmatpush1.msra.mxu0 0.0
        %902 = vmatprep.subr.mxu0 0.0
        %903 = vmatpush1.msra.mxu0 0.0
        %904 = vmatprep.subr.mxu0 0.0
        %905 = vmatpush1.msra.mxu0 0.0
        %906 = vmatprep.subr.mxu0 0.0
        %907 = vmatpush1.msra.mxu0 0.0
        %908 = vmatprep.subr.mxu0 0.0
        %909 = vmatpush1.msra.mxu0 0.0
        %910 = vmatprep.subr.mxu0 0.0
        %911 = vmatpush1.msra.mxu0 0.0
        %912 = vmatprep.subr.mxu0 0.0
        %913 = vmatpush1.msra.mxu0 0.0
        %914 = vmatprep.subr.mxu0 0.0
        %915 = vmatpush1.msra.mxu0 0.0
        %916 = vmatprep.subr.mxu0 0.0
        %917 = vmatpush1.msra.mxu0 0.0
        %918 = vmatprep.subr.mxu0 0.0
        %919 = vmatpush1.msra.mxu0 0.0
        %920 = vmatprep.subr.mxu0 0.0
        %921 = vmatpush1.msra.mxu0 0.0
        %922 = vmatprep.subr.mxu0 0.0
        %923 = vmatpush1.msra.mxu0 0.0
        %924 = vmatprep.subr.mxu0 0.0
        %925 = vmatpush1.msra.mxu0 0.0
        %926 = vmatprep.subr.mxu0 0.0
        %927 = vmatpush1.msra.mxu0 0.0
        %928 = vmatprep.subr.mxu0 0.0
        %929 = vmatpush1.msra.mxu0 0.0
        %930 = vmatprep.subr.mxu0 0.0
        %931 = vmatpush1.msra.mxu0 0.0
        %932 = vmatprep.subr.mxu0 0.0
        %933 = vmatpush1.msra.mxu0 0.0
        %934 = vmatprep.subr.mxu0 0.0
        %935 = vmatpush1.msra.mxu0 0.0
        %936 = vmatprep.subr.mxu0 0.0
        %937 = vmatpush1.msra.mxu0 0.0
        %938 = vmatprep.mubr.f32.mxu0 0.0
        %939 = vmatmul.mubr.f32.gmra.mrb[0].mxu0 %v830
        %v940 = vpop.f32.mrb[0].mxu0
        %v941 = vadd.f32 0.0, %v940
        %v942 = vpop.f32.mrb[0].mxu0
        %943 = vmatprep.mubr.f32.mxu0 0.0
        %944 = vmatmul.mubr.f32.gmra.mrb[0].mxu0 %v833
        %v945 = vpop.f32.mrb[0].mxu0
        %v946 = vpop.f32.mrb[0].mxu0
        %947 = vmatprep.mubr.f32.mxu0 0.0
        %948 = vmatmul.mubr.f32.gmra.mrb[0].mxu0 %v836
        %v949 = vpop.f32.mrb[0].mxu0
        %v950 = vadd.f32 0.0, %v949
        %v951 = vpop.f32.mrb[0].mxu0
        %952 = vmatprep.mubr.f32.mxu0 0.0
        %953 = vmatmul.mubr.f32.gmra.mrb[0].mxu0 %v839
        %v954 = vpop.f32.mrb[0].mxu0
        %v955 = vpop.f32.mrb[0].mxu0
        %956 = vmatprep.mubr.f32.mxu0 0.0
        %957 = vmatmul.mubr.f32.gmra.mrb[0].mxu0 %v842
        %v958 = vpop.f32.mrb[0].mxu0
        %v959 = vadd.f32 0.0, %v958
        %v960 = vpop.f32.mrb[0].mxu0
        %961 = vmatprep.mubr.f32.mxu0 0.0
        %962 = vmatmul.mubr.f32.gmra.mrb[0].mxu0 %v845
        %v963 = vpop.f32.mrb[0].mxu0
        %v964 = vpop.f32.mrb[0].mxu0
        %965 = vmatprep.mubr.f32.mxu0 0.0
        %966 = vmatmul.mubr.f32.gmra.mrb[0].mxu0 %v848
        %v967 = vpop.f32.mrb[0].mxu0
        %v968 = vadd.f32 0.0, %v967
        %v969 = vpop.f32.mrb[0].mxu0
        %970 = vmatprep.mubr.f32.mxu0 0.0
        %971 = vmatmul.mubr.f32.gmra.mrb[0].mxu0 %v851
        %v972 = vpop.f32.mrb[0].mxu0
        %v973 = vpop.f32.mrb[0].mxu0
        %974 = vmatprep.mubr.f32.mxu0 0.0
        %975 = vmatmul.mubr.f32.gmra.mrb[0].mxu0 %v854
        %v976 = vpop.f32.mrb[0].mxu0
        %v977 = vadd.f32 0.0, %v976
        %v978 = vpop.f32.mrb[0].mxu0
        %979 = vmatprep.mubr.f32.mxu0 0.0
        %980 = vmatmul.mubr.f32.gmra.mrb[0].mxu0 %v857
        %v981 = vpop.f32.mrb[0].mxu0
        %v982 = vpop.f32.mrb[0].mxu0
        %983 = vmatprep.mubr.f32.mxu0 0.0
        %984 = vmatmul.mubr.f32.gmra.mrb[0].mxu0 %v860
        %v985 = vpop.f32.mrb[0].mxu0
        %v986 = vadd.f32 0.0, %v985
        %v987 = vpop.f32.mrb[0].mxu0
        %988 = vmatprep.mubr.f32.mxu0 0.0
        %989 = vmatmul.mubr.f32.gmra.mrb[0].mxu0 %v863
        %v990 = vpop.f32.mrb[0].mxu0
        %v991 = vpop.f32.mrb[0].mxu0
        %992 = vmatprep.mubr.f32.mxu0 0.0
        %993 = vmatmul.mubr.f32.gmra.mrb[0].mxu0 %v866
        %v994 = vpop.f32.mrb[0].mxu0
        %v995 = vadd.f32 0.0, %v994
        %v996 = vpop.f32.mrb[0].mxu0
        %997 = vmatprep.mubr.f32.mxu0 0.0
        %998 = vmatmul.mubr.f32.gmra.mrb[0].mxu0 %v869
        %v999 = vpop.f32.mrb[0].mxu0
        %v1000 = vpop.f32.mrb[0].mxu0
        %1001 = vmatprep.mubr.f32.mxu0 0.0
        %1002 = vmatmul.mubr.f32.gmra.mrb[0].mxu0 %v872
        %v1003 = vpop.f32.mrb[0].mxu0
        %v1004 = vadd.f32 0.0, %v1003
        %v1005 = vpop.f32.mrb[0].mxu0
        %1006 = vdwg.mxu0
        %vm1008 = vcmask 1040384
        %v1009 = vrot.slane %v795, 7
        %v1010 = vrot.slane %v796, 7
        %v1011 = vsel %vm1008, %v1009, %v1010
        %v1012 = vrot.slane %v797, 7
        %v1013 = vsel %vm1008, %v1010, %v1012
        %v1014 = vrot.slane %v798, 7
        %v1015 = vsel %vm1008, %v1012, %v1014
        %v1016 = vrot.slane %v799, 7
        %v1017 = vsel %vm1008, %v1014, %v1016
        %v1018 = vrot.slane %v800, 7
        %v1019 = vsel %vm1008, %v1016, %v1018
        %v1020 = vrot.slane %v801, 7
        %v1021 = vsel %vm1008, %v1018, %v1020
        %v1022 = vrot.slane %v802, 7
        %v1023 = vsel %vm1008, %v1020, %v1022
        %v1024 = vrot.slane %v803, 7
        %v1025 = vsel %vm1008, %v1022, %v1024
        %v1026 = vrot.slane %v804, 7
        %v1027 = vsel %vm1008, %v1024, %v1026
        %v1028 = vrot.slane %v805, 7
        %v1029 = vsel %vm1008, %v1026, %v1028
        %v1030 = vrot.slane %v806, 7
        %v1031 = vsel %vm1008, %v1028, %v1030
        %v1032 = vrot.slane %v807, 7
        %v1033 = vsel %vm1008, %v1030, %v1032
        %v1034 = vrot.slane %v808, 7
        %v1035 = vsel %vm1008, %v1032, %v1034
        %v1036 = vrot.slane %v809, 7
        %v1037 = vsel %vm1008, %v1034, %v1036
        %v1038 = vrot.slane %v810, 7
        %v1039 = vsel %vm1008, %v1036, %v1038
        %v1040 = vsel %vm222, %v1011, 0
        %v1042 = vsel %vm222, %v1013, 0
        %v1044 = vsel %vm222, %v1015, 0
        %v1046 = vsel %vm222, %v1017, 0
        %v1048 = vsel %vm222, %v1019, 0
        %v1050 = vsel %vm222, %v1021, 0
        %v1052 = vsel %vm222, %v1023, 0
        %v1054 = vsel %vm222, %v1025, 0
        %v1056 = vsel %vm222, %v1027, 0
        %v1058 = vsel %vm222, %v1029, 0
        %v1060 = vsel %vm222, %v1031, 0
        %v1062 = vsel %vm222, %v1033, 0
        %v1064 = vsel %vm222, %v1035, 0
        %v1066 = vsel %vm222, %v1037, 0
        %v1068 = vsel %vm222, %v1039, 0
        %1070 = vmatprep.subr.mxu0 0.0
        %1071 = vmatpush1.msra.mxu0 %v812
        %1072 = vmatprep.subr.mxu0 0.0
        %1073 = vmatpush1.msra.mxu0 %v813
        %1074 = vmatprep.subr.mxu0 0.0
        %1075 = vmatpush1.msra.mxu0 %v814
        %1076 = vmatprep.subr.mxu0 0.0
        %1077 = vmatpush1.msra.mxu0 %v815
        %1078 = vmatprep.subr.mxu0 0.0
        %1079 = vmatpush1.msra.mxu0 %v816
        %1080 = vmatprep.subr.mxu0 0.0
        %1081 = vmatpush1.msra.mxu0 %v817
        %1082 = vmatprep.subr.mxu0 0.0
        %1083 = vmatpush1.msra.mxu0 %v818
        %1084 = vmatprep.subr.mxu0 0.0
        %1085 = vmatpush1.msra.mxu0 %v819
        %1086 = vmatprep.subr.mxu0 0.0
        %1087 = vmatpush1.msra.mxu0 0.0
        %1088 = vmatprep.subr.mxu0 0.0
        %1089 = vmatpush1.msra.mxu0 0.0
        %1090 = vmatprep.subr.mxu0 0.0
        %1091 = vmatpush1.msra.mxu0 0.0
        %1092 = vmatprep.subr.mxu0 0.0
        %1093 = vmatpush1.msra.mxu0 0.0
        %1094 = vmatprep.subr.mxu0 0.0
        %1095 = vmatpush1.msra.mxu0 0.0
        %1096 = vmatprep.subr.mxu0 0.0
        %1097 = vmatpush1.msra.mxu0 0.0
        %1098 = vmatprep.subr.mxu0 0.0
        %1099 = vmatpush1.msra.mxu0 0.0
        %1100 = vmatprep.subr.mxu0 0.0
        %1101 = vmatpush1.msra.mxu0 0.0
        %1102 = vmatprep.subr.mxu0 0.0
        %1103 = vmatpush1.msra.mxu0 0.0
        %1104 = vmatprep.subr.mxu0 0.0
        %1105 = vmatpush1.msra.mxu0 0.0
        %1106 = vmatprep.subr.mxu0 0.0
        %1107 = vmatpush1.msra.mxu0 0.0
        %1108 = vmatprep.subr.mxu0 0.0
        %1109 = vmatpush1.msra.mxu0 0.0
        %1110 = vmatprep.subr.mxu0 0.0
        %1111 = vmatpush1.msra.mxu0 0.0
        %1112 = vmatprep.subr.mxu0 0.0
        %1113 = vmatpush1.msra.mxu0 0.0
        %1114 = vmatprep.subr.mxu0 0.0
        %1115 = vmatpush1.msra.mxu0 0.0
        %1116 = vmatprep.subr.mxu0 0.0
        %1117 = vmatpush1.msra.mxu0 0.0
        %1118 = vmatprep.subr.mxu0 0.0
        %1119 = vmatpush1.msra.mxu0 0.0
        %1120 = vmatprep.subr.mxu0 0.0
        %1121 = vmatpush1.msra.mxu0 0.0
        %1122 = vmatprep.subr.mxu0 0.0
        %1123 = vmatpush1.msra.mxu0 0.0
        %1124 = vmatprep.subr.mxu0 0.0
        %1125 = vmatpush1.msra.mxu0 0.0
        %1126 = vmatprep.subr.mxu0 0.0
        %1127 = vmatpush1.msra.mxu0 0.0
        %1128 = vmatprep.subr.mxu0 0.0
        %1129 = vmatpush1.msra.mxu0 0.0
        %1130 = vmatprep.subr.mxu0 0.0
        %1131 = vmatpush1.msra.mxu0 0.0
        %1132 = vmatprep.subr.mxu0 0.0
        %1133 = vmatpush1.msra.mxu0 0.0
        %1134 = vmatprep.mubr.f32.mxu0 0.0
        %1135 = vmatmul.mubr.f32.gmra.mrb[0].mxu0 %v1040
        %v1136 = vpop.f32.mrb[0].mxu0
        %v1137 = vadd.f32 %v941, %v1136
        %v1138 = vpop.f32.mrb[0].mxu0
        %1139 = vmatprep.mubr.f32.mxu0 0.0
        %1140 = vmatmul.mubr.f32.gmra.mrb[0].mxu0 %v1042
        %v1141 = vpop.f32.mrb[0].mxu0
        %v1142 = vpop.f32.mrb[0].mxu0
        %1143 = vmatprep.mubr.f32.mxu0 0.0
        %1144 = vmatmul.mubr.f32.gmra.mrb[0].mxu0 %v1044
        %v1145 = vpop.f32.mrb[0].mxu0
        %v1146 = vadd.f32 %v950, %v1145
        %v1147 = vpop.f32.mrb[0].mxu0
        %1148 = vmatprep.mubr.f32.mxu0 0.0
        %1149 = vmatmul.mubr.f32.gmra.mrb[0].mxu0 %v1046
        %v1150 = vpop.f32.mrb[0].mxu0
        %v1151 = vpop.f32.mrb[0].mxu0
        %1152 = vmatprep.mubr.f32.mxu0 0.0
        %1153 = vmatmul.mubr.f32.gmra.mrb[0].mxu0 %v1048
        %v1154 = vpop.f32.mrb[0].mxu0
        %v1155 = vadd.f32 %v959, %v1154
        %v1156 = vpop.f32.mrb[0].mxu0
        %1157 = vmatprep.mubr.f32.mxu0 0.0
        %1158 = vmatmul.mubr.f32.gmra.mrb[0].mxu0 %v1050
        %v1159 = vpop.f32.mrb[0].mxu0
        %v1160 = vpop.f32.mrb[0].mxu0
        %1161 = vmatprep.mubr.f32.mxu0 0.0
        %1162 = vmatmul.mubr.f32.gmra.mrb[0].mxu0 %v1052
        %v1163 = vpop.f32.mrb[0].mxu0
        %v1164 = vadd.f32 %v968, %v1163
        %v1165 = vpop.f32.mrb[0].mxu0
        %1166 = vmatprep.mubr.f32.mxu0 0.0
        %1167 = vmatmul.mubr.f32.gmra.mrb[0].mxu0 %v1054
        %v1168 = vpop.f32.mrb[0].mxu0
        %v1169 = vpop.f32.mrb[0].mxu0
        %1170 = vmatprep.mubr.f32.mxu0 0.0
        %1171 = vmatmul.mubr.f32.gmra.mrb[0].mxu0 %v1056
        %v1172 = vpop.f32.mrb[0].mxu0
        %v1173 = vadd.f32 %v977, %v1172
        %v1174 = vpop.f32.mrb[0].mxu0
        %1175 = vmatprep.mubr.f32.mxu0 0.0
        %1176 = vmatmul.mubr.f32.gmra.mrb[0].mxu0 %v1058
        %v1177 = vpop.f32.mrb[0].mxu0
        %v1178 = vpop.f32.mrb[0].mxu0
        %1179 = vmatprep.mubr.f32.mxu0 0.0
        %1180 = vmatmul.mubr.f32.gmra.mrb[0].mxu0 %v1060
        %v1181 = vpop.f32.mrb[0].mxu0
        %v1182 = vadd.f32 %v986, %v1181
        %v1183 = vpop.f32.mrb[0].mxu0
        %1184 = vmatprep.mubr.f32.mxu0 0.0
        %1185 = vmatmul.mubr.f32.gmra.mrb[0].mxu0 %v1062
        %v1186 = vpop.f32.mrb[0].mxu0
        %v1187 = vpop.f32.mrb[0].mxu0
        %1188 = vmatprep.mubr.f32.mxu0 0.0
        %1189 = vmatmul.mubr.f32.gmra.mrb[0].mxu0 %v1064
        %v1190 = vpop.f32.mrb[0].mxu0
        %v1191 = vadd.f32 %v995, %v1190
        %v1192 = vpop.f32.mrb[0].mxu0
        %1193 = vmatprep.mubr.f32.mxu0 0.0
        %1194 = vmatmul.mubr.f32.gmra.mrb[0].mxu0 %v1066
        %v1195 = vpop.f32.mrb[0].mxu0
        %v1196 = vpop.f32.mrb[0].mxu0
        %1197 = vmatprep.mubr.f32.mxu0 0.0
        %1198 = vmatmul.mubr.f32.gmra.mrb[0].mxu0 %v1068
        %v1199 = vpop.f32.mrb[0].mxu0
        %v1200 = vadd.f32 %v1004, %v1199
        %v1201 = vpop.f32.mrb[0].mxu0
        %1202 = vdwg.mxu0
        %s1203 = scalar_lea.vmem %s2, 128
        %v1204 = vld [vmem:[%s1203] sm:$0xff]
        %v1205 = vld [vmem:[%s1203 + $0x8] sm:$0xff]
        %v1206 = vld [vmem:[%s1203 + $0x10] sm:$0xff]
        %v1207 = vld [vmem:[%s1203 + $0x18] sm:$0xff]
        %v1208 = vld [vmem:[%s1203 + $0x20] sm:$0xff]
        %v1209 = vld [vmem:[%s1203 + $0x28] sm:$0xff]
        %v1210 = vld [vmem:[%s1203 + $0x30] sm:$0xff]
        %v1211 = vld [vmem:[%s1203 + $0x38] sm:$0xff]
        %vm1213 = vcmask 1046528
        %v1214 = vrot.slane %v796, 1
        %v1215 = vrot.slane %v797, 1
        %v1216 = vsel %vm1213, %v1214, %v1215
        %v1217 = vrot.slane %v798, 1
        %v1218 = vsel %vm1213, %v1215, %v1217
        %v1219 = vrot.slane %v799, 1
        %v1220 = vsel %vm1213, %v1217, %v1219
        %v1221 = vrot.slane %v800, 1
        %v1222 = vsel %vm1213, %v1219, %v1221
        %v1223 = vrot.slane %v801, 1
        %v1224 = vsel %vm1213, %v1221, %v1223
        %v1225 = vrot.slane %v802, 1
        %v1226 = vsel %vm1213, %v1223, %v1225
        %v1227 = vrot.slane %v803, 1
        %v1228 = vsel %vm1213, %v1225, %v1227
        %v1229 = vrot.slane %v804, 1
        %v1230 = vsel %vm1213, %v1227, %v1229
        %v1231 = vrot.slane %v805, 1
        %v1232 = vsel %vm1213, %v1229, %v1231
        %v1233 = vrot.slane %v806, 1
        %v1234 = vsel %vm1213, %v1231, %v1233
        %v1235 = vrot.slane %v807, 1
        %v1236 = vsel %vm1213, %v1233, %v1235
        %v1237 = vrot.slane %v808, 1
        %v1238 = vsel %vm1213, %v1235, %v1237
        %v1239 = vrot.slane %v809, 1
        %v1240 = vsel %vm1213, %v1237, %v1239
        %v1241 = vrot.slane %v810, 1
        %v1242 = vsel %vm1213, %v1239, %v1241
        %v1243 = vrot.slane %v811, 1
        %v1244 = vsel %vm1213, %v1241, %v1243
        %v1245 = vsel %vm222, %v1216, 0
        %v1247 = vsel %vm222, %v1218, 0
        %v1249 = vsel %vm222, %v1220, 0
        %v1251 = vsel %vm222, %v1222, 0
        %v1253 = vsel %vm222, %v1224, 0
        %v1255 = vsel %vm222, %v1226, 0
        %v1257 = vsel %vm222, %v1228, 0
        %v1259 = vsel %vm222, %v1230, 0
        %v1261 = vsel %vm222, %v1232, 0
        %v1263 = vsel %vm222, %v1234, 0
        %v1265 = vsel %vm222, %v1236, 0
        %v1267 = vsel %vm222, %v1238, 0
        %v1269 = vsel %vm222, %v1240, 0
        %v1271 = vsel %vm222, %v1242, 0
        %v1273 = vsel %vm222, %v1244, 0
        %1275 = vmatprep.subr.mxu0 0.0
        %1276 = vmatpush1.msra.mxu0 %v1204
        %1277 = vmatprep.subr.mxu0 0.0
        %1278 = vmatpush1.msra.mxu0 %v1205
        %1279 = vmatprep.subr.mxu0 0.0
        %1280 = vmatpush1.msra.mxu0 %v1206
        %1281 = vmatprep.subr.mxu0 0.0
        %1282 = vmatpush1.msra.mxu0 %v1207
        %1283 = vmatprep.subr.mxu0 0.0
        %1284 = vmatpush1.msra.mxu0 %v1208
        %1285 = vmatprep.subr.mxu0 0.0
        %1286 = vmatpush1.msra.mxu0 %v1209
        %1287 = vmatprep.subr.mxu0 0.0
        %1288 = vmatpush1.msra.mxu0 %v1210
        %1289 = vmatprep.subr.mxu0 0.0
        %1290 = vmatpush1.msra.mxu0 %v1211
        %1291 = vmatprep.subr.mxu0 0.0
        %1292 = vmatpush1.msra.mxu0 0.0
        %1293 = vmatprep.subr.mxu0 0.0
        %1294 = vmatpush1.msra.mxu0 0.0
        %1295 = vmatprep.subr.mxu0 0.0
        %1296 = vmatpush1.msra.mxu0 0.0
        %1297 = vmatprep.subr.mxu0 0.0
        %1298 = vmatpush1.msra.mxu0 0.0
        %1299 = vmatprep.subr.mxu0 0.0
        %1300 = vmatpush1.msra.mxu0 0.0
        %1301 = vmatprep.subr.mxu0 0.0
        %1302 = vmatpush1.msra.mxu0 0.0
        %1303 = vmatprep.subr.mxu0 0.0
        %1304 = vmatpush1.msra.mxu0 0.0
        %1305 = vmatprep.subr.mxu0 0.0
        %1306 = vmatpush1.msra.mxu0 0.0
        %1307 = vmatprep.subr.mxu0 0.0
        %1308 = vmatpush1.msra.mxu0 0.0
        %1309 = vmatprep.subr.mxu0 0.0
        %1310 = vmatpush1.msra.mxu0 0.0
        %1311 = vmatprep.subr.mxu0 0.0
        %1312 = vmatpush1.msra.mxu0 0.0
        %1313 = vmatprep.subr.mxu0 0.0
        %1314 = vmatpush1.msra.mxu0 0.0
        %1315 = vmatprep.subr.mxu0 0.0
        %1316 = vmatpush1.msra.mxu0 0.0
        %1317 = vmatprep.subr.mxu0 0.0
        %1318 = vmatpush1.msra.mxu0 0.0
        %1319 = vmatprep.subr.mxu0 0.0
        %1320 = vmatpush1.msra.mxu0 0.0
        %1321 = vmatprep.subr.mxu0 0.0
        %1322 = vmatpush1.msra.mxu0 0.0
        %1323 = vmatprep.subr.mxu0 0.0
        %1324 = vmatpush1.msra.mxu0 0.0
        %1325 = vmatprep.subr.mxu0 0.0
        %1326 = vmatpush1.msra.mxu0 0.0
        %1327 = vmatprep.subr.mxu0 0.0
        %1328 = vmatpush1.msra.mxu0 0.0
        %1329 = vmatprep.subr.mxu0 0.0
        %1330 = vmatpush1.msra.mxu0 0.0
        %1331 = vmatprep.subr.mxu0 0.0
        %1332 = vmatpush1.msra.mxu0 0.0
        %1333 = vmatprep.subr.mxu0 0.0
        %1334 = vmatpush1.msra.mxu0 0.0
        %1335 = vmatprep.subr.mxu0 0.0
        %1336 = vmatpush1.msra.mxu0 0.0
        %1337 = vmatprep.subr.mxu0 0.0
        %1338 = vmatpush1.msra.mxu0 0.0
        %1339 = vmatprep.mubr.f32.mxu0 0.0
        %1340 = vmatmul.mubr.f32.gmra.mrb[0].mxu0 %v1245
        %v1341 = vpop.f32.mrb[0].mxu0
        %v1342 = vadd.f32 0.0, %v1341
        %v1343 = vpop.f32.mrb[0].mxu0
        %1344 = vmatprep.mubr.f32.mxu0 0.0
        %1345 = vmatmul.mubr.f32.gmra.mrb[0].mxu0 %v1247
        %v1346 = vpop.f32.mrb[0].mxu0
        %v1347 = vpop.f32.mrb[0].mxu0
        %1348 = vmatprep.mubr.f32.mxu0 0.0
        %1349 = vmatmul.mubr.f32.gmra.mrb[0].mxu0 %v1249
        %v1350 = vpop.f32.mrb[0].mxu0
        %v1351 = vadd.f32 0.0, %v1350
        %v1352 = vpop.f32.mrb[0].mxu0
        %1353 = vmatprep.mubr.f32.mxu0 0.0
        %1354 = vmatmul.mubr.f32.gmra.mrb[0].mxu0 %v1251
        %v1355 = vpop.f32.mrb[0].mxu0
        %v1356 = vpop.f32.mrb[0].mxu0
        %1357 = vmatprep.mubr.f32.mxu0 0.0
        %1358 = vmatmul.mubr.f32.gmra.mrb[0].mxu0 %v1253
        %v1359 = vpop.f32.mrb[0].mxu0
        %v1360 = vadd.f32 0.0, %v1359
        %v1361 = vpop.f32.mrb[0].mxu0
        %1362 = vmatprep.mubr.f32.mxu0 0.0
        %1363 = vmatmul.mubr.f32.gmra.mrb[0].mxu0 %v1255
        %v1364 = vpop.f32.mrb[0].mxu0
        %v1365 = vpop.f32.mrb[0].mxu0
        %1366 = vmatprep.mubr.f32.mxu0 0.0
        %1367 = vmatmul.mubr.f32.gmra.mrb[0].mxu0 %v1257
        %v1368 = vpop.f32.mrb[0].mxu0
        %v1369 = vadd.f32 0.0, %v1368
        %v1370 = vpop.f32.mrb[0].mxu0
        %1371 = vmatprep.mubr.f32.mxu0 0.0
        %1372 = vmatmul.mubr.f32.gmra.mrb[0].mxu0 %v1259
        %v1373 = vpop.f32.mrb[0].mxu0
        %v1374 = vpop.f32.mrb[0].mxu0
        %1375 = vmatprep.mubr.f32.mxu0 0.0
        %1376 = vmatmul.mubr.f32.gmra.mrb[0].mxu0 %v1261
        %v1377 = vpop.f32.mrb[0].mxu0
        %v1378 = vadd.f32 0.0, %v1377
        %v1379 = vpop.f32.mrb[0].mxu0
        %1380 = vmatprep.mubr.f32.mxu0 0.0
        %1381 = vmatmul.mubr.f32.gmra.mrb[0].mxu0 %v1263
        %v1382 = vpop.f32.mrb[0].mxu0
        %v1383 = vpop.f32.mrb[0].mxu0
        %1384 = vmatprep.mubr.f32.mxu0 0.0
        %1385 = vmatmul.mubr.f32.gmra.mrb[0].mxu0 %v1265
        %v1386 = vpop.f32.mrb[0].mxu0
        %v1387 = vadd.f32 0.0, %v1386
        %v1388 = vpop.f32.mrb[0].mxu0
        %1389 = vmatprep.mubr.f32.mxu0 0.0
        %1390 = vmatmul.mubr.f32.gmra.mrb[0].mxu0 %v1267
        %v1391 = vpop.f32.mrb[0].mxu0
        %v1392 = vpop.f32.mrb[0].mxu0
        %1393 = vmatprep.mubr.f32.mxu0 0.0
        %1394 = vmatmul.mubr.f32.gmra.mrb[0].mxu0 %v1269
        %v1395 = vpop.f32.mrb[0].mxu0
        %v1396 = vadd.f32 0.0, %v1395
        %v1397 = vpop.f32.mrb[0].mxu0
        %1398 = vmatprep.mubr.f32.mxu0 0.0
        %1399 = vmatmul.mubr.f32.gmra.mrb[0].mxu0 %v1271
        %v1400 = vpop.f32.mrb[0].mxu0
        %v1401 = vpop.f32.mrb[0].mxu0
        %1402 = vmatprep.mubr.f32.mxu0 0.0
        %1403 = vmatmul.mubr.f32.gmra.mrb[0].mxu0 %v1273
        %v1404 = vpop.f32.mrb[0].mxu0
        %v1405 = vadd.f32 0.0, %v1404
        %v1406 = vpop.f32.mrb[0].mxu0
        %1407 = vdwg.mxu0
        %v1408 = vadd.f32 %v1137, %v1342
        %v1409 = vadd.f32 %v1146, %v1351
        %v1410 = vadd.f32 %v1155, %v1360
        %v1411 = vadd.f32 %v1164, %v1369
        %v1412 = vadd.f32 %v1173, %v1378
        %v1413 = vadd.f32 %v1182, %v1387
        %v1414 = vadd.f32 %v1191, %v1396
        %v1415 = vadd.f32 %v1200, %v1405
        %v1416 = vld [vmem:[#allocation3 + $0x10] sm:$0xff]
        %v1417 = vld [vmem:[#allocation3 + $0x18] sm:$0xff]
        %v1418 = vld [vmem:[#allocation3 + $0x20] sm:$0xff]
        %v1419 = vld [vmem:[#allocation3 + $0x28] sm:$0xff]
        %v1420 = vld [vmem:[#allocation3 + $0x30] sm:$0xff]
        %v1421 = vld [vmem:[#allocation3 + $0x38] sm:$0xff]
        %v1422 = vld [vmem:[#allocation3 + $0x40] sm:$0xff]
        %v1423 = vld [vmem:[#allocation3 + $0x48] sm:$0xff]
        %v1424 = vld [vmem:[#allocation3 + $0x50] sm:$0xff]
        %v1425 = vld [vmem:[#allocation3 + $0x58] sm:$0xff]
        %v1426 = vld [vmem:[#allocation3 + $0x60] sm:$0xff]
        %v1427 = vld [vmem:[#allocation3 + $0x68] sm:$0xff]
        %v1428 = vld [vmem:[#allocation3 + $0x70] sm:$0xff]
        %v1429 = vld [vmem:[#allocation3 + $0x78] sm:$0xff]
        %v1430 = vld [vmem:[#allocation3 + $0x80] sm:$0xff]
        %v1431 = vld [vmem:[#allocation3 + $0x88] sm:$0xff]
        %v1432 = vld [vmem:[#allocation3 + $0x90] sm:$0xff]
        %s1433 = scalar_lea.vmem %s2, 192
        %v1434 = vld [vmem:[%s1433] sm:$0xff]
        %v1435 = vld [vmem:[%s1433 + $0x8] sm:$0xff]
        %v1436 = vld [vmem:[%s1433 + $0x10] sm:$0xff]
        %v1437 = vld [vmem:[%s1433 + $0x18] sm:$0xff]
        %v1438 = vld [vmem:[%s1433 + $0x20] sm:$0xff]
        %v1439 = vld [vmem:[%s1433 + $0x28] sm:$0xff]
        %v1440 = vld [vmem:[%s1433 + $0x30] sm:$0xff]
        %v1441 = vld [vmem:[%s1433 + $0x38] sm:$0xff]
        %v1458 = vrot.slane %v1416, 7
        %v1459 = vrot.slane %v1417, 7
        %v1460 = vsel %vm1008, %v1458, %v1459
        %v1461 = vrot.slane %v1418, 7
        %v1462 = vsel %vm1008, %v1459, %v1461
        %v1463 = vrot.slane %v1419, 7
        %v1464 = vsel %vm1008, %v1461, %v1463
        %v1465 = vrot.slane %v1420, 7
        %v1466 = vsel %vm1008, %v1463, %v1465
        %v1467 = vrot.slane %v1421, 7
        %v1468 = vsel %vm1008, %v1465, %v1467
        %v1469 = vrot.slane %v1422, 7
        %v1470 = vsel %vm1008, %v1467, %v1469
        %v1471 = vrot.slane %v1423, 7
        %v1472 = vsel %vm1008, %v1469, %v1471
        %v1473 = vrot.slane %v1424, 7
        %v1474 = vsel %vm1008, %v1471, %v1473
        %v1475 = vrot.slane %v1425, 7
        %v1476 = vsel %vm1008, %v1473, %v1475
        %v1477 = vrot.slane %v1426, 7
        %v1478 = vsel %vm1008, %v1475, %v1477
        %v1479 = vrot.slane %v1427, 7
        %v1480 = vsel %vm1008, %v1477, %v1479
        %v1481 = vrot.slane %v1428, 7
        %v1482 = vsel %vm1008, %v1479, %v1481
        %v1483 = vrot.slane %v1429, 7
        %v1484 = vsel %vm1008, %v1481, %v1483
        %v1485 = vrot.slane %v1430, 7
        %v1486 = vsel %vm1008, %v1483, %v1485
        %v1487 = vrot.slane %v1431, 7
        %v1488 = vsel %vm1008, %v1485, %v1487
        %v1489 = vsel %vm222, %v1460, 0
        %v1491 = vsel %vm222, %v1462, 0
        %v1493 = vsel %vm222, %v1464, 0
        %v1495 = vsel %vm222, %v1466, 0
        %v1497 = vsel %vm222, %v1468, 0
        %v1499 = vsel %vm222, %v1470, 0
        %v1501 = vsel %vm222, %v1472, 0
        %v1503 = vsel %vm222, %v1474, 0
        %v1505 = vsel %vm222, %v1476, 0
        %v1507 = vsel %vm222, %v1478, 0
        %v1509 = vsel %vm222, %v1480, 0
        %v1511 = vsel %vm222, %v1482, 0
        %v1513 = vsel %vm222, %v1484, 0
        %v1515 = vsel %vm222, %v1486, 0
        %v1517 = vsel %vm222, %v1488, 0
        %1519 = vmatprep.subr.mxu0 0.0
        %1520 = vmatpush1.msra.mxu0 %v1434
        %1521 = vmatprep.subr.mxu0 0.0
        %1522 = vmatpush1.msra.mxu0 %v1435
        %1523 = vmatprep.subr.mxu0 0.0
        %1524 = vmatpush1.msra.mxu0 %v1436
        %1525 = vmatprep.subr.mxu0 0.0
        %1526 = vmatpush1.msra.mxu0 %v1437
        %1527 = vmatprep.subr.mxu0 0.0
        %1528 = vmatpush1.msra.mxu0 %v1438
        %1529 = vmatprep.subr.mxu0 0.0
        %1530 = vmatpush1.msra.mxu0 %v1439
        %1531 = vmatprep.subr.mxu0 0.0
        %1532 = vmatpush1.msra.mxu0 %v1440
        %1533 = vmatprep.subr.mxu0 0.0
        %1534 = vmatpush1.msra.mxu0 %v1441
        %1535 = vmatprep.subr.mxu0 0.0
        %1536 = vmatpush1.msra.mxu0 0.0
        %1537 = vmatprep.subr.mxu0 0.0
        %1538 = vmatpush1.msra.mxu0 0.0
        %1539 = vmatprep.subr.mxu0 0.0
        %1540 = vmatpush1.msra.mxu0 0.0
        %1541 = vmatprep.subr.mxu0 0.0
        %1542 = vmatpush1.msra.mxu0 0.0
        %1543 = vmatprep.subr.mxu0 0.0
        %1544 = vmatpush1.msra.mxu0 0.0
        %1545 = vmatprep.subr.mxu0 0.0
        %1546 = vmatpush1.msra.mxu0 0.0
        %1547 = vmatprep.subr.mxu0 0.0
        %1548 = vmatpush1.msra.mxu0 0.0
        %1549 = vmatprep.subr.mxu0 0.0
        %1550 = vmatpush1.msra.mxu0 0.0
        %1551 = vmatprep.subr.mxu0 0.0
        %1552 = vmatpush1.msra.mxu0 0.0
        %1553 = vmatprep.subr.mxu0 0.0
        %1554 = vmatpush1.msra.mxu0 0.0
        %1555 = vmatprep.subr.mxu0 0.0
        %1556 = vmatpush1.msra.mxu0 0.0
        %1557 = vmatprep.subr.mxu0 0.0
        %1558 = vmatpush1.msra.mxu0 0.0
        %1559 = vmatprep.subr.mxu0 0.0
        %1560 = vmatpush1.msra.mxu0 0.0
        %1561 = vmatprep.subr.mxu0 0.0
        %1562 = vmatpush1.msra.mxu0 0.0
        %1563 = vmatprep.subr.mxu0 0.0
        %1564 = vmatpush1.msra.mxu0 0.0
        %1565 = vmatprep.subr.mxu0 0.0
        %1566 = vmatpush1.msra.mxu0 0.0
        %1567 = vmatprep.subr.mxu0 0.0
        %1568 = vmatpush1.msra.mxu0 0.0
        %1569 = vmatprep.subr.mxu0 0.0
        %1570 = vmatpush1.msra.mxu0 0.0
        %1571 = vmatprep.subr.mxu0 0.0
        %1572 = vmatpush1.msra.mxu0 0.0
        %1573 = vmatprep.subr.mxu0 0.0
        %1574 = vmatpush1.msra.mxu0 0.0
        %1575 = vmatprep.subr.mxu0 0.0
        %1576 = vmatpush1.msra.mxu0 0.0
        %1577 = vmatprep.subr.mxu0 0.0
        %1578 = vmatpush1.msra.mxu0 0.0
        %1579 = vmatprep.subr.mxu0 0.0
        %1580 = vmatpush1.msra.mxu0 0.0
        %1581 = vmatprep.subr.mxu0 0.0
        %1582 = vmatpush1.msra.mxu0 0.0
        %1583 = vmatprep.mubr.f32.mxu0 0.0
        %1584 = vmatmul.mubr.f32.gmra.mrb[0].mxu0 %v1489
        %v1585 = vpop.f32.mrb[0].mxu0
        %v1586 = vadd.f32 0.0, %v1585
        %v1587 = vpop.f32.mrb[0].mxu0
        %1588 = vmatprep.mubr.f32.mxu0 0.0
        %1589 = vmatmul.mubr.f32.gmra.mrb[0].mxu0 %v1491
        %v1590 = vpop.f32.mrb[0].mxu0
        %v1591 = vpop.f32.mrb[0].mxu0
        %1592 = vmatprep.mubr.f32.mxu0 0.0
        %1593 = vmatmul.mubr.f32.gmra.mrb[0].mxu0 %v1493
        %v1594 = vpop.f32.mrb[0].mxu0
        %v1595 = vadd.f32 0.0, %v1594
        %v1596 = vpop.f32.mrb[0].mxu0
        %1597 = vmatprep.mubr.f32.mxu0 0.0
        %1598 = vmatmul.mubr.f32.gmra.mrb[0].mxu0 %v1495
        %v1599 = vpop.f32.mrb[0].mxu0
        %v1600 = vpop.f32.mrb[0].mxu0
        %1601 = vmatprep.mubr.f32.mxu0 0.0
        %1602 = vmatmul.mubr.f32.gmra.mrb[0].mxu0 %v1497
        %v1603 = vpop.f32.mrb[0].mxu0
        %v1604 = vadd.f32 0.0, %v1603
        %v1605 = vpop.f32.mrb[0].mxu0
        %1606 = vmatprep.mubr.f32.mxu0 0.0
        %1607 = vmatmul.mubr.f32.gmra.mrb[0].mxu0 %v1499
        %v1608 = vpop.f32.mrb[0].mxu0
        %v1609 = vpop.f32.mrb[0].mxu0
        %1610 = vmatprep.mubr.f32.mxu0 0.0
        %1611 = vmatmul.mubr.f32.gmra.mrb[0].mxu0 %v1501
        %v1612 = vpop.f32.mrb[0].mxu0
        %v1613 = vadd.f32 0.0, %v1612
        %v1614 = vpop.f32.mrb[0].mxu0
        %1615 = vmatprep.mubr.f32.mxu0 0.0
        %1616 = vmatmul.mubr.f32.gmra.mrb[0].mxu0 %v1503
        %v1617 = vpop.f32.mrb[0].mxu0
        %v1618 = vpop.f32.mrb[0].mxu0
        %1619 = vmatprep.mubr.f32.mxu0 0.0
        %1620 = vmatmul.mubr.f32.gmra.mrb[0].mxu0 %v1505
        %v1621 = vpop.f32.mrb[0].mxu0
        %v1622 = vadd.f32 0.0, %v1621
        %v1623 = vpop.f32.mrb[0].mxu0
        %1624 = vmatprep.mubr.f32.mxu0 0.0
        %1625 = vmatmul.mubr.f32.gmra.mrb[0].mxu0 %v1507
        %v1626 = vpop.f32.mrb[0].mxu0
        %v1627 = vpop.f32.mrb[0].mxu0
        %1628 = vmatprep.mubr.f32.mxu0 0.0
        %1629 = vmatmul.mubr.f32.gmra.mrb[0].mxu0 %v1509
        %v1630 = vpop.f32.mrb[0].mxu0
        %v1631 = vadd.f32 0.0, %v1630
        %v1632 = vpop.f32.mrb[0].mxu0
        %1633 = vmatprep.mubr.f32.mxu0 0.0
        %1634 = vmatmul.mubr.f32.gmra.mrb[0].mxu0 %v1511
        %v1635 = vpop.f32.mrb[0].mxu0
        %v1636 = vpop.f32.mrb[0].mxu0
        %1637 = vmatprep.mubr.f32.mxu0 0.0
        %1638 = vmatmul.mubr.f32.gmra.mrb[0].mxu0 %v1513
        %v1639 = vpop.f32.mrb[0].mxu0
        %v1640 = vadd.f32 0.0, %v1639
        %v1641 = vpop.f32.mrb[0].mxu0
        %1642 = vmatprep.mubr.f32.mxu0 0.0
        %1643 = vmatmul.mubr.f32.gmra.mrb[0].mxu0 %v1515
        %v1644 = vpop.f32.mrb[0].mxu0
        %v1645 = vpop.f32.mrb[0].mxu0
        %1646 = vmatprep.mubr.f32.mxu0 0.0
        %1647 = vmatmul.mubr.f32.gmra.mrb[0].mxu0 %v1517
        %v1648 = vpop.f32.mrb[0].mxu0
        %v1649 = vadd.f32 0.0, %v1648
        %v1650 = vpop.f32.mrb[0].mxu0
        %1651 = vdwg.mxu0
        %v1652 = vadd.f32 %v1408, %v1586
        %v1653 = vadd.f32 %v1409, %v1595
        %v1654 = vadd.f32 %v1410, %v1604
        %v1655 = vadd.f32 %v1411, %v1613
        %v1656 = vadd.f32 %v1412, %v1622
        %v1657 = vadd.f32 %v1413, %v1631
        %v1658 = vadd.f32 %v1414, %v1640
        %v1659 = vadd.f32 %v1415, %v1649
        %s1660 = scalar_lea.vmem %s2, 256
        %v1661 = vld [vmem:[%s1660] sm:$0xff]
        %v1662 = vld [vmem:[%s1660 + $0x8] sm:$0xff]
        %v1663 = vld [vmem:[%s1660 + $0x10] sm:$0xff]
        %v1664 = vld [vmem:[%s1660 + $0x18] sm:$0xff]
        %v1665 = vld [vmem:[%s1660 + $0x20] sm:$0xff]
        %v1666 = vld [vmem:[%s1660 + $0x28] sm:$0xff]
        %v1667 = vld [vmem:[%s1660 + $0x30] sm:$0xff]
        %v1668 = vld [vmem:[%s1660 + $0x38] sm:$0xff]
        %v1669 = vsel %vm222, %v1417, 0
        %v1671 = vsel %vm222, %v1418, 0
        %v1673 = vsel %vm222, %v1419, 0
        %v1675 = vsel %vm222, %v1420, 0
        %v1677 = vsel %vm222, %v1421, 0
        %v1679 = vsel %vm222, %v1422, 0
        %v1681 = vsel %vm222, %v1423, 0
        %v1683 = vsel %vm222, %v1424, 0
        %v1685 = vsel %vm222, %v1425, 0
        %v1687 = vsel %vm222, %v1426, 0
        %v1689 = vsel %vm222, %v1427, 0
        %v1691 = vsel %vm222, %v1428, 0
        %v1693 = vsel %vm222, %v1429, 0
        %v1695 = vsel %vm222, %v1430, 0
        %v1697 = vsel %vm222, %v1431, 0
        %1699 = vmatprep.subr.mxu0 0.0
        %1700 = vmatpush1.msra.mxu0 %v1661
        %1701 = vmatprep.subr.mxu0 0.0
        %1702 = vmatpush1.msra.mxu0 %v1662
        %1703 = vmatprep.subr.mxu0 0.0
        %1704 = vmatpush1.msra.mxu0 %v1663
        %1705 = vmatprep.subr.mxu0 0.0
        %1706 = vmatpush1.msra.mxu0 %v1664
        %1707 = vmatprep.subr.mxu0 0.0
        %1708 = vmatpush1.msra.mxu0 %v1665
        %1709 = vmatprep.subr.mxu0 0.0
        %1710 = vmatpush1.msra.mxu0 %v1666
        %1711 = vmatprep.subr.mxu0 0.0
        %1712 = vmatpush1.msra.mxu0 %v1667
        %1713 = vmatprep.subr.mxu0 0.0
        %1714 = vmatpush1.msra.mxu0 %v1668
        %1715 = vmatprep.subr.mxu0 0.0
        %1716 = vmatpush1.msra.mxu0 0.0
        %1717 = vmatprep.subr.mxu0 0.0
        %1718 = vmatpush1.msra.mxu0 0.0
        %1719 = vmatprep.subr.mxu0 0.0
        %1720 = vmatpush1.msra.mxu0 0.0
        %1721 = vmatprep.subr.mxu0 0.0
        %1722 = vmatpush1.msra.mxu0 0.0
        %1723 = vmatprep.subr.mxu0 0.0
        %1724 = vmatpush1.msra.mxu0 0.0
        %1725 = vmatprep.subr.mxu0 0.0
        %1726 = vmatpush1.msra.mxu0 0.0
        %1727 = vmatprep.subr.mxu0 0.0
        %1728 = vmatpush1.msra.mxu0 0.0
        %1729 = vmatprep.subr.mxu0 0.0
        %1730 = vmatpush1.msra.mxu0 0.0
        %1731 = vmatprep.subr.mxu0 0.0
        %1732 = vmatpush1.msra.mxu0 0.0
        %1733 = vmatprep.subr.mxu0 0.0
        %1734 = vmatpush1.msra.mxu0 0.0
        %1735 = vmatprep.subr.mxu0 0.0
        %1736 = vmatpush1.msra.mxu0 0.0
        %1737 = vmatprep.subr.mxu0 0.0
        %1738 = vmatpush1.msra.mxu0 0.0
        %1739 = vmatprep.subr.mxu0 0.0
        %1740 = vmatpush1.msra.mxu0 0.0
        %1741 = vmatprep.subr.mxu0 0.0
        %1742 = vmatpush1.msra.mxu0 0.0
        %1743 = vmatprep.subr.mxu0 0.0
        %1744 = vmatpush1.msra.mxu0 0.0
        %1745 = vmatprep.subr.mxu0 0.0
        %1746 = vmatpush1.msra.mxu0 0.0
        %1747 = vmatprep.subr.mxu0 0.0
        %1748 = vmatpush1.msra.mxu0 0.0
        %1749 = vmatprep.subr.mxu0 0.0
        %1750 = vmatpush1.msra.mxu0 0.0
        %1751 = vmatprep.subr.mxu0 0.0
        %1752 = vmatpush1.msra.mxu0 0.0
        %1753 = vmatprep.subr.mxu0 0.0
        %1754 = vmatpush1.msra.mxu0 0.0
        %1755 = vmatprep.subr.mxu0 0.0
        %1756 = vmatpush1.msra.mxu0 0.0
        %1757 = vmatprep.subr.mxu0 0.0
        %1758 = vmatpush1.msra.mxu0 0.0
        %1759 = vmatprep.subr.mxu0 0.0
        %1760 = vmatpush1.msra.mxu0 0.0
        %1761 = vmatprep.subr.mxu0 0.0
        %1762 = vmatpush1.msra.mxu0 0.0
        %1763 = vmatprep.mubr.f32.mxu0 0.0
        %1764 = vmatmul.mubr.f32.gmra.mrb[0].mxu0 %v1669
        %v1765 = vpop.f32.mrb[0].mxu0
        %v1766 = vadd.f32 0.0, %v1765
        %v1767 = vpop.f32.mrb[0].mxu0
        %1768 = vmatprep.mubr.f32.mxu0 0.0
        %1769 = vmatmul.mubr.f32.gmra.mrb[0].mxu0 %v1671
        %v1770 = vpop.f32.mrb[0].mxu0
        %v1771 = vpop.f32.mrb[0].mxu0
        %1772 = vmatprep.mubr.f32.mxu0 0.0
        %1773 = vmatmul.mubr.f32.gmra.mrb[0].mxu0 %v1673
        %v1774 = vpop.f32.mrb[0].mxu0
        %v1775 = vadd.f32 0.0, %v1774
        %v1776 = vpop.f32.mrb[0].mxu0
        %1777 = vmatprep.mubr.f32.mxu0 0.0
        %1778 = vmatmul.mubr.f32.gmra.mrb[0].mxu0 %v1675
        %v1779 = vpop.f32.mrb[0].mxu0
        %v1780 = vpop.f32.mrb[0].mxu0
        %1781 = vmatprep.mubr.f32.mxu0 0.0
        %1782 = vmatmul.mubr.f32.gmra.mrb[0].mxu0 %v1677
        %v1783 = vpop.f32.mrb[0].mxu0
        %v1784 = vadd.f32 0.0, %v1783
        %v1785 = vpop.f32.mrb[0].mxu0
        %1786 = vmatprep.mubr.f32.mxu0 0.0
        %1787 = vmatmul.mubr.f32.gmra.mrb[0].mxu0 %v1679
        %v1788 = vpop.f32.mrb[0].mxu0
        %v1789 = vpop.f32.mrb[0].mxu0
        %1790 = vmatprep.mubr.f32.mxu0 0.0
        %1791 = vmatmul.mubr.f32.gmra.mrb[0].mxu0 %v1681
        %v1792 = vpop.f32.mrb[0].mxu0
        %v1793 = vadd.f32 0.0, %v1792
        %v1794 = vpop.f32.mrb[0].mxu0
        %1795 = vmatprep.mubr.f32.mxu0 0.0
        %1796 = vmatmul.mubr.f32.gmra.mrb[0].mxu0 %v1683
        %v1797 = vpop.f32.mrb[0].mxu0
        %v1798 = vpop.f32.mrb[0].mxu0
        %1799 = vmatprep.mubr.f32.mxu0 0.0
        %1800 = vmatmul.mubr.f32.gmra.mrb[0].mxu0 %v1685
        %v1801 = vpop.f32.mrb[0].mxu0
        %v1802 = vadd.f32 0.0, %v1801
        %v1803 = vpop.f32.mrb[0].mxu0
        %1804 = vmatprep.mubr.f32.mxu0 0.0
        %1805 = vmatmul.mubr.f32.gmra.mrb[0].mxu0 %v1687
        %v1806 = vpop.f32.mrb[0].mxu0
        %v1807 = vpop.f32.mrb[0].mxu0
        %1808 = vmatprep.mubr.f32.mxu0 0.0
        %1809 = vmatmul.mubr.f32.gmra.mrb[0].mxu0 %v1689
        %v1810 = vpop.f32.mrb[0].mxu0
        %v1811 = vadd.f32 0.0, %v1810
        %v1812 = vpop.f32.mrb[0].mxu0
        %1813 = vmatprep.mubr.f32.mxu0 0.0
        %1814 = vmatmul.mubr.f32.gmra.mrb[0].mxu0 %v1691
        %v1815 = vpop.f32.mrb[0].mxu0
        %v1816 = vpop.f32.mrb[0].mxu0
        %1817 = vmatprep.mubr.f32.mxu0 0.0
        %1818 = vmatmul.mubr.f32.gmra.mrb[0].mxu0 %v1693
        %v1819 = vpop.f32.mrb[0].mxu0
        %v1820 = vadd.f32 0.0, %v1819
        %v1821 = vpop.f32.mrb[0].mxu0
        %1822 = vmatprep.mubr.f32.mxu0 0.0
        %1823 = vmatmul.mubr.f32.gmra.mrb[0].mxu0 %v1695
        %v1824 = vpop.f32.mrb[0].mxu0
        %v1825 = vpop.f32.mrb[0].mxu0
        %1826 = vmatprep.mubr.f32.mxu0 0.0
        %1827 = vmatmul.mubr.f32.gmra.mrb[0].mxu0 %v1697
        %v1828 = vpop.f32.mrb[0].mxu0
        %v1829 = vadd.f32 0.0, %v1828
        %v1830 = vpop.f32.mrb[0].mxu0
        %1831 = vdwg.mxu0
        %v1832 = vadd.f32 %v1652, %v1766
        %v1833 = vadd.f32 %v1653, %v1775
        %v1834 = vadd.f32 %v1654, %v1784
        %v1835 = vadd.f32 %v1655, %v1793
        %v1836 = vadd.f32 %v1656, %v1802
        %v1837 = vadd.f32 %v1657, %v1811
        %v1838 = vadd.f32 %v1658, %v1820
        %v1839 = vadd.f32 %v1659, %v1829
        %s1840 = scalar_lea.vmem %s2, 320
        %v1841 = vld [vmem:[%s1840] sm:$0xff]
        %v1842 = vld [vmem:[%s1840 + $0x8] sm:$0xff]
        %v1843 = vld [vmem:[%s1840 + $0x10] sm:$0xff]
        %v1844 = vld [vmem:[%s1840 + $0x18] sm:$0xff]
        %v1845 = vld [vmem:[%s1840 + $0x20] sm:$0xff]
        %v1846 = vld [vmem:[%s1840 + $0x28] sm:$0xff]
        %v1847 = vld [vmem:[%s1840 + $0x30] sm:$0xff]
        %v1848 = vld [vmem:[%s1840 + $0x38] sm:$0xff]
        %v1850 = vrot.slane %v1417, 1
        %v1851 = vrot.slane %v1418, 1
        %v1852 = vsel %vm1213, %v1850, %v1851
        %v1853 = vrot.slane %v1419, 1
        %v1854 = vsel %vm1213, %v1851, %v1853
        %v1855 = vrot.slane %v1420, 1
        %v1856 = vsel %vm1213, %v1853, %v1855
        %v1857 = vrot.slane %v1421, 1
        %v1858 = vsel %vm1213, %v1855, %v1857
        %v1859 = vrot.slane %v1422, 1
        %v1860 = vsel %vm1213, %v1857, %v1859
        %v1861 = vrot.slane %v1423, 1
        %v1862 = vsel %vm1213, %v1859, %v1861
        %v1863 = vrot.slane %v1424, 1
        %v1864 = vsel %vm1213, %v1861, %v1863
        %v1865 = vrot.slane %v1425, 1
        %v1866 = vsel %vm1213, %v1863, %v1865
        %v1867 = vrot.slane %v1426, 1
        %v1868 = vsel %vm1213, %v1865, %v1867
        %v1869 = vrot.slane %v1427, 1
        %v1870 = vsel %vm1213, %v1867, %v1869
        %v1871 = vrot.slane %v1428, 1
        %v1872 = vsel %vm1213, %v1869, %v1871
        %v1873 = vrot.slane %v1429, 1
        %v1874 = vsel %vm1213, %v1871, %v1873
        %v1875 = vrot.slane %v1430, 1
        %v1876 = vsel %vm1213, %v1873, %v1875
        %v1877 = vrot.slane %v1431, 1
        %v1878 = vsel %vm1213, %v1875, %v1877
        %v1879 = vrot.slane %v1432, 1
        %v1880 = vsel %vm1213, %v1877, %v1879
        %v1881 = vsel %vm222, %v1852, 0
        %v1883 = vsel %vm222, %v1854, 0
        %v1885 = vsel %vm222, %v1856, 0
        %v1887 = vsel %vm222, %v1858, 0
        %v1889 = vsel %vm222, %v1860, 0
        %v1891 = vsel %vm222, %v1862, 0
        %v1893 = vsel %vm222, %v1864, 0
        %v1895 = vsel %vm222, %v1866, 0
        %v1897 = vsel %vm222, %v1868, 0
        %v1899 = vsel %vm222, %v1870, 0
        %v1901 = vsel %vm222, %v1872, 0
        %v1903 = vsel %vm222, %v1874, 0
        %v1905 = vsel %vm222, %v1876, 0
        %v1907 = vsel %vm222, %v1878, 0
        %v1909 = vsel %vm222, %v1880, 0
        %1911 = vmatprep.subr.mxu0 0.0
        %1912 = vmatpush1.msra.mxu0 %v1841
        %1913 = vmatprep.subr.mxu0 0.0
        %1914 = vmatpush1.msra.mxu0 %v1842
        %1915 = vmatprep.subr.mxu0 0.0
        %1916 = vmatpush1.msra.mxu0 %v1843
        %1917 = vmatprep.subr.mxu0 0.0
        %1918 = vmatpush1.msra.mxu0 %v1844
        %1919 = vmatprep.subr.mxu0 0.0
        %1920 = vmatpush1.msra.mxu0 %v1845
        %1921 = vmatprep.subr.mxu0 0.0
        %1922 = vmatpush1.msra.mxu0 %v1846
        %1923 = vmatprep.subr.mxu0 0.0
        %1924 = vmatpush1.msra.mxu0 %v1847
        %1925 = vmatprep.subr.mxu0 0.0
        %1926 = vmatpush1.msra.mxu0 %v1848
        %1927 = vmatprep.subr.mxu0 0.0
        %1928 = vmatpush1.msra.mxu0 0.0
        %1929 = vmatprep.subr.mxu0 0.0
        %1930 = vmatpush1.msra.mxu0 0.0
        %1931 = vmatprep.subr.mxu0 0.0
        %1932 = vmatpush1.msra.mxu0 0.0
        %1933 = vmatprep.subr.mxu0 0.0
        %1934 = vmatpush1.msra.mxu0 0.0
        %1935 = vmatprep.subr.mxu0 0.0
        %1936 = vmatpush1.msra.mxu0 0.0
        %1937 = vmatprep.subr.mxu0 0.0
        %1938 = vmatpush1.msra.mxu0 0.0
        %1939 = vmatprep.subr.mxu0 0.0
        %1940 = vmatpush1.msra.mxu0 0.0
        %1941 = vmatprep.subr.mxu0 0.0
        %1942 = vmatpush1.msra.mxu0 0.0
        %1943 = vmatprep.subr.mxu0 0.0
        %1944 = vmatpush1.msra.mxu0 0.0
        %1945 = vmatprep.subr.mxu0 0.0
        %1946 = vmatpush1.msra.mxu0 0.0
        %1947 = vmatprep.subr.mxu0 0.0
        %1948 = vmatpush1.msra.mxu0 0.0
        %1949 = vmatprep.subr.mxu0 0.0
        %1950 = vmatpush1.msra.mxu0 0.0
        %1951 = vmatprep.subr.mxu0 0.0
        %1952 = vmatpush1.msra.mxu0 0.0
        %1953 = vmatprep.subr.mxu0 0.0
        %1954 = vmatpush1.msra.mxu0 0.0
        %1955 = vmatprep.subr.mxu0 0.0
        %1956 = vmatpush1.msra.mxu0 0.0
        %1957 = vmatprep.subr.mxu0 0.0
        %1958 = vmatpush1.msra.mxu0 0.0
        %1959 = vmatprep.subr.mxu0 0.0
        %1960 = vmatpush1.msra.mxu0 0.0
        %1961 = vmatprep.subr.mxu0 0.0
        %1962 = vmatpush1.msra.mxu0 0.0
        %1963 = vmatprep.subr.mxu0 0.0
        %1964 = vmatpush1.msra.mxu0 0.0
        %1965 = vmatprep.subr.mxu0 0.0
        %1966 = vmatpush1.msra.mxu0 0.0
        %1967 = vmatprep.subr.mxu0 0.0
        %1968 = vmatpush1.msra.mxu0 0.0
        %1969 = vmatprep.subr.mxu0 0.0
        %1970 = vmatpush1.msra.mxu0 0.0
        %1971 = vmatprep.subr.mxu0 0.0
        %1972 = vmatpush1.msra.mxu0 0.0
        %1973 = vmatprep.subr.mxu0 0.0
        %1974 = vmatpush1.msra.mxu0 0.0
        %1975 = vmatprep.mubr.f32.mxu0 0.0
        %1976 = vmatmul.mubr.f32.gmra.mrb[0].mxu0 %v1881
        %v1977 = vpop.f32.mrb[0].mxu0
        %v1978 = vadd.f32 0.0, %v1977
        %v1979 = vpop.f32.mrb[0].mxu0
        %1980 = vmatprep.mubr.f32.mxu0 0.0
        %1981 = vmatmul.mubr.f32.gmra.mrb[0].mxu0 %v1883
        %v1982 = vpop.f32.mrb[0].mxu0
        %v1983 = vpop.f32.mrb[0].mxu0
        %1984 = vmatprep.mubr.f32.mxu0 0.0
        %1985 = vmatmul.mubr.f32.gmra.mrb[0].mxu0 %v1885
        %v1986 = vpop.f32.mrb[0].mxu0
        %v1987 = vadd.f32 0.0, %v1986
        %v1988 = vpop.f32.mrb[0].mxu0
        %1989 = vmatprep.mubr.f32.mxu0 0.0
        %1990 = vmatmul.mubr.f32.gmra.mrb[0].mxu0 %v1887
        %v1991 = vpop.f32.mrb[0].mxu0
        %v1992 = vpop.f32.mrb[0].mxu0
        %1993 = vmatprep.mubr.f32.mxu0 0.0
        %1994 = vmatmul.mubr.f32.gmra.mrb[0].mxu0 %v1889
        %v1995 = vpop.f32.mrb[0].mxu0
        %v1996 = vadd.f32 0.0, %v1995
        %v1997 = vpop.f32.mrb[0].mxu0
        %1998 = vmatprep.mubr.f32.mxu0 0.0
        %1999 = vmatmul.mubr.f32.gmra.mrb[0].mxu0 %v1891
        %v2000 = vpop.f32.mrb[0].mxu0
        %v2001 = vpop.f32.mrb[0].mxu0
        %2002 = vmatprep.mubr.f32.mxu0 0.0
        %2003 = vmatmul.mubr.f32.gmra.mrb[0].mxu0 %v1893
        %v2004 = vpop.f32.mrb[0].mxu0
        %v2005 = vadd.f32 0.0, %v2004
        %v2006 = vpop.f32.mrb[0].mxu0
        %2007 = vmatprep.mubr.f32.mxu0 0.0
        %2008 = vmatmul.mubr.f32.gmra.mrb[0].mxu0 %v1895
        %v2009 = vpop.f32.mrb[0].mxu0
        %v2010 = vpop.f32.mrb[0].mxu0
        %2011 = vmatprep.mubr.f32.mxu0 0.0
        %2012 = vmatmul.mubr.f32.gmra.mrb[0].mxu0 %v1897
        %v2013 = vpop.f32.mrb[0].mxu0
        %v2014 = vadd.f32 0.0, %v2013
        %v2015 = vpop.f32.mrb[0].mxu0
        %2016 = vmatprep.mubr.f32.mxu0 0.0
        %2017 = vmatmul.mubr.f32.gmra.mrb[0].mxu0 %v1899
        %v2018 = vpop.f32.mrb[0].mxu0
        %v2019 = vpop.f32.mrb[0].mxu0
        %2020 = vmatprep.mubr.f32.mxu0 0.0
        %2021 = vmatmul.mubr.f32.gmra.mrb[0].mxu0 %v1901
        %v2022 = vpop.f32.mrb[0].mxu0
        %v2023 = vadd.f32 0.0, %v2022
        %v2024 = vpop.f32.mrb[0].mxu0
        %2025 = vmatprep.mubr.f32.mxu0 0.0
        %2026 = vmatmul.mubr.f32.gmra.mrb[0].mxu0 %v1903
        %v2027 = vpop.f32.mrb[0].mxu0
        %v2028 = vpop.f32.mrb[0].mxu0
        %2029 = vmatprep.mubr.f32.mxu0 0.0
        %2030 = vmatmul.mubr.f32.gmra.mrb[0].mxu0 %v1905
        %v2031 = vpop.f32.mrb[0].mxu0
        %v2032 = vadd.f32 0.0, %v2031
        %v2033 = vpop.f32.mrb[0].mxu0
        %2034 = vmatprep.mubr.f32.mxu0 0.0
        %2035 = vmatmul.mubr.f32.gmra.mrb[0].mxu0 %v1907
        %v2036 = vpop.f32.mrb[0].mxu0
        %v2037 = vpop.f32.mrb[0].mxu0
        %2038 = vmatprep.mubr.f32.mxu0 0.0
        %2039 = vmatmul.mubr.f32.gmra.mrb[0].mxu0 %v1909
        %v2040 = vpop.f32.mrb[0].mxu0
        %v2041 = vadd.f32 0.0, %v2040
        %v2042 = vpop.f32.mrb[0].mxu0
        %2043 = vdwg.mxu0
        %v2044 = vadd.f32 %v1832, %v1978
        %v2045 = vadd.f32 %v1833, %v1987
        %v2046 = vadd.f32 %v1834, %v1996
        %v2047 = vadd.f32 %v1835, %v2005
        %v2048 = vadd.f32 %v1836, %v2014
        %v2049 = vadd.f32 %v1837, %v2023
        %v2050 = vadd.f32 %v1838, %v2032
        %v2051 = vadd.f32 %v1839, %v2041
        %v2052 = vld [vmem:[#allocation3 + $0x20] sm:$0xff]
        %v2053 = vld [vmem:[#allocation3 + $0x28] sm:$0xff]
        %v2054 = vld [vmem:[#allocation3 + $0x30] sm:$0xff]
        %v2055 = vld [vmem:[#allocation3 + $0x38] sm:$0xff]
        %v2056 = vld [vmem:[#allocation3 + $0x40] sm:$0xff]
        %v2057 = vld [vmem:[#allocation3 + $0x48] sm:$0xff]
        %v2058 = vld [vmem:[#allocation3 + $0x50] sm:$0xff]
        %v2059 = vld [vmem:[#allocation3 + $0x58] sm:$0xff]
        %v2060 = vld [vmem:[#allocation3 + $0x60] sm:$0xff]
        %v2061 = vld [vmem:[#allocation3 + $0x68] sm:$0xff]
        %v2062 = vld [vmem:[#allocation3 + $0x70] sm:$0xff]
        %v2063 = vld [vmem:[#allocation3 + $0x78] sm:$0xff]
        %v2064 = vld [vmem:[#allocation3 + $0x80] sm:$0xff]
        %v2065 = vld [vmem:[#allocation3 + $0x88] sm:$0xff]
        %v2066 = vld [vmem:[#allocation3 + $0x90] sm:$0xff]
        %v2067 = vld [vmem:[#allocation3 + $0x98] sm:$0xff]
        %v2068 = vld [vmem:[#allocation3 + $0xa0] sm:$0xff]
        %s2069 = scalar_lea.vmem %s2, 384
        %v2070 = vld [vmem:[%s2069] sm:$0xff]
        %v2071 = vld [vmem:[%s2069 + $0x8] sm:$0xff]
        %v2072 = vld [vmem:[%s2069 + $0x10] sm:$0xff]
        %v2073 = vld [vmem:[%s2069 + $0x18] sm:$0xff]
        %v2074 = vld [vmem:[%s2069 + $0x20] sm:$0xff]
        %v2075 = vld [vmem:[%s2069 + $0x28] sm:$0xff]
        %v2076 = vld [vmem:[%s2069 + $0x30] sm:$0xff]
        %v2077 = vld [vmem:[%s2069 + $0x38] sm:$0xff]
        %v2094 = vrot.slane %v2052, 7
        %v2095 = vrot.slane %v2053, 7
        %v2096 = vsel %vm1008, %v2094, %v2095
        %v2097 = vrot.slane %v2054, 7
        %v2098 = vsel %vm1008, %v2095, %v2097
        %v2099 = vrot.slane %v2055, 7
        %v2100 = vsel %vm1008, %v2097, %v2099
        %v2101 = vrot.slane %v2056, 7
        %v2102 = vsel %vm1008, %v2099, %v2101
        %v2103 = vrot.slane %v2057, 7
        %v2104 = vsel %vm1008, %v2101, %v2103
        %v2105 = vrot.slane %v2058, 7
        %v2106 = vsel %vm1008, %v2103, %v2105
        %v2107 = vrot.slane %v2059, 7
        %v2108 = vsel %vm1008, %v2105, %v2107
        %v2109 = vrot.slane %v2060, 7
        %v2110 = vsel %vm1008, %v2107, %v2109
        %v2111 = vrot.slane %v2061, 7
        %v2112 = vsel %vm1008, %v2109, %v2111
        %v2113 = vrot.slane %v2062, 7
        %v2114 = vsel %vm1008, %v2111, %v2113
        %v2115 = vrot.slane %v2063, 7
        %v2116 = vsel %vm1008, %v2113, %v2115
        %v2117 = vrot.slane %v2064, 7
        %v2118 = vsel %vm1008, %v2115, %v2117
        %v2119 = vrot.slane %v2065, 7
        %v2120 = vsel %vm1008, %v2117, %v2119
        %v2121 = vrot.slane %v2066, 7
        %v2122 = vsel %vm1008, %v2119, %v2121
        %v2123 = vrot.slane %v2067, 7
        %v2124 = vsel %vm1008, %v2121, %v2123
        %v2125 = vsel %vm222, %v2096, 0
        %v2127 = vsel %vm222, %v2098, 0
        %v2129 = vsel %vm222, %v2100, 0
        %v2131 = vsel %vm222, %v2102, 0
        %v2133 = vsel %vm222, %v2104, 0
        %v2135 = vsel %vm222, %v2106, 0
        %v2137 = vsel %vm222, %v2108, 0
        %v2139 = vsel %vm222, %v2110, 0
        %v2141 = vsel %vm222, %v2112, 0
        %v2143 = vsel %vm222, %v2114, 0
        %v2145 = vsel %vm222, %v2116, 0
        %v2147 = vsel %vm222, %v2118, 0
        %v2149 = vsel %vm222, %v2120, 0
        %v2151 = vsel %vm222, %v2122, 0
        %v2153 = vsel %vm222, %v2124, 0
        %2155 = vmatprep.subr.mxu0 0.0
        %2156 = vmatpush1.msra.mxu0 %v2070
        %2157 = vmatprep.subr.mxu0 0.0
        %2158 = vmatpush1.msra.mxu0 %v2071
        %2159 = vmatprep.subr.mxu0 0.0
        %2160 = vmatpush1.msra.mxu0 %v2072
        %2161 = vmatprep.subr.mxu0 0.0
        %2162 = vmatpush1.msra.mxu0 %v2073
        %2163 = vmatprep.subr.mxu0 0.0
        %2164 = vmatpush1.msra.mxu0 %v2074
        %2165 = vmatprep.subr.mxu0 0.0
        %2166 = vmatpush1.msra.mxu0 %v2075
        %2167 = vmatprep.subr.mxu0 0.0
        %2168 = vmatpush1.msra.mxu0 %v2076
        %2169 = vmatprep.subr.mxu0 0.0
        %2170 = vmatpush1.msra.mxu0 %v2077
        %2171 = vmatprep.subr.mxu0 0.0
        %2172 = vmatpush1.msra.mxu0 0.0
        %2173 = vmatprep.subr.mxu0 0.0
        %2174 = vmatpush1.msra.mxu0 0.0
        %2175 = vmatprep.subr.mxu0 0.0
        %2176 = vmatpush1.msra.mxu0 0.0
        %2177 = vmatprep.subr.mxu0 0.0
        %2178 = vmatpush1.msra.mxu0 0.0
        %2179 = vmatprep.subr.mxu0 0.0
        %2180 = vmatpush1.msra.mxu0 0.0
        %2181 = vmatprep.subr.mxu0 0.0
        %2182 = vmatpush1.msra.mxu0 0.0
        %2183 = vmatprep.subr.mxu0 0.0
        %2184 = vmatpush1.msra.mxu0 0.0
        %2185 = vmatprep.subr.mxu0 0.0
        %2186 = vmatpush1.msra.mxu0 0.0
        %2187 = vmatprep.subr.mxu0 0.0
        %2188 = vmatpush1.msra.mxu0 0.0
        %2189 = vmatprep.subr.mxu0 0.0
        %2190 = vmatpush1.msra.mxu0 0.0
        %2191 = vmatprep.subr.mxu0 0.0
        %2192 = vmatpush1.msra.mxu0 0.0
        %2193 = vmatprep.subr.mxu0 0.0
        %2194 = vmatpush1.msra.mxu0 0.0
        %2195 = vmatprep.subr.mxu0 0.0
        %2196 = vmatpush1.msra.mxu0 0.0
        %2197 = vmatprep.subr.mxu0 0.0
        %2198 = vmatpush1.msra.mxu0 0.0
        %2199 = vmatprep.subr.mxu0 0.0
        %2200 = vmatpush1.msra.mxu0 0.0
        %2201 = vmatprep.subr.mxu0 0.0
        %2202 = vmatpush1.msra.mxu0 0.0
        %2203 = vmatprep.subr.mxu0 0.0
        %2204 = vmatpush1.msra.mxu0 0.0
        %2205 = vmatprep.subr.mxu0 0.0
        %2206 = vmatpush1.msra.mxu0 0.0
        %2207 = vmatprep.subr.mxu0 0.0
        %2208 = vmatpush1.msra.mxu0 0.0
        %2209 = vmatprep.subr.mxu0 0.0
        %2210 = vmatpush1.msra.mxu0 0.0
        %2211 = vmatprep.subr.mxu0 0.0
        %2212 = vmatpush1.msra.mxu0 0.0
        %2213 = vmatprep.subr.mxu0 0.0
        %2214 = vmatpush1.msra.mxu0 0.0
        %2215 = vmatprep.subr.mxu0 0.0
        %2216 = vmatpush1.msra.mxu0 0.0
        %2217 = vmatprep.subr.mxu0 0.0
        %2218 = vmatpush1.msra.mxu0 0.0
        %2219 = vmatprep.mubr.f32.mxu0 0.0
        %2220 = vmatmul.mubr.f32.gmra.mrb[0].mxu0 %v2125
        %v2221 = vpop.f32.mrb[0].mxu0
        %v2222 = vadd.f32 0.0, %v2221
        %v2223 = vpop.f32.mrb[0].mxu0
        %2224 = vmatprep.mubr.f32.mxu0 0.0
        %2225 = vmatmul.mubr.f32.gmra.mrb[0].mxu0 %v2127
        %v2226 = vpop.f32.mrb[0].mxu0
        %v2227 = vpop.f32.mrb[0].mxu0
        %2228 = vmatprep.mubr.f32.mxu0 0.0
        %2229 = vmatmul.mubr.f32.gmra.mrb[0].mxu0 %v2129
        %v2230 = vpop.f32.mrb[0].mxu0
        %v2231 = vadd.f32 0.0, %v2230
        %v2232 = vpop.f32.mrb[0].mxu0
        %2233 = vmatprep.mubr.f32.mxu0 0.0
        %2234 = vmatmul.mubr.f32.gmra.mrb[0].mxu0 %v2131
        %v2235 = vpop.f32.mrb[0].mxu0
        %v2236 = vpop.f32.mrb[0].mxu0
        %2237 = vmatprep.mubr.f32.mxu0 0.0
        %2238 = vmatmul.mubr.f32.gmra.mrb[0].mxu0 %v2133
        %v2239 = vpop.f32.mrb[0].mxu0
        %v2240 = vadd.f32 0.0, %v2239
        %v2241 = vpop.f32.mrb[0].mxu0
        %2242 = vmatprep.mubr.f32.mxu0 0.0
        %2243 = vmatmul.mubr.f32.gmra.mrb[0].mxu0 %v2135
        %v2244 = vpop.f32.mrb[0].mxu0
        %v2245 = vpop.f32.mrb[0].mxu0
        %2246 = vmatprep.mubr.f32.mxu0 0.0
        %2247 = vmatmul.mubr.f32.gmra.mrb[0].mxu0 %v2137
        %v2248 = vpop.f32.mrb[0].mxu0
        %v2249 = vadd.f32 0.0, %v2248
        %v2250 = vpop.f32.mrb[0].mxu0
        %2251 = vmatprep.mubr.f32.mxu0 0.0
        %2252 = vmatmul.mubr.f32.gmra.mrb[0].mxu0 %v2139
        %v2253 = vpop.f32.mrb[0].mxu0
        %v2254 = vpop.f32.mrb[0].mxu0
        %2255 = vmatprep.mubr.f32.mxu0 0.0
        %2256 = vmatmul.mubr.f32.gmra.mrb[0].mxu0 %v2141
        %v2257 = vpop.f32.mrb[0].mxu0
        %v2258 = vadd.f32 0.0, %v2257
        %v2259 = vpop.f32.mrb[0].mxu0
        %2260 = vmatprep.mubr.f32.mxu0 0.0
        %2261 = vmatmul.mubr.f32.gmra.mrb[0].mxu0 %v2143
        %v2262 = vpop.f32.mrb[0].mxu0
        %v2263 = vpop.f32.mrb[0].mxu0
        %2264 = vmatprep.mubr.f32.mxu0 0.0
        %2265 = vmatmul.mubr.f32.gmra.mrb[0].mxu0 %v2145
        %v2266 = vpop.f32.mrb[0].mxu0
        %v2267 = vadd.f32 0.0, %v2266
        %v2268 = vpop.f32.mrb[0].mxu0
        %2269 = vmatprep.mubr.f32.mxu0 0.0
        %2270 = vmatmul.mubr.f32.gmra.mrb[0].mxu0 %v2147
        %v2271 = vpop.f32.mrb[0].mxu0
        %v2272 = vpop.f32.mrb[0].mxu0
        %2273 = vmatprep.mubr.f32.mxu0 0.0
        %2274 = vmatmul.mubr.f32.gmra.mrb[0].mxu0 %v2149
        %v2275 = vpop.f32.mrb[0].mxu0
        %v2276 = vadd.f32 0.0, %v2275
        %v2277 = vpop.f32.mrb[0].mxu0
        %2278 = vmatprep.mubr.f32.mxu0 0.0
        %2279 = vmatmul.mubr.f32.gmra.mrb[0].mxu0 %v2151
        %v2280 = vpop.f32.mrb[0].mxu0
        %v2281 = vpop.f32.mrb[0].mxu0
        %2282 = vmatprep.mubr.f32.mxu0 0.0
        %2283 = vmatmul.mubr.f32.gmra.mrb[0].mxu0 %v2153
        %v2284 = vpop.f32.mrb[0].mxu0
        %v2285 = vadd.f32 0.0, %v2284
        %v2286 = vpop.f32.mrb[0].mxu0
        %2287 = vdwg.mxu0
        %v2288 = vadd.f32 %v2044, %v2222
        %v2289 = vadd.f32 %v2045, %v2231
        %v2290 = vadd.f32 %v2046, %v2240
        %v2291 = vadd.f32 %v2047, %v2249
        %v2292 = vadd.f32 %v2048, %v2258
        %v2293 = vadd.f32 %v2049, %v2267
        %v2294 = vadd.f32 %v2050, %v2276
        %v2295 = vadd.f32 %v2051, %v2285
        %s2296 = scalar_lea.vmem %s2, 448
        %v2297 = vld [vmem:[%s2296] sm:$0xff]
        %v2298 = vld [vmem:[%s2296 + $0x8] sm:$0xff]
        %v2299 = vld [vmem:[%s2296 + $0x10] sm:$0xff]
        %v2300 = vld [vmem:[%s2296 + $0x18] sm:$0xff]
        %v2301 = vld [vmem:[%s2296 + $0x20] sm:$0xff]
        %v2302 = vld [vmem:[%s2296 + $0x28] sm:$0xff]
        %v2303 = vld [vmem:[%s2296 + $0x30] sm:$0xff]
        %v2304 = vld [vmem:[%s2296 + $0x38] sm:$0xff]
        %v2305 = vsel %vm222, %v2053, 0
        %v2307 = vsel %vm222, %v2054, 0
        %v2309 = vsel %vm222, %v2055, 0
        %v2311 = vsel %vm222, %v2056, 0
        %v2313 = vsel %vm222, %v2057, 0
        %v2315 = vsel %vm222, %v2058, 0
        %v2317 = vsel %vm222, %v2059, 0
        %v2319 = vsel %vm222, %v2060, 0
        %v2321 = vsel %vm222, %v2061, 0
        %v2323 = vsel %vm222, %v2062, 0
        %v2325 = vsel %vm222, %v2063, 0
        %v2327 = vsel %vm222, %v2064, 0
        %v2329 = vsel %vm222, %v2065, 0
        %v2331 = vsel %vm222, %v2066, 0
        %v2333 = vsel %vm222, %v2067, 0
        %2335 = vmatprep.subr.mxu0 0.0
        %2336 = vmatpush1.msra.mxu0 %v2297
        %2337 = vmatprep.subr.mxu0 0.0
        %2338 = vmatpush1.msra.mxu0 %v2298
        %2339 = vmatprep.subr.mxu0 0.0
        %2340 = vmatpush1.msra.mxu0 %v2299
        %2341 = vmatprep.subr.mxu0 0.0
        %2342 = vmatpush1.msra.mxu0 %v2300
        %2343 = vmatprep.subr.mxu0 0.0
        %2344 = vmatpush1.msra.mxu0 %v2301
        %2345 = vmatprep.subr.mxu0 0.0
        %2346 = vmatpush1.msra.mxu0 %v2302
        %2347 = vmatprep.subr.mxu0 0.0
        %2348 = vmatpush1.msra.mxu0 %v2303
        %2349 = vmatprep.subr.mxu0 0.0
        %2350 = vmatpush1.msra.mxu0 %v2304
        %2351 = vmatprep.subr.mxu0 0.0
        %2352 = vmatpush1.msra.mxu0 0.0
        %2353 = vmatprep.subr.mxu0 0.0
        %2354 = vmatpush1.msra.mxu0 0.0
        %2355 = vmatprep.subr.mxu0 0.0
        %2356 = vmatpush1.msra.mxu0 0.0
        %2357 = vmatprep.subr.mxu0 0.0
        %2358 = vmatpush1.msra.mxu0 0.0
        %2359 = vmatprep.subr.mxu0 0.0
        %2360 = vmatpush1.msra.mxu0 0.0
        %2361 = vmatprep.subr.mxu0 0.0
        %2362 = vmatpush1.msra.mxu0 0.0
        %2363 = vmatprep.subr.mxu0 0.0
        %2364 = vmatpush1.msra.mxu0 0.0
        %2365 = vmatprep.subr.mxu0 0.0
        %2366 = vmatpush1.msra.mxu0 0.0
        %2367 = vmatprep.subr.mxu0 0.0
        %2368 = vmatpush1.msra.mxu0 0.0
        %2369 = vmatprep.subr.mxu0 0.0
        %2370 = vmatpush1.msra.mxu0 0.0
        %2371 = vmatprep.subr.mxu0 0.0
        %2372 = vmatpush1.msra.mxu0 0.0
        %2373 = vmatprep.subr.mxu0 0.0
        %2374 = vmatpush1.msra.mxu0 0.0
        %2375 = vmatprep.subr.mxu0 0.0
        %2376 = vmatpush1.msra.mxu0 0.0
        %2377 = vmatprep.subr.mxu0 0.0
        %2378 = vmatpush1.msra.mxu0 0.0
        %2379 = vmatprep.subr.mxu0 0.0
        %2380 = vmatpush1.msra.mxu0 0.0
        %2381 = vmatprep.subr.mxu0 0.0
        %2382 = vmatpush1.msra.mxu0 0.0
        %2383 = vmatprep.subr.mxu0 0.0
        %2384 = vmatpush1.msra.mxu0 0.0
        %2385 = vmatprep.subr.mxu0 0.0
        %2386 = vmatpush1.msra.mxu0 0.0
        %2387 = vmatprep.subr.mxu0 0.0
        %2388 = vmatpush1.msra.mxu0 0.0
        %2389 = vmatprep.subr.mxu0 0.0
        %2390 = vmatpush1.msra.mxu0 0.0
        %2391 = vmatprep.subr.mxu0 0.0
        %2392 = vmatpush1.msra.mxu0 0.0
        %2393 = vmatprep.subr.mxu0 0.0
        %2394 = vmatpush1.msra.mxu0 0.0
        %2395 = vmatprep.subr.mxu0 0.0
        %2396 = vmatpush1.msra.mxu0 0.0
        %2397 = vmatprep.subr.mxu0 0.0
        %2398 = vmatpush1.msra.mxu0 0.0
        %2399 = vmatprep.mubr.f32.mxu0 0.0
        %2400 = vmatmul.mubr.f32.gmra.mrb[0].mxu0 %v2305
        %v2401 = vpop.f32.mrb[0].mxu0
        %v2402 = vadd.f32 0.0, %v2401
        %v2403 = vpop.f32.mrb[0].mxu0
        %2404 = vmatprep.mubr.f32.mxu0 0.0
        %2405 = vmatmul.mubr.f32.gmra.mrb[0].mxu0 %v2307
        %v2406 = vpop.f32.mrb[0].mxu0
        %v2407 = vpop.f32.mrb[0].mxu0
        %2408 = vmatprep.mubr.f32.mxu0 0.0
        %2409 = vmatmul.mubr.f32.gmra.mrb[0].mxu0 %v2309
        %v2410 = vpop.f32.mrb[0].mxu0
        %v2411 = vadd.f32 0.0, %v2410
        %v2412 = vpop.f32.mrb[0].mxu0
        %2413 = vmatprep.mubr.f32.mxu0 0.0
        %2414 = vmatmul.mubr.f32.gmra.mrb[0].mxu0 %v2311
        %v2415 = vpop.f32.mrb[0].mxu0
        %v2416 = vpop.f32.mrb[0].mxu0
        %2417 = vmatprep.mubr.f32.mxu0 0.0
        %2418 = vmatmul.mubr.f32.gmra.mrb[0].mxu0 %v2313
        %v2419 = vpop.f32.mrb[0].mxu0
        %v2420 = vadd.f32 0.0, %v2419
        %v2421 = vpop.f32.mrb[0].mxu0
        %2422 = vmatprep.mubr.f32.mxu0 0.0
        %2423 = vmatmul.mubr.f32.gmra.mrb[0].mxu0 %v2315
        %v2424 = vpop.f32.mrb[0].mxu0
        %v2425 = vpop.f32.mrb[0].mxu0
        %2426 = vmatprep.mubr.f32.mxu0 0.0
        %2427 = vmatmul.mubr.f32.gmra.mrb[0].mxu0 %v2317
        %v2428 = vpop.f32.mrb[0].mxu0
        %v2429 = vadd.f32 0.0, %v2428
        %v2430 = vpop.f32.mrb[0].mxu0
        %2431 = vmatprep.mubr.f32.mxu0 0.0
        %2432 = vmatmul.mubr.f32.gmra.mrb[0].mxu0 %v2319
        %v2433 = vpop.f32.mrb[0].mxu0
        %v2434 = vpop.f32.mrb[0].mxu0
        %2435 = vmatprep.mubr.f32.mxu0 0.0
        %2436 = vmatmul.mubr.f32.gmra.mrb[0].mxu0 %v2321
        %v2437 = vpop.f32.mrb[0].mxu0
        %v2438 = vadd.f32 0.0, %v2437
        %v2439 = vpop.f32.mrb[0].mxu0
        %2440 = vmatprep.mubr.f32.mxu0 0.0
        %2441 = vmatmul.mubr.f32.gmra.mrb[0].mxu0 %v2323
        %v2442 = vpop.f32.mrb[0].mxu0
        %v2443 = vpop.f32.mrb[0].mxu0
        %2444 = vmatprep.mubr.f32.mxu0 0.0
        %2445 = vmatmul.mubr.f32.gmra.mrb[0].mxu0 %v2325
        %v2446 = vpop.f32.mrb[0].mxu0
        %v2447 = vadd.f32 0.0, %v2446
        %v2448 = vpop.f32.mrb[0].mxu0
        %2449 = vmatprep.mubr.f32.mxu0 0.0
        %2450 = vmatmul.mubr.f32.gmra.mrb[0].mxu0 %v2327
        %v2451 = vpop.f32.mrb[0].mxu0
        %v2452 = vpop.f32.mrb[0].mxu0
        %2453 = vmatprep.mubr.f32.mxu0 0.0
        %2454 = vmatmul.mubr.f32.gmra.mrb[0].mxu0 %v2329
        %v2455 = vpop.f32.mrb[0].mxu0
        %v2456 = vadd.f32 0.0, %v2455
        %v2457 = vpop.f32.mrb[0].mxu0
        %2458 = vmatprep.mubr.f32.mxu0 0.0
        %2459 = vmatmul.mubr.f32.gmra.mrb[0].mxu0 %v2331
        %v2460 = vpop.f32.mrb[0].mxu0
        %v2461 = vpop.f32.mrb[0].mxu0
        %2462 = vmatprep.mubr.f32.mxu0 0.0
        %2463 = vmatmul.mubr.f32.gmra.mrb[0].mxu0 %v2333
        %v2464 = vpop.f32.mrb[0].mxu0
        %v2465 = vadd.f32 0.0, %v2464
        %v2466 = vpop.f32.mrb[0].mxu0
        %2467 = vdwg.mxu0
        %v2468 = vadd.f32 %v2288, %v2402
        %v2469 = vadd.f32 %v2289, %v2411
        %v2470 = vadd.f32 %v2290, %v2420
        %v2471 = vadd.f32 %v2291, %v2429
        %v2472 = vadd.f32 %v2292, %v2438
        %v2473 = vadd.f32 %v2293, %v2447
        %v2474 = vadd.f32 %v2294, %v2456
        %v2475 = vadd.f32 %v2295, %v2465
        %s2476 = scalar_lea.vmem %s2, 512
        %v2477 = vld [vmem:[%s2476] sm:$0xff]
        %v2478 = vld [vmem:[%s2476 + $0x8] sm:$0xff]
        %v2479 = vld [vmem:[%s2476 + $0x10] sm:$0xff]
        %v2480 = vld [vmem:[%s2476 + $0x18] sm:$0xff]
        %v2481 = vld [vmem:[%s2476 + $0x20] sm:$0xff]
        %v2482 = vld [vmem:[%s2476 + $0x28] sm:$0xff]
        %v2483 = vld [vmem:[%s2476 + $0x30] sm:$0xff]
        %v2484 = vld [vmem:[%s2476 + $0x38] sm:$0xff]
        %v2486 = vrot.slane %v2053, 1
        %v2487 = vrot.slane %v2054, 1
        %v2488 = vsel %vm1213, %v2486, %v2487
        %v2489 = vrot.slane %v2055, 1
        %v2490 = vsel %vm1213, %v2487, %v2489
        %v2491 = vrot.slane %v2056, 1
        %v2492 = vsel %vm1213, %v2489, %v2491
        %v2493 = vrot.slane %v2057, 1
        %v2494 = vsel %vm1213, %v2491, %v2493
        %v2495 = vrot.slane %v2058, 1
        %v2496 = vsel %vm1213, %v2493, %v2495
        %v2497 = vrot.slane %v2059, 1
        %v2498 = vsel %vm1213, %v2495, %v2497
        %v2499 = vrot.slane %v2060, 1
        %v2500 = vsel %vm1213, %v2497, %v2499
        %v2501 = vrot.slane %v2061, 1
        %v2502 = vsel %vm1213, %v2499, %v2501
        %v2503 = vrot.slane %v2062, 1
        %v2504 = vsel %vm1213, %v2501, %v2503
        %v2505 = vrot.slane %v2063, 1
        %v2506 = vsel %vm1213, %v2503, %v2505
        %v2507 = vrot.slane %v2064, 1
        %v2508 = vsel %vm1213, %v2505, %v2507
        %v2509 = vrot.slane %v2065, 1
        %v2510 = vsel %vm1213, %v2507, %v2509
        %v2511 = vrot.slane %v2066, 1
        %v2512 = vsel %vm1213, %v2509, %v2511
        %v2513 = vrot.slane %v2067, 1
        %v2514 = vsel %vm1213, %v2511, %v2513
        %v2515 = vrot.slane %v2068, 1
        %v2516 = vsel %vm1213, %v2513, %v2515
        %v2517 = vsel %vm222, %v2488, 0
        %v2519 = vsel %vm222, %v2490, 0
        %v2521 = vsel %vm222, %v2492, 0
        %v2523 = vsel %vm222, %v2494, 0
        %v2525 = vsel %vm222, %v2496, 0
        %v2527 = vsel %vm222, %v2498, 0
        %v2529 = vsel %vm222, %v2500, 0
        %v2531 = vsel %vm222, %v2502, 0
        %v2533 = vsel %vm222, %v2504, 0
        %v2535 = vsel %vm222, %v2506, 0
        %v2537 = vsel %vm222, %v2508, 0
        %v2539 = vsel %vm222, %v2510, 0
        %v2541 = vsel %vm222, %v2512, 0
        %v2543 = vsel %vm222, %v2514, 0
        %v2545 = vsel %vm222, %v2516, 0
        %2547 = vmatprep.subr.mxu0 0.0
        %2548 = vmatpush1.msra.mxu0 %v2477
        %2549 = vmatprep.subr.mxu0 0.0
        %2550 = vmatpush1.msra.mxu0 %v2478
        %2551 = vmatprep.subr.mxu0 0.0
        %2552 = vmatpush1.msra.mxu0 %v2479
        %2553 = vmatprep.subr.mxu0 0.0
        %2554 = vmatpush1.msra.mxu0 %v2480
        %2555 = vmatprep.subr.mxu0 0.0
        %2556 = vmatpush1.msra.mxu0 %v2481
        %2557 = vmatprep.subr.mxu0 0.0
        %2558 = vmatpush1.msra.mxu0 %v2482
        %2559 = vmatprep.subr.mxu0 0.0
        %2560 = vmatpush1.msra.mxu0 %v2483
        %2561 = vmatprep.subr.mxu0 0.0
        %2562 = vmatpush1.msra.mxu0 %v2484
        %2563 = vmatprep.subr.mxu0 0.0
        %2564 = vmatpush1.msra.mxu0 0.0
        %2565 = vmatprep.subr.mxu0 0.0
        %2566 = vmatpush1.msra.mxu0 0.0
        %2567 = vmatprep.subr.mxu0 0.0
        %2568 = vmatpush1.msra.mxu0 0.0
        %2569 = vmatprep.subr.mxu0 0.0
        %2570 = vmatpush1.msra.mxu0 0.0
        %2571 = vmatprep.subr.mxu0 0.0
        %2572 = vmatpush1.msra.mxu0 0.0
        %2573 = vmatprep.subr.mxu0 0.0
        %2574 = vmatpush1.msra.mxu0 0.0
        %2575 = vmatprep.subr.mxu0 0.0
        %2576 = vmatpush1.msra.mxu0 0.0
        %2577 = vmatprep.subr.mxu0 0.0
        %2578 = vmatpush1.msra.mxu0 0.0
        %2579 = vmatprep.subr.mxu0 0.0
        %2580 = vmatpush1.msra.mxu0 0.0
        %2581 = vmatprep.subr.mxu0 0.0
        %2582 = vmatpush1.msra.mxu0 0.0
        %2583 = vmatprep.subr.mxu0 0.0
        %2584 = vmatpush1.msra.mxu0 0.0
        %2585 = vmatprep.subr.mxu0 0.0
        %2586 = vmatpush1.msra.mxu0 0.0
        %2587 = vmatprep.subr.mxu0 0.0
        %2588 = vmatpush1.msra.mxu0 0.0
        %2589 = vmatprep.subr.mxu0 0.0
        %2590 = vmatpush1.msra.mxu0 0.0
        %2591 = vmatprep.subr.mxu0 0.0
        %2592 = vmatpush1.msra.mxu0 0.0
        %2593 = vmatprep.subr.mxu0 0.0
        %2594 = vmatpush1.msra.mxu0 0.0
        %2595 = vmatprep.subr.mxu0 0.0
        %2596 = vmatpush1.msra.mxu0 0.0
        %2597 = vmatprep.subr.mxu0 0.0
        %2598 = vmatpush1.msra.mxu0 0.0
        %2599 = vmatprep.subr.mxu0 0.0
        %2600 = vmatpush1.msra.mxu0 0.0
        %2601 = vmatprep.subr.mxu0 0.0
        %2602 = vmatpush1.msra.mxu0 0.0
        %2603 = vmatprep.subr.mxu0 0.0
        %2604 = vmatpush1.msra.mxu0 0.0
        %2605 = vmatprep.subr.mxu0 0.0
        %2606 = vmatpush1.msra.mxu0 0.0
        %2607 = vmatprep.subr.mxu0 0.0
        %2608 = vmatpush1.msra.mxu0 0.0
        %2609 = vmatprep.subr.mxu0 0.0
        %2610 = vmatpush1.msra.mxu0 0.0
        %2611 = vmatprep.mubr.f32.mxu0 0.0
        %2612 = vmatmul.mubr.f32.gmra.mrb[0].mxu0 %v2517
        %v2613 = vpop.f32.mrb[0].mxu0
        %v2614 = vadd.f32 0.0, %v2613
        %v2615 = vpop.f32.mrb[0].mxu0
        %2616 = vmatprep.mubr.f32.mxu0 0.0
        %2617 = vmatmul.mubr.f32.gmra.mrb[0].mxu0 %v2519
        %v2618 = vpop.f32.mrb[0].mxu0
        %v2619 = vpop.f32.mrb[0].mxu0
        %2620 = vmatprep.mubr.f32.mxu0 0.0
        %2621 = vmatmul.mubr.f32.gmra.mrb[0].mxu0 %v2521
        %v2622 = vpop.f32.mrb[0].mxu0
        %v2623 = vadd.f32 0.0, %v2622
        %v2624 = vpop.f32.mrb[0].mxu0
        %2625 = vmatprep.mubr.f32.mxu0 0.0
        %2626 = vmatmul.mubr.f32.gmra.mrb[0].mxu0 %v2523
        %v2627 = vpop.f32.mrb[0].mxu0
        %v2628 = vpop.f32.mrb[0].mxu0
        %2629 = vmatprep.mubr.f32.mxu0 0.0
        %2630 = vmatmul.mubr.f32.gmra.mrb[0].mxu0 %v2525
        %v2631 = vpop.f32.mrb[0].mxu0
        %v2632 = vadd.f32 0.0, %v2631
        %v2633 = vpop.f32.mrb[0].mxu0
        %2634 = vmatprep.mubr.f32.mxu0 0.0
        %2635 = vmatmul.mubr.f32.gmra.mrb[0].mxu0 %v2527
        %v2636 = vpop.f32.mrb[0].mxu0
        %v2637 = vpop.f32.mrb[0].mxu0
        %2638 = vmatprep.mubr.f32.mxu0 0.0
        %2639 = vmatmul.mubr.f32.gmra.mrb[0].mxu0 %v2529
        %v2640 = vpop.f32.mrb[0].mxu0
        %v2641 = vadd.f32 0.0, %v2640
        %v2642 = vpop.f32.mrb[0].mxu0
        %2643 = vmatprep.mubr.f32.mxu0 0.0
        %2644 = vmatmul.mubr.f32.gmra.mrb[0].mxu0 %v2531
        %v2645 = vpop.f32.mrb[0].mxu0
        %v2646 = vpop.f32.mrb[0].mxu0
        %2647 = vmatprep.mubr.f32.mxu0 0.0
        %2648 = vmatmul.mubr.f32.gmra.mrb[0].mxu0 %v2533
        %v2649 = vpop.f32.mrb[0].mxu0
        %v2650 = vadd.f32 0.0, %v2649
        %v2651 = vpop.f32.mrb[0].mxu0
        %2652 = vmatprep.mubr.f32.mxu0 0.0
        %2653 = vmatmul.mubr.f32.gmra.mrb[0].mxu0 %v2535
        %v2654 = vpop.f32.mrb[0].mxu0
        %v2655 = vpop.f32.mrb[0].mxu0
        %2656 = vmatprep.mubr.f32.mxu0 0.0
        %2657 = vmatmul.mubr.f32.gmra.mrb[0].mxu0 %v2537
        %v2658 = vpop.f32.mrb[0].mxu0
        %v2659 = vadd.f32 0.0, %v2658
        %v2660 = vpop.f32.mrb[0].mxu0
        %2661 = vmatprep.mubr.f32.mxu0 0.0
        %2662 = vmatmul.mubr.f32.gmra.mrb[0].mxu0 %v2539
        %v2663 = vpop.f32.mrb[0].mxu0
        %v2664 = vpop.f32.mrb[0].mxu0
        %2665 = vmatprep.mubr.f32.mxu0 0.0
        %2666 = vmatmul.mubr.f32.gmra.mrb[0].mxu0 %v2541
        %v2667 = vpop.f32.mrb[0].mxu0
        %v2668 = vadd.f32 0.0, %v2667
        %v2669 = vpop.f32.mrb[0].mxu0
        %2670 = vmatprep.mubr.f32.mxu0 0.0
        %2671 = vmatmul.mubr.f32.gmra.mrb[0].mxu0 %v2543
        %v2672 = vpop.f32.mrb[0].mxu0
        %v2673 = vpop.f32.mrb[0].mxu0
        %2674 = vmatprep.mubr.f32.mxu0 0.0
        %2675 = vmatmul.mubr.f32.gmra.mrb[0].mxu0 %v2545
        %v2676 = vpop.f32.mrb[0].mxu0
        %v2677 = vadd.f32 0.0, %v2676
        %v2678 = vpop.f32.mrb[0].mxu0
        %2679 = vdwg.mxu0
        %v2680 = vadd.f32 %v2468, %v2614
        %v2681 = vadd.f32 %v2469, %v2623
        %v2682 = vadd.f32 %v2470, %v2632
        %v2683 = vadd.f32 %v2471, %v2641
        %v2684 = vadd.f32 %v2472, %v2650
        %v2685 = vadd.f32 %v2473, %v2659
        %v2686 = vadd.f32 %v2474, %v2668
        %v2687 = vadd.f32 %v2475, %v2677
        %v2689 = vlaneseq
        %v2690 = vshrl.u32 %v2689, 7
        %v2691 = vsub.s32 0, %v2690
        %v2692 = vrot.slane %v792, %v2691
        %v2694 = vmul.f32 %v2680, %v2692
        %v2695 = vmul.f32 %v2681, %v2692
        %v2696 = vmul.f32 %v2682, %v2692
        %v2697 = vmul.f32 %v2683, %v2692
        %v2698 = vmul.f32 %v2684, %v2692
        %v2699 = vmul.f32 %v2685, %v2692
        %v2700 = vmul.f32 %v2686, %v2692
        %v2701 = vmul.f32 %v2687, %v2692
        %v2703 = vlaneseq
        %v2704 = vshrl.u32 %v2703, 7
        %v2705 = vsub.s32 0, %v2704
        %v2706 = vrot.slane %v794, %v2705
        %v2708 = vadd.f32 %v2694, %v2706
        %v2709 = vadd.f32 %v2695, %v2706
        %v2710 = vadd.f32 %v2696, %v2706
        %v2711 = vadd.f32 %v2697, %v2706
        %v2712 = vadd.f32 %v2698, %v2706
        %v2713 = vadd.f32 %v2699, %v2706
        %v2714 = vadd.f32 %v2700, %v2706
        %v2715 = vadd.f32 %v2701, %v2706
        %v2716 = vmax.f32 %v2708, 0.0
        %v2717 = vmax.f32 %v2709, 0.0
        %v2718 = vmax.f32 %v2710, 0.0
        %v2719 = vmax.f32 %v2711, 0.0
        %v2720 = vmax.f32 %v2712, 0.0
        %v2721 = vmax.f32 %v2713, 0.0
        %v2722 = vmax.f32 %v2714, 0.0
        %v2723 = vmax.f32 %v2715, 0.0
        %v2724 = vmax.f32 %v2716, %v2717
        %2725 = vst.msk [vmem:[#allocation2] sm:$0xff] %vm222, %v2724
        %v2726 = vld [vmem:[#allocation2] ss:$2 sm:$0xf]
        %v2727 = vld [vmem:[%s731] ss:$2 sm:$0xf]
        %v2728 = vmax.f32 %v2726, %v2727
        %vm2729 = vcmask 519168
        %2730 = vst.msk [vmem:[#allocation4 + $0x10] sm:$0xf] %vm2729, %v2728
        %v2731 = vmax.f32 %v2718, %v2719
        %2732 = vst.msk [vmem:[#allocation2] sm:$0xff] %vm222, %v2731
        %v2733 = vld [vmem:[#allocation2] ss:$2 sm:$0xf]
        %v2734 = vld [vmem:[%s731] ss:$2 sm:$0xf]
        %v2735 = vmax.f32 %v2733, %v2734
        %2736 = vst.msk [vmem:[#allocation4 + $0x18] sm:$0xf] %vm2729, %v2735
        %v2737 = vmax.f32 %v2720, %v2721
        %2738 = vst.msk [vmem:[#allocation2] sm:$0xff] %vm222, %v2737
        %v2739 = vld [vmem:[#allocation2] ss:$2 sm:$0xf]
        %v2740 = vld [vmem:[%s731] ss:$2 sm:$0xf]
        %v2741 = vmax.f32 %v2739, %v2740
        %2742 = vst.msk [vmem:[#allocation4 + $0x20] sm:$0xf] %vm2729, %v2741
        %v2743 = vmax.f32 %v2722, %v2723
        %2744 = vst.msk [vmem:[#allocation2] sm:$0xff] %vm222, %v2743
        %v2745 = vld [vmem:[#allocation2] ss:$2 sm:$0xf]
        %v2746 = vld [vmem:[%s731] ss:$2 sm:$0xf]
        %v2747 = vmax.f32 %v2745, %v2746
        %2748 = vst.msk [vmem:[#allocation4 + $0x28] sm:$0xf] %vm2729, %v2747
        %s2749 = scalar_lea.vmem %s3, 2
        %v2750 = vld [vmem:[%s2749] sm:$0x1]
        %s2751 = scalar_lea.vmem %s4, 2
        %v2752 = vld [vmem:[%s2751] sm:$0x1]
        %v2753 = vld [vmem:[#allocation4] sm:$0xff]
        %v2754 = vld [vmem:[#allocation4 + $0x8] sm:$0xff]
        %v2755 = vld [vmem:[#allocation4 + $0x10] sm:$0xff]
        %v2756 = vld [vmem:[#allocation4 + $0x18] sm:$0xff]
        %v2757 = vld [vmem:[#allocation4 + $0x20] sm:$0xff]
        %s2758 = scalar_lea.vmem %s2, 576
        %v2759 = vld [vmem:[%s2758] sm:$0xff]
        %v2760 = vld [vmem:[%s2758 + $0x8] sm:$0xff]
        %v2761 = vld [vmem:[%s2758 + $0x10] sm:$0xff]
        %v2762 = vld [vmem:[%s2758 + $0x18] sm:$0xff]
        %v2763 = vld [vmem:[%s2758 + $0x20] sm:$0xff]
        %v2764 = vld [vmem:[%s2758 + $0x28] sm:$0xff]
        %v2765 = vld [vmem:[%s2758 + $0x30] sm:$0xff]
        %v2766 = vld [vmem:[%s2758 + $0x38] sm:$0xff]
        %s2767 = scalar_lea.vmem %s2, 640
        %v2768 = vld [vmem:[%s2767] sm:$0xff]
        %v2769 = vld [vmem:[%s2767 + $0x8] sm:$0xff]
        %v2770 = vld [vmem:[%s2767 + $0x10] sm:$0xff]
        %v2771 = vld [vmem:[%s2767 + $0x18] sm:$0xff]
        %v2772 = vld [vmem:[%s2767 + $0x20] sm:$0xff]
        %v2773 = vld [vmem:[%s2767 + $0x28] sm:$0xff]
        %v2774 = vld [vmem:[%s2767 + $0x30] sm:$0xff]
        %v2775 = vld [vmem:[%s2767 + $0x38] sm:$0xff]
        %v2777 = vsel %vm222, %v2754, 0
        %v2780 = vsel %vm222, %v2755, 0
        %v2783 = vsel %vm222, %v2756, 0
        %v2786 = vsel %vm222, %v2757, 0
        %2788 = vmatprep.subr.mxu0 0.0
        %2789 = vmatpush1.msra.mxu0 %v2768
        %2790 = vmatprep.subr.mxu0 0.0
        %2791 = vmatpush1.msra.mxu0 %v2769
        %2792 = vmatprep.subr.mxu0 0.0
        %2793 = vmatpush1.msra.mxu0 %v2770
        %2794 = vmatprep.subr.mxu0 0.0
        %2795 = vmatpush1.msra.mxu0 %v2771
        %2796 = vmatprep.subr.mxu0 0.0
        %2797 = vmatpush1.msra.mxu0 %v2772
        %2798 = vmatprep.subr.mxu0 0.0
        %2799 = vmatpush1.msra.mxu0 %v2773
        %2800 = vmatprep.subr.mxu0 0.0
        %2801 = vmatpush1.msra.mxu0 %v2774
        %2802 = vmatprep.subr.mxu0 0.0
        %2803 = vmatpush1.msra.mxu0 %v2775
        %2804 = vmatprep.subr.mxu0 0.0
        %2805 = vmatpush1.msra.mxu0 0.0
        %2806 = vmatprep.subr.mxu0 0.0
        %2807 = vmatpush1.msra.mxu0 0.0
        %2808 = vmatprep.subr.mxu0 0.0
        %2809 = vmatpush1.msra.mxu0 0.0
        %2810 = vmatprep.subr.mxu0 0.0
        %2811 = vmatpush1.msra.mxu0 0.0
        %2812 = vmatprep.subr.mxu0 0.0
        %2813 = vmatpush1.msra.mxu0 0.0
        %2814 = vmatprep.subr.mxu0 0.0
        %2815 = vmatpush1.msra.mxu0 0.0
        %2816 = vmatprep.subr.mxu0 0.0
        %2817 = vmatpush1.msra.mxu0 0.0
        %2818 = vmatprep.subr.mxu0 0.0
        %2819 = vmatpush1.msra.mxu0 0.0
        %2820 = vmatprep.subr.mxu0 0.0
        %2821 = vmatpush1.msra.mxu0 0.0
        %2822 = vmatprep.subr.mxu0 0.0
        %2823 = vmatpush1.msra.mxu0 0.0
        %2824 = vmatprep.subr.mxu0 0.0
        %2825 = vmatpush1.msra.mxu0 0.0
        %2826 = vmatprep.subr.mxu0 0.0
        %2827 = vmatpush1.msra.mxu0 0.0
        %2828 = vmatprep.subr.mxu0 0.0
        %2829 = vmatpush1.msra.mxu0 0.0
        %2830 = vmatprep.subr.mxu0 0.0
        %2831 = vmatpush1.msra.mxu0 0.0
        %2832 = vmatprep.subr.mxu0 0.0
        %2833 = vmatpush1.msra.mxu0 0.0
        %2834 = vmatprep.subr.mxu0 0.0
        %2835 = vmatpush1.msra.mxu0 0.0
        %2836 = vmatprep.subr.mxu0 0.0
        %2837 = vmatpush1.msra.mxu0 0.0
        %2838 = vmatprep.subr.mxu0 0.0
        %2839 = vmatpush1.msra.mxu0 0.0
        %2840 = vmatprep.subr.mxu0 0.0
        %2841 = vmatpush1.msra.mxu0 0.0
        %2842 = vmatprep.subr.mxu0 0.0
        %2843 = vmatpush1.msra.mxu0 0.0
        %2844 = vmatprep.subr.mxu0 0.0
        %2845 = vmatpush1.msra.mxu0 0.0
        %2846 = vmatprep.subr.mxu0 0.0
        %2847 = vmatpush1.msra.mxu0 0.0
        %2848 = vmatprep.subr.mxu0 0.0
        %2849 = vmatpush1.msra.mxu0 0.0
        %2850 = vmatprep.subr.mxu0 0.0
        %2851 = vmatpush1.msra.mxu0 0.0
        %2852 = vmatprep.mubr.f32.mxu0 0.0
        %2853 = vmatmul.mubr.f32.gmra.mrb[0].mxu0 %v2777
        %v2854 = vpop.f32.mrb[0].mxu0
        %v2855 = vadd.f32 0.0, %v2854
        %v2856 = vpop.f32.mrb[0].mxu0
        %2857 = vmatprep.mubr.f32.mxu0 0.0
        %2858 = vmatmul.mubr.f32.gmra.mrb[0].mxu0 %v2780
        %v2859 = vpop.f32.mrb[0].mxu0
        %v2860 = vadd.f32 0.0, %v2859
        %v2861 = vpop.f32.mrb[0].mxu0
        %2862 = vmatprep.mubr.f32.mxu0 0.0
        %2863 = vmatmul.mubr.f32.gmra.mrb[0].mxu0 %v2783
        %v2864 = vpop.f32.mrb[0].mxu0
        %v2865 = vadd.f32 0.0, %v2864
        %v2866 = vpop.f32.mrb[0].mxu0
        %2867 = vmatprep.mubr.f32.mxu0 0.0
        %2868 = vmatmul.mubr.f32.gmra.mrb[0].mxu0 %v2786
        %v2869 = vpop.f32.mrb[0].mxu0
        %v2870 = vadd.f32 0.0, %v2869
        %v2871 = vpop.f32.mrb[0].mxu0
        %2872 = vdwg.mxu0
        %v2874 = vrot.slane %v2753, 7
        %v2875 = vrot.slane %v2754, 7
        %v2876 = vsel %vm1008, %v2874, %v2875
        %v2877 = vrot.slane %v2755, 7
        %v2878 = vsel %vm1008, %v2875, %v2877
        %v2879 = vrot.slane %v2756, 7
        %v2880 = vsel %vm1008, %v2877, %v2879
        %v2881 = vrot.slane %v2757, 7
        %v2882 = vsel %vm1008, %v2879, %v2881
        %v2883 = vsel %vm222, %v2876, 0
        %v2885 = vsel %vm222, %v2878, 0
        %v2887 = vsel %vm222, %v2880, 0
        %v2889 = vsel %vm222, %v2882, 0
        %2891 = vmatprep.subr.mxu0 0.0
        %2892 = vmatpush1.msra.mxu0 %v2759
        %2893 = vmatprep.subr.mxu0 0.0
        %2894 = vmatpush1.msra.mxu0 %v2760
        %2895 = vmatprep.subr.mxu0 0.0
        %2896 = vmatpush1.msra.mxu0 %v2761
        %2897 = vmatprep.subr.mxu0 0.0
        %2898 = vmatpush1.msra.mxu0 %v2762
        %2899 = vmatprep.subr.mxu0 0.0
        %2900 = vmatpush1.msra.mxu0 %v2763
        %2901 = vmatprep.subr.mxu0 0.0
        %2902 = vmatpush1.msra.mxu0 %v2764
        %2903 = vmatprep.subr.mxu0 0.0
        %2904 = vmatpush1.msra.mxu0 %v2765
        %2905 = vmatprep.subr.mxu0 0.0
        %2906 = vmatpush1.msra.mxu0 %v2766
        %2907 = vmatprep.subr.mxu0 0.0
        %2908 = vmatpush1.msra.mxu0 0.0
        %2909 = vmatprep.subr.mxu0 0.0
        %2910 = vmatpush1.msra.mxu0 0.0
        %2911 = vmatprep.subr.mxu0 0.0
        %2912 = vmatpush1.msra.mxu0 0.0
        %2913 = vmatprep.subr.mxu0 0.0
        %2914 = vmatpush1.msra.mxu0 0.0
        %2915 = vmatprep.subr.mxu0 0.0
        %2916 = vmatpush1.msra.mxu0 0.0
        %2917 = vmatprep.subr.mxu0 0.0
        %2918 = vmatpush1.msra.mxu0 0.0
        %2919 = vmatprep.subr.mxu0 0.0
        %2920 = vmatpush1.msra.mxu0 0.0
        %2921 = vmatprep.subr.mxu0 0.0
        %2922 = vmatpush1.msra.mxu0 0.0
        %2923 = vmatprep.subr.mxu0 0.0
        %2924 = vmatpush1.msra.mxu0 0.0
        %2925 = vmatprep.subr.mxu0 0.0
        %2926 = vmatpush1.msra.mxu0 0.0
        %2927 = vmatprep.subr.mxu0 0.0
        %2928 = vmatpush1.msra.mxu0 0.0
        %2929 = vmatprep.subr.mxu0 0.0
        %2930 = vmatpush1.msra.mxu0 0.0
        %2931 = vmatprep.subr.mxu0 0.0
        %2932 = vmatpush1.msra.mxu0 0.0
        %2933 = vmatprep.subr.mxu0 0.0
        %2934 = vmatpush1.msra.mxu0 0.0
        %2935 = vmatprep.subr.mxu0 0.0
        %2936 = vmatpush1.msra.mxu0 0.0
        %2937 = vmatprep.subr.mxu0 0.0
        %2938 = vmatpush1.msra.mxu0 0.0
        %2939 = vmatprep.subr.mxu0 0.0
        %2940 = vmatpush1.msra.mxu0 0.0
        %2941 = vmatprep.subr.mxu0 0.0
        %2942 = vmatpush1.msra.mxu0 0.0
        %2943 = vmatprep.subr.mxu0 0.0
        %2944 = vmatpush1.msra.mxu0 0.0
        %2945 = vmatprep.subr.mxu0 0.0
        %2946 = vmatpush1.msra.mxu0 0.0
        %2947 = vmatprep.subr.mxu0 0.0
        %2948 = vmatpush1.msra.mxu0 0.0
        %2949 = vmatprep.subr.mxu0 0.0
        %2950 = vmatpush1.msra.mxu0 0.0
        %2951 = vmatprep.subr.mxu0 0.0
        %2952 = vmatpush1.msra.mxu0 0.0
        %2953 = vmatprep.subr.mxu0 0.0
        %2954 = vmatpush1.msra.mxu0 0.0
        %2955 = vmatprep.mubr.f32.mxu0 0.0
        %2956 = vmatmul.mubr.f32.gmra.mrb[0].mxu0 %v2883
        %v2957 = vpop.f32.mrb[0].mxu0
        %v2958 = vadd.f32 %v2855, %v2957
        %v2959 = vpop.f32.mrb[0].mxu0
        %2960 = vmatprep.mubr.f32.mxu0 0.0
        %2961 = vmatmul.mubr.f32.gmra.mrb[0].mxu0 %v2885
        %v2962 = vpop.f32.mrb[0].mxu0
        %v2963 = vadd.f32 %v2860, %v2962
        %v2964 = vpop.f32.mrb[0].mxu0
        %2965 = vmatprep.mubr.f32.mxu0 0.0
        %2966 = vmatmul.mubr.f32.gmra.mrb[0].mxu0 %v2887
        %v2967 = vpop.f32.mrb[0].mxu0
        %v2968 = vadd.f32 %v2865, %v2967
        %v2969 = vpop.f32.mrb[0].mxu0
        %2970 = vmatprep.mubr.f32.mxu0 0.0
        %2971 = vmatmul.mubr.f32.gmra.mrb[0].mxu0 %v2889
        %v2972 = vpop.f32.mrb[0].mxu0
        %v2973 = vadd.f32 %v2870, %v2972
        %v2974 = vpop.f32.mrb[0].mxu0
        %2975 = vdwg.mxu0
        %s2976 = scalar_lea.vmem %s2, 704
        %v2977 = vld [vmem:[%s2976] sm:$0xff]
        %v2978 = vld [vmem:[%s2976 + $0x8] sm:$0xff]
        %v2979 = vld [vmem:[%s2976 + $0x10] sm:$0xff]
        %v2980 = vld [vmem:[%s2976 + $0x18] sm:$0xff]
        %v2981 = vld [vmem:[%s2976 + $0x20] sm:$0xff]
        %v2982 = vld [vmem:[%s2976 + $0x28] sm:$0xff]
        %v2983 = vld [vmem:[%s2976 + $0x30] sm:$0xff]
        %v2984 = vld [vmem:[%s2976 + $0x38] sm:$0xff]
        %v2985 = vrot.slane %v2754, 1
        %v2986 = vrot.slane %v2755, 1
        %v2987 = vsel %vm1213, %v2985, %v2986
        %v2988 = vrot.slane %v2756, 1
        %v2989 = vsel %vm1213, %v2986, %v2988
        %v2990 = vrot.slane %v2757, 1
        %v2991 = vsel %vm1213, %v2988, %v2990
        %v2992 = vsel %vm222, %v2987, 0
        %v2994 = vsel %vm222, %v2989, 0
        %v2996 = vsel %vm222, %v2991, 0
        %v2998 = vsel %vm222, %v2990, 0
        %3000 = vmatprep.subr.mxu0 0.0
        %3001 = vmatpush1.msra.mxu0 %v2977
        %3002 = vmatprep.subr.mxu0 0.0
        %3003 = vmatpush1.msra.mxu0 %v2978
        %3004 = vmatprep.subr.mxu0 0.0
        %3005 = vmatpush1.msra.mxu0 %v2979
        %3006 = vmatprep.subr.mxu0 0.0
        %3007 = vmatpush1.msra.mxu0 %v2980
        %3008 = vmatprep.subr.mxu0 0.0
        %3009 = vmatpush1.msra.mxu0 %v2981
        %3010 = vmatprep.subr.mxu0 0.0
        %3011 = vmatpush1.msra.mxu0 %v2982
        %3012 = vmatprep.subr.mxu0 0.0
        %3013 = vmatpush1.msra.mxu0 %v2983
        %3014 = vmatprep.subr.mxu0 0.0
        %3015 = vmatpush1.msra.mxu0 %v2984
        %3016 = vmatprep.subr.mxu0 0.0
        %3017 = vmatpush1.msra.mxu0 0.0
        %3018 = vmatprep.subr.mxu0 0.0
        %3019 = vmatpush1.msra.mxu0 0.0
        %3020 = vmatprep.subr.mxu0 0.0
        %3021 = vmatpush1.msra.mxu0 0.0
        %3022 = vmatprep.subr.mxu0 0.0
        %3023 = vmatpush1.msra.mxu0 0.0
        %3024 = vmatprep.subr.mxu0 0.0
        %3025 = vmatpush1.msra.mxu0 0.0
        %3026 = vmatprep.subr.mxu0 0.0
        %3027 = vmatpush1.msra.mxu0 0.0
        %3028 = vmatprep.subr.mxu0 0.0
        %3029 = vmatpush1.msra.mxu0 0.0
        %3030 = vmatprep.subr.mxu0 0.0
        %3031 = vmatpush1.msra.mxu0 0.0
        %3032 = vmatprep.subr.mxu0 0.0
        %3033 = vmatpush1.msra.mxu0 0.0
        %3034 = vmatprep.subr.mxu0 0.0
        %3035 = vmatpush1.msra.mxu0 0.0
        %3036 = vmatprep.subr.mxu0 0.0
        %3037 = vmatpush1.msra.mxu0 0.0
        %3038 = vmatprep.subr.mxu0 0.0
        %3039 = vmatpush1.msra.mxu0 0.0
        %3040 = vmatprep.subr.mxu0 0.0
        %3041 = vmatpush1.msra.mxu0 0.0
        %3042 = vmatprep.subr.mxu0 0.0
        %3043 = vmatpush1.msra.mxu0 0.0
        %3044 = vmatprep.subr.mxu0 0.0
        %3045 = vmatpush1.msra.mxu0 0.0
        %3046 = vmatprep.subr.mxu0 0.0
        %3047 = vmatpush1.msra.mxu0 0.0
        %3048 = vmatprep.subr.mxu0 0.0
        %3049 = vmatpush1.msra.mxu0 0.0
        %3050 = vmatprep.subr.mxu0 0.0
        %3051 = vmatpush1.msra.mxu0 0.0
        %3052 = vmatprep.subr.mxu0 0.0
        %3053 = vmatpush1.msra.mxu0 0.0
        %3054 = vmatprep.subr.mxu0 0.0
        %3055 = vmatpush1.msra.mxu0 0.0
        %3056 = vmatprep.subr.mxu0 0.0
        %3057 = vmatpush1.msra.mxu0 0.0
        %3058 = vmatprep.subr.mxu0 0.0
        %3059 = vmatpush1.msra.mxu0 0.0
        %3060 = vmatprep.subr.mxu0 0.0
        %3061 = vmatpush1.msra.mxu0 0.0
        %3062 = vmatprep.subr.mxu0 0.0
        %3063 = vmatpush1.msra.mxu0 0.0
        %3064 = vmatprep.mubr.f32.mxu0 0.0
        %3065 = vmatmul.mubr.f32.gmra.mrb[0].mxu0 %v2992
        %v3066 = vpop.f32.mrb[0].mxu0
        %v3067 = vadd.f32 0.0, %v3066
        %v3068 = vpop.f32.mrb[0].mxu0
        %3069 = vmatprep.mubr.f32.mxu0 0.0
        %3070 = vmatmul.mubr.f32.gmra.mrb[0].mxu0 %v2994
        %v3071 = vpop.f32.mrb[0].mxu0
        %v3072 = vadd.f32 0.0, %v3071
        %v3073 = vpop.f32.mrb[0].mxu0
        %3074 = vmatprep.mubr.f32.mxu0 0.0
        %3075 = vmatmul.mubr.f32.gmra.mrb[0].mxu0 %v2996
        %v3076 = vpop.f32.mrb[0].mxu0
        %v3077 = vadd.f32 0.0, %v3076
        %v3078 = vpop.f32.mrb[0].mxu0
        %3079 = vmatprep.mubr.f32.mxu0 0.0
        %3080 = vmatmul.mubr.f32.gmra.mrb[0].mxu0 %v2998
        %v3081 = vpop.f32.mrb[0].mxu0
        %v3082 = vadd.f32 0.0, %v3081
        %v3083 = vpop.f32.mrb[0].mxu0
        %3084 = vdwg.mxu0
        %v3085 = vadd.f32 %v2958, %v3067
        %v3086 = vadd.f32 %v2963, %v3072
        %v3087 = vadd.f32 %v2968, %v3077
        %v3088 = vadd.f32 %v2973, %v3082
        %v3089 = vld [vmem:[#allocation4 + $0x8] sm:$0xff]
        %v3090 = vld [vmem:[#allocation4 + $0x10] sm:$0xff]
        %v3091 = vld [vmem:[#allocation4 + $0x18] sm:$0xff]
        %v3092 = vld [vmem:[#allocation4 + $0x20] sm:$0xff]
        %v3093 = vld [vmem:[#allocation4 + $0x28] sm:$0xff]
        %s3094 = scalar_lea.vmem %s2, 768
        %v3095 = vld [vmem:[%s3094] sm:$0xff]
        %v3096 = vld [vmem:[%s3094 + $0x8] sm:$0xff]
        %v3097 = vld [vmem:[%s3094 + $0x10] sm:$0xff]
        %v3098 = vld [vmem:[%s3094 + $0x18] sm:$0xff]
        %v3099 = vld [vmem:[%s3094 + $0x20] sm:$0xff]
        %v3100 = vld [vmem:[%s3094 + $0x28] sm:$0xff]
        %v3101 = vld [vmem:[%s3094 + $0x30] sm:$0xff]
        %v3102 = vld [vmem:[%s3094 + $0x38] sm:$0xff]
        %v3108 = vrot.slane %v3089, 7
        %v3109 = vrot.slane %v3090, 7
        %v3110 = vsel %vm1008, %v3108, %v3109
        %v3111 = vrot.slane %v3091, 7
        %v3112 = vsel %vm1008, %v3109, %v3111
        %v3113 = vrot.slane %v3092, 7
        %v3114 = vsel %vm1008, %v3111, %v3113
        %v3115 = vrot.slane %v3093, 7
        %v3116 = vsel %vm1008, %v3113, %v3115
        %v3117 = vsel %vm222, %v3110, 0
        %v3119 = vsel %vm222, %v3112, 0
        %v3121 = vsel %vm222, %v3114, 0
        %v3123 = vsel %vm222, %v3116, 0
        %3125 = vmatprep.subr.mxu0 0.0
        %3126 = vmatpush1.msra.mxu0 %v3095
        %3127 = vmatprep.subr.mxu0 0.0
        %3128 = vmatpush1.msra.mxu0 %v3096
        %3129 = vmatprep.subr.mxu0 0.0
        %3130 = vmatpush1.msra.mxu0 %v3097
        %3131 = vmatprep.subr.mxu0 0.0
        %3132 = vmatpush1.msra.mxu0 %v3098
        %3133 = vmatprep.subr.mxu0 0.0
        %3134 = vmatpush1.msra.mxu0 %v3099
        %3135 = vmatprep.subr.mxu0 0.0
        %3136 = vmatpush1.msra.mxu0 %v3100
        %3137 = vmatprep.subr.mxu0 0.0
        %3138 = vmatpush1.msra.mxu0 %v3101
        %3139 = vmatprep.subr.mxu0 0.0
        %3140 = vmatpush1.msra.mxu0 %v3102
        %3141 = vmatprep.subr.mxu0 0.0
        %3142 = vmatpush1.msra.mxu0 0.0
        %3143 = vmatprep.subr.mxu0 0.0
        %3144 = vmatpush1.msra.mxu0 0.0
        %3145 = vmatprep.subr.mxu0 0.0
        %3146 = vmatpush1.msra.mxu0 0.0
        %3147 = vmatprep.subr.mxu0 0.0
        %3148 = vmatpush1.msra.mxu0 0.0
        %3149 = vmatprep.subr.mxu0 0.0
        %3150 = vmatpush1.msra.mxu0 0.0
        %3151 = vmatprep.subr.mxu0 0.0
        %3152 = vmatpush1.msra.mxu0 0.0
        %3153 = vmatprep.subr.mxu0 0.0
        %3154 = vmatpush1.msra.mxu0 0.0
        %3155 = vmatprep.subr.mxu0 0.0
        %3156 = vmatpush1.msra.mxu0 0.0
        %3157 = vmatprep.subr.mxu0 0.0
        %3158 = vmatpush1.msra.mxu0 0.0
        %3159 = vmatprep.subr.mxu0 0.0
        %3160 = vmatpush1.msra.mxu0 0.0
        %3161 = vmatprep.subr.mxu0 0.0
        %3162 = vmatpush1.msra.mxu0 0.0
        %3163 = vmatprep.subr.mxu0 0.0
        %3164 = vmatpush1.msra.mxu0 0.0
        %3165 = vmatprep.subr.mxu0 0.0
        %3166 = vmatpush1.msra.mxu0 0.0
        %3167 = vmatprep.subr.mxu0 0.0
        %3168 = vmatpush1.msra.mxu0 0.0
        %3169 = vmatprep.subr.mxu0 0.0
        %3170 = vmatpush1.msra.mxu0 0.0
        %3171 = vmatprep.subr.mxu0 0.0
        %3172 = vmatpush1.msra.mxu0 0.0
        %3173 = vmatprep.subr.mxu0 0.0
        %3174 = vmatpush1.msra.mxu0 0.0
        %3175 = vmatprep.subr.mxu0 0.0
        %3176 = vmatpush1.msra.mxu0 0.0
        %3177 = vmatprep.subr.mxu0 0.0
        %3178 = vmatpush1.msra.mxu0 0.0
        %3179 = vmatprep.subr.mxu0 0.0
        %3180 = vmatpush1.msra.mxu0 0.0
        %3181 = vmatprep.subr.mxu0 0.0
        %3182 = vmatpush1.msra.mxu0 0.0
        %3183 = vmatprep.subr.mxu0 0.0
        %3184 = vmatpush1.msra.mxu0 0.0
        %3185 = vmatprep.subr.mxu0 0.0
        %3186 = vmatpush1.msra.mxu0 0.0
        %3187 = vmatprep.subr.mxu0 0.0
        %3188 = vmatpush1.msra.mxu0 0.0
        %3189 = vmatprep.mubr.f32.mxu0 0.0
        %3190 = vmatmul.mubr.f32.gmra.mrb[0].mxu0 %v3117
        %v3191 = vpop.f32.mrb[0].mxu0
        %v3192 = vadd.f32 0.0, %v3191
        %v3193 = vpop.f32.mrb[0].mxu0
        %3194 = vmatprep.mubr.f32.mxu0 0.0
        %3195 = vmatmul.mubr.f32.gmra.mrb[0].mxu0 %v3119
        %v3196 = vpop.f32.mrb[0].mxu0
        %v3197 = vadd.f32 0.0, %v3196
        %v3198 = vpop.f32.mrb[0].mxu0
        %3199 = vmatprep.mubr.f32.mxu0 0.0
        %3200 = vmatmul.mubr.f32.gmra.mrb[0].mxu0 %v3121
        %v3201 = vpop.f32.mrb[0].mxu0
        %v3202 = vadd.f32 0.0, %v3201
        %v3203 = vpop.f32.mrb[0].mxu0
        %3204 = vmatprep.mubr.f32.mxu0 0.0
        %3205 = vmatmul.mubr.f32.gmra.mrb[0].mxu0 %v3123
        %v3206 = vpop.f32.mrb[0].mxu0
        %v3207 = vadd.f32 0.0, %v3206
        %v3208 = vpop.f32.mrb[0].mxu0
        %3209 = vdwg.mxu0
        %v3210 = vadd.f32 %v3085, %v3192
        %v3211 = vadd.f32 %v3086, %v3197
        %v3212 = vadd.f32 %v3087, %v3202
        %v3213 = vadd.f32 %v3088, %v3207
        %s3214 = scalar_lea.vmem %s2, 832
        %v3215 = vld [vmem:[%s3214] sm:$0xff]
        %v3216 = vld [vmem:[%s3214 + $0x8] sm:$0xff]
        %v3217 = vld [vmem:[%s3214 + $0x10] sm:$0xff]
        %v3218 = vld [vmem:[%s3214 + $0x18] sm:$0xff]
        %v3219 = vld [vmem:[%s3214 + $0x20] sm:$0xff]
        %v3220 = vld [vmem:[%s3214 + $0x28] sm:$0xff]
        %v3221 = vld [vmem:[%s3214 + $0x30] sm:$0xff]
        %v3222 = vld [vmem:[%s3214 + $0x38] sm:$0xff]
        %v3223 = vsel %vm222, %v3090, 0
        %v3225 = vsel %vm222, %v3091, 0
        %v3227 = vsel %vm222, %v3092, 0
        %v3229 = vsel %vm222, %v3093, 0
        %3231 = vmatprep.subr.mxu0 0.0
        %3232 = vmatpush1.msra.mxu0 %v3215
        %3233 = vmatprep.subr.mxu0 0.0
        %3234 = vmatpush1.msra.mxu0 %v3216
        %3235 = vmatprep.subr.mxu0 0.0
        %3236 = vmatpush1.msra.mxu0 %v3217
        %3237 = vmatprep.subr.mxu0 0.0
        %3238 = vmatpush1.msra.mxu0 %v3218
        %3239 = vmatprep.subr.mxu0 0.0
        %3240 = vmatpush1.msra.mxu0 %v3219
        %3241 = vmatprep.subr.mxu0 0.0
        %3242 = vmatpush1.msra.mxu0 %v3220
        %3243 = vmatprep.subr.mxu0 0.0
        %3244 = vmatpush1.msra.mxu0 %v3221
        %3245 = vmatprep.subr.mxu0 0.0
        %3246 = vmatpush1.msra.mxu0 %v3222
        %3247 = vmatprep.subr.mxu0 0.0
        %3248 = vmatpush1.msra.mxu0 0.0
        %3249 = vmatprep.subr.mxu0 0.0
        %3250 = vmatpush1.msra.mxu0 0.0
        %3251 = vmatprep.subr.mxu0 0.0
        %3252 = vmatpush1.msra.mxu0 0.0
        %3253 = vmatprep.subr.mxu0 0.0
        %3254 = vmatpush1.msra.mxu0 0.0
        %3255 = vmatprep.subr.mxu0 0.0
        %3256 = vmatpush1.msra.mxu0 0.0
        %3257 = vmatprep.subr.mxu0 0.0
        %3258 = vmatpush1.msra.mxu0 0.0
        %3259 = vmatprep.subr.mxu0 0.0
        %3260 = vmatpush1.msra.mxu0 0.0
        %3261 = vmatprep.subr.mxu0 0.0
        %3262 = vmatpush1.msra.mxu0 0.0
        %3263 = vmatprep.subr.mxu0 0.0
        %3264 = vmatpush1.msra.mxu0 0.0
        %3265 = vmatprep.subr.mxu0 0.0
        %3266 = vmatpush1.msra.mxu0 0.0
        %3267 = vmatprep.subr.mxu0 0.0
        %3268 = vmatpush1.msra.mxu0 0.0
        %3269 = vmatprep.subr.mxu0 0.0
        %3270 = vmatpush1.msra.mxu0 0.0
        %3271 = vmatprep.subr.mxu0 0.0
        %3272 = vmatpush1.msra.mxu0 0.0
        %3273 = vmatprep.subr.mxu0 0.0
        %3274 = vmatpush1.msra.mxu0 0.0
        %3275 = vmatprep.subr.mxu0 0.0
        %3276 = vmatpush1.msra.mxu0 0.0
        %3277 = vmatprep.subr.mxu0 0.0
        %3278 = vmatpush1.msra.mxu0 0.0
        %3279 = vmatprep.subr.mxu0 0.0
        %3280 = vmatpush1.msra.mxu0 0.0
        %3281 = vmatprep.subr.mxu0 0.0
        %3282 = vmatpush1.msra.mxu0 0.0
        %3283 = vmatprep.subr.mxu0 0.0
        %3284 = vmatpush1.msra.mxu0 0.0
        %3285 = vmatprep.subr.mxu0 0.0
        %3286 = vmatpush1.msra.mxu0 0.0
        %3287 = vmatprep.subr.mxu0 0.0
        %3288 = vmatpush1.msra.mxu0 0.0
        %3289 = vmatprep.subr.mxu0 0.0
        %3290 = vmatpush1.msra.mxu0 0.0
        %3291 = vmatprep.subr.mxu0 0.0
        %3292 = vmatpush1.msra.mxu0 0.0
        %3293 = vmatprep.subr.mxu0 0.0
        %3294 = vmatpush1.msra.mxu0 0.0
        %3295 = vmatprep.mubr.f32.mxu0 0.0
        %3296 = vmatmul.mubr.f32.gmra.mrb[0].mxu0 %v3223
        %v3297 = vpop.f32.mrb[0].mxu0
        %v3298 = vadd.f32 0.0, %v3297
        %v3299 = vpop.f32.mrb[0].mxu0
        %3300 = vmatprep.mubr.f32.mxu0 0.0
        %3301 = vmatmul.mubr.f32.gmra.mrb[0].mxu0 %v3225
        %v3302 = vpop.f32.mrb[0].mxu0
        %v3303 = vadd.f32 0.0, %v3302
        %v3304 = vpop.f32.mrb[0].mxu0
        %3305 = vmatprep.mubr.f32.mxu0 0.0
        %3306 = vmatmul.mubr.f32.gmra.mrb[0].mxu0 %v3227
        %v3307 = vpop.f32.mrb[0].mxu0
        %v3308 = vadd.f32 0.0, %v3307
        %v3309 = vpop.f32.mrb[0].mxu0
        %3310 = vmatprep.mubr.f32.mxu0 0.0
        %3311 = vmatmul.mubr.f32.gmra.mrb[0].mxu0 %v3229
        %v3312 = vpop.f32.mrb[0].mxu0
        %v3313 = vadd.f32 0.0, %v3312
        %v3314 = vpop.f32.mrb[0].mxu0
        %3315 = vdwg.mxu0
        %v3316 = vadd.f32 %v3210, %v3298
        %v3317 = vadd.f32 %v3211, %v3303
        %v3318 = vadd.f32 %v3212, %v3308
        %v3319 = vadd.f32 %v3213, %v3313
        %s3320 = scalar_lea.vmem %s2, 896
        %v3321 = vld [vmem:[%s3320] sm:$0xff]
        %v3322 = vld [vmem:[%s3320 + $0x8] sm:$0xff]
        %v3323 = vld [vmem:[%s3320 + $0x10] sm:$0xff]
        %v3324 = vld [vmem:[%s3320 + $0x18] sm:$0xff]
        %v3325 = vld [vmem:[%s3320 + $0x20] sm:$0xff]
        %v3326 = vld [vmem:[%s3320 + $0x28] sm:$0xff]
        %v3327 = vld [vmem:[%s3320 + $0x30] sm:$0xff]
        %v3328 = vld [vmem:[%s3320 + $0x38] sm:$0xff]
        %v3329 = vrot.slane %v3090, 1
        %v3330 = vrot.slane %v3091, 1
        %v3331 = vsel %vm1213, %v3329, %v3330
        %v3332 = vrot.slane %v3092, 1
        %v3333 = vsel %vm1213, %v3330, %v3332
        %v3334 = vrot.slane %v3093, 1
        %v3335 = vsel %vm1213, %v3332, %v3334
        %v3336 = vsel %vm222, %v3331, 0
        %v3338 = vsel %vm222, %v3333, 0
        %v3340 = vsel %vm222, %v3335, 0
        %v3342 = vsel %vm222, %v3334, 0
        %3344 = vmatprep.subr.mxu0 0.0
        %3345 = vmatpush1.msra.mxu0 %v3321
        %3346 = vmatprep.subr.mxu0 0.0
        %3347 = vmatpush1.msra.mxu0 %v3322
        %3348 = vmatprep.subr.mxu0 0.0
        %3349 = vmatpush1.msra.mxu0 %v3323
        %3350 = vmatprep.subr.mxu0 0.0
        %3351 = vmatpush1.msra.mxu0 %v3324
        %3352 = vmatprep.subr.mxu0 0.0
        %3353 = vmatpush1.msra.mxu0 %v3325
        %3354 = vmatprep.subr.mxu0 0.0
        %3355 = vmatpush1.msra.mxu0 %v3326
        %3356 = vmatprep.subr.mxu0 0.0
        %3357 = vmatpush1.msra.mxu0 %v3327
        %3358 = vmatprep.subr.mxu0 0.0
        %3359 = vmatpush1.msra.mxu0 %v3328
        %3360 = vmatprep.subr.mxu0 0.0
        %3361 = vmatpush1.msra.mxu0 0.0
        %3362 = vmatprep.subr.mxu0 0.0
        %3363 = vmatpush1.msra.mxu0 0.0
        %3364 = vmatprep.subr.mxu0 0.0
        %3365 = vmatpush1.msra.mxu0 0.0
        %3366 = vmatprep.subr.mxu0 0.0
        %3367 = vmatpush1.msra.mxu0 0.0
        %3368 = vmatprep.subr.mxu0 0.0
        %3369 = vmatpush1.msra.mxu0 0.0
        %3370 = vmatprep.subr.mxu0 0.0
        %3371 = vmatpush1.msra.mxu0 0.0
        %3372 = vmatprep.subr.mxu0 0.0
        %3373 = vmatpush1.msra.mxu0 0.0
        %3374 = vmatprep.subr.mxu0 0.0
        %3375 = vmatpush1.msra.mxu0 0.0
        %3376 = vmatprep.subr.mxu0 0.0
        %3377 = vmatpush1.msra.mxu0 0.0
        %3378 = vmatprep.subr.mxu0 0.0
        %3379 = vmatpush1.msra.mxu0 0.0
        %3380 = vmatprep.subr.mxu0 0.0
        %3381 = vmatpush1.msra.mxu0 0.0
        %3382 = vmatprep.subr.mxu0 0.0
        %3383 = vmatpush1.msra.mxu0 0.0
        %3384 = vmatprep.subr.mxu0 0.0
        %3385 = vmatpush1.msra.mxu0 0.0
        %3386 = vmatprep.subr.mxu0 0.0
        %3387 = vmatpush1.msra.mxu0 0.0
        %3388 = vmatprep.subr.mxu0 0.0
        %3389 = vmatpush1.msra.mxu0 0.0
        %3390 = vmatprep.subr.mxu0 0.0
        %3391 = vmatpush1.msra.mxu0 0.0
        %3392 = vmatprep.subr.mxu0 0.0
        %3393 = vmatpush1.msra.mxu0 0.0
        %3394 = vmatprep.subr.mxu0 0.0
        %3395 = vmatpush1.msra.mxu0 0.0
        %3396 = vmatprep.subr.mxu0 0.0
        %3397 = vmatpush1.msra.mxu0 0.0
        %3398 = vmatprep.subr.mxu0 0.0
        %3399 = vmatpush1.msra.mxu0 0.0
        %3400 = vmatprep.subr.mxu0 0.0
        %3401 = vmatpush1.msra.mxu0 0.0
        %3402 = vmatprep.subr.mxu0 0.0
        %3403 = vmatpush1.msra.mxu0 0.0
        %3404 = vmatprep.subr.mxu0 0.0
        %3405 = vmatpush1.msra.mxu0 0.0
        %3406 = vmatprep.subr.mxu0 0.0
        %3407 = vmatpush1.msra.mxu0 0.0
        %3408 = vmatprep.mubr.f32.mxu0 0.0
        %3409 = vmatmul.mubr.f32.gmra.mrb[0].mxu0 %v3336
        %v3410 = vpop.f32.mrb[0].mxu0
        %v3411 = vadd.f32 0.0, %v3410
        %v3412 = vpop.f32.mrb[0].mxu0
        %3413 = vmatprep.mubr.f32.mxu0 0.0
        %3414 = vmatmul.mubr.f32.gmra.mrb[0].mxu0 %v3338
        %v3415 = vpop.f32.mrb[0].mxu0
        %v3416 = vadd.f32 0.0, %v3415
        %v3417 = vpop.f32.mrb[0].mxu0
        %3418 = vmatprep.mubr.f32.mxu0 0.0
        %3419 = vmatmul.mubr.f32.gmra.mrb[0].mxu0 %v3340
        %v3420 = vpop.f32.mrb[0].mxu0
        %v3421 = vadd.f32 0.0, %v3420
        %v3422 = vpop.f32.mrb[0].mxu0
        %3423 = vmatprep.mubr.f32.mxu0 0.0
        %3424 = vmatmul.mubr.f32.gmra.mrb[0].mxu0 %v3342
        %v3425 = vpop.f32.mrb[0].mxu0
        %v3426 = vadd.f32 0.0, %v3425
        %v3427 = vpop.f32.mrb[0].mxu0
        %3428 = vdwg.mxu0
        %v3429 = vadd.f32 %v3316, %v3411
        %v3430 = vadd.f32 %v3317, %v3416
        %v3431 = vadd.f32 %v3318, %v3421
        %v3432 = vadd.f32 %v3319, %v3426
        %v3433 = vld [vmem:[#allocation4 + $0x10] sm:$0xff]
        %v3434 = vld [vmem:[#allocation4 + $0x18] sm:$0xff]
        %v3435 = vld [vmem:[#allocation4 + $0x20] sm:$0xff]
        %v3436 = vld [vmem:[#allocation4 + $0x28] sm:$0xff]
        %v3437 = vld [vmem:[#allocation4 + $0x30] sm:$0xff]
        %s3438 = scalar_lea.vmem %s2, 960
        %v3439 = vld [vmem:[%s3438] sm:$0xff]
        %v3440 = vld [vmem:[%s3438 + $0x8] sm:$0xff]
        %v3441 = vld [vmem:[%s3438 + $0x10] sm:$0xff]
        %v3442 = vld [vmem:[%s3438 + $0x18] sm:$0xff]
        %v3443 = vld [vmem:[%s3438 + $0x20] sm:$0xff]
        %v3444 = vld [vmem:[%s3438 + $0x28] sm:$0xff]
        %v3445 = vld [vmem:[%s3438 + $0x30] sm:$0xff]
        %v3446 = vld [vmem:[%s3438 + $0x38] sm:$0xff]
        %v3452 = vrot.slane %v3433, 7
        %v3453 = vrot.slane %v3434, 7
        %v3454 = vsel %vm1008, %v3452, %v3453
        %v3455 = vrot.slane %v3435, 7
        %v3456 = vsel %vm1008, %v3453, %v3455
        %v3457 = vrot.slane %v3436, 7
        %v3458 = vsel %vm1008, %v3455, %v3457
        %v3459 = vrot.slane %v3437, 7
        %v3460 = vsel %vm1008, %v3457, %v3459
        %v3461 = vsel %vm222, %v3454, 0
        %v3463 = vsel %vm222, %v3456, 0
        %v3465 = vsel %vm222, %v3458, 0
        %v3467 = vsel %vm222, %v3460, 0
        %3469 = vmatprep.subr.mxu0 0.0
        %3470 = vmatpush1.msra.mxu0 %v3439
        %3471 = vmatprep.subr.mxu0 0.0
        %3472 = vmatpush1.msra.mxu0 %v3440
        %3473 = vmatprep.subr.mxu0 0.0
        %3474 = vmatpush1.msra.mxu0 %v3441
        %3475 = vmatprep.subr.mxu0 0.0
        %3476 = vmatpush1.msra.mxu0 %v3442
        %3477 = vmatprep.subr.mxu0 0.0
        %3478 = vmatpush1.msra.mxu0 %v3443
        %3479 = vmatprep.subr.mxu0 0.0
        %3480 = vmatpush1.msra.mxu0 %v3444
        %3481 = vmatprep.subr.mxu0 0.0
        %3482 = vmatpush1.msra.mxu0 %v3445
        %3483 = vmatprep.subr.mxu0 0.0
        %3484 = vmatpush1.msra.mxu0 %v3446
        %3485 = vmatprep.subr.mxu0 0.0
        %3486 = vmatpush1.msra.mxu0 0.0
        %3487 = vmatprep.subr.mxu0 0.0
        %3488 = vmatpush1.msra.mxu0 0.0
        %3489 = vmatprep.subr.mxu0 0.0
        %3490 = vmatpush1.msra.mxu0 0.0
        %3491 = vmatprep.subr.mxu0 0.0
        %3492 = vmatpush1.msra.mxu0 0.0
        %3493 = vmatprep.subr.mxu0 0.0
        %3494 = vmatpush1.msra.mxu0 0.0
        %3495 = vmatprep.subr.mxu0 0.0
        %3496 = vmatpush1.msra.mxu0 0.0
        %3497 = vmatprep.subr.mxu0 0.0
        %3498 = vmatpush1.msra.mxu0 0.0
        %3499 = vmatprep.subr.mxu0 0.0
        %3500 = vmatpush1.msra.mxu0 0.0
        %3501 = vmatprep.subr.mxu0 0.0
        %3502 = vmatpush1.msra.mxu0 0.0
        %3503 = vmatprep.subr.mxu0 0.0
        %3504 = vmatpush1.msra.mxu0 0.0
        %3505 = vmatprep.subr.mxu0 0.0
        %3506 = vmatpush1.msra.mxu0 0.0
        %3507 = vmatprep.subr.mxu0 0.0
        %3508 = vmatpush1.msra.mxu0 0.0
        %3509 = vmatprep.subr.mxu0 0.0
        %3510 = vmatpush1.msra.mxu0 0.0
        %3511 = vmatprep.subr.mxu0 0.0
        %3512 = vmatpush1.msra.mxu0 0.0
        %3513 = vmatprep.subr.mxu0 0.0
        %3514 = vmatpush1.msra.mxu0 0.0
        %3515 = vmatprep.subr.mxu0 0.0
        %3516 = vmatpush1.msra.mxu0 0.0
        %3517 = vmatprep.subr.mxu0 0.0
        %3518 = vmatpush1.msra.mxu0 0.0
        %3519 = vmatprep.subr.mxu0 0.0
        %3520 = vmatpush1.msra.mxu0 0.0
        %3521 = vmatprep.subr.mxu0 0.0
        %3522 = vmatpush1.msra.mxu0 0.0
        %3523 = vmatprep.subr.mxu0 0.0
        %3524 = vmatpush1.msra.mxu0 0.0
        %3525 = vmatprep.subr.mxu0 0.0
        %3526 = vmatpush1.msra.mxu0 0.0
        %3527 = vmatprep.subr.mxu0 0.0
        %3528 = vmatpush1.msra.mxu0 0.0
        %3529 = vmatprep.subr.mxu0 0.0
        %3530 = vmatpush1.msra.mxu0 0.0
        %3531 = vmatprep.subr.mxu0 0.0
        %3532 = vmatpush1.msra.mxu0 0.0
        %3533 = vmatprep.mubr.f32.mxu0 0.0
        %3534 = vmatmul.mubr.f32.gmra.mrb[0].mxu0 %v3461
        %v3535 = vpop.f32.mrb[0].mxu0
        %v3536 = vadd.f32 0.0, %v3535
        %v3537 = vpop.f32.mrb[0].mxu0
        %3538 = vmatprep.mubr.f32.mxu0 0.0
        %3539 = vmatmul.mubr.f32.gmra.mrb[0].mxu0 %v3463
        %v3540 = vpop.f32.mrb[0].mxu0
        %v3541 = vadd.f32 0.0, %v3540
        %v3542 = vpop.f32.mrb[0].mxu0
        %3543 = vmatprep.mubr.f32.mxu0 0.0
        %3544 = vmatmul.mubr.f32.gmra.mrb[0].mxu0 %v3465
        %v3545 = vpop.f32.mrb[0].mxu0
        %v3546 = vadd.f32 0.0, %v3545
        %v3547 = vpop.f32.mrb[0].mxu0
        %3548 = vmatprep.mubr.f32.mxu0 0.0
        %3549 = vmatmul.mubr.f32.gmra.mrb[0].mxu0 %v3467
        %v3550 = vpop.f32.mrb[0].mxu0
        %v3551 = vadd.f32 0.0, %v3550
        %v3552 = vpop.f32.mrb[0].mxu0
        %3553 = vdwg.mxu0
        %v3554 = vadd.f32 %v3429, %v3536
        %v3555 = vadd.f32 %v3430, %v3541
        %v3556 = vadd.f32 %v3431, %v3546
        %v3557 = vadd.f32 %v3432, %v3551
        %s3558 = scalar_lea.vmem %s2, 1024
        %v3559 = vld [vmem:[%s3558] sm:$0xff]
        %v3560 = vld [vmem:[%s3558 + $0x8] sm:$0xff]
        %v3561 = vld [vmem:[%s3558 + $0x10] sm:$0xff]
        %v3562 = vld [vmem:[%s3558 + $0x18] sm:$0xff]
        %v3563 = vld [vmem:[%s3558 + $0x20] sm:$0xff]
        %v3564 = vld [vmem:[%s3558 + $0x28] sm:$0xff]
        %v3565 = vld [vmem:[%s3558 + $0x30] sm:$0xff]
        %v3566 = vld [vmem:[%s3558 + $0x38] sm:$0xff]
        %v3567 = vsel %vm222, %v3434, 0
        %v3569 = vsel %vm222, %v3435, 0
        %v3571 = vsel %vm222, %v3436, 0
        %v3573 = vsel %vm222, %v3437, 0
        %3575 = vmatprep.subr.mxu0 0.0
        %3576 = vmatpush1.msra.mxu0 %v3559
        %3577 = vmatprep.subr.mxu0 0.0
        %3578 = vmatpush1.msra.mxu0 %v3560
        %3579 = vmatprep.subr.mxu0 0.0
        %3580 = vmatpush1.msra.mxu0 %v3561
        %3581 = vmatprep.subr.mxu0 0.0
        %3582 = vmatpush1.msra.mxu0 %v3562
        %3583 = vmatprep.subr.mxu0 0.0
        %3584 = vmatpush1.msra.mxu0 %v3563
        %3585 = vmatprep.subr.mxu0 0.0
        %3586 = vmatpush1.msra.mxu0 %v3564
        %3587 = vmatprep.subr.mxu0 0.0
        %3588 = vmatpush1.msra.mxu0 %v3565
        %3589 = vmatprep.subr.mxu0 0.0
        %3590 = vmatpush1.msra.mxu0 %v3566
        %3591 = vmatprep.subr.mxu0 0.0
        %3592 = vmatpush1.msra.mxu0 0.0
        %3593 = vmatprep.subr.mxu0 0.0
        %3594 = vmatpush1.msra.mxu0 0.0
        %3595 = vmatprep.subr.mxu0 0.0
        %3596 = vmatpush1.msra.mxu0 0.0
        %3597 = vmatprep.subr.mxu0 0.0
        %3598 = vmatpush1.msra.mxu0 0.0
        %3599 = vmatprep.subr.mxu0 0.0
        %3600 = vmatpush1.msra.mxu0 0.0
        %3601 = vmatprep.subr.mxu0 0.0
        %3602 = vmatpush1.msra.mxu0 0.0
        %3603 = vmatprep.subr.mxu0 0.0
        %3604 = vmatpush1.msra.mxu0 0.0
        %3605 = vmatprep.subr.mxu0 0.0
        %3606 = vmatpush1.msra.mxu0 0.0
        %3607 = vmatprep.subr.mxu0 0.0
        %3608 = vmatpush1.msra.mxu0 0.0
        %3609 = vmatprep.subr.mxu0 0.0
        %3610 = vmatpush1.msra.mxu0 0.0
        %3611 = vmatprep.subr.mxu0 0.0
        %3612 = vmatpush1.msra.mxu0 0.0
        %3613 = vmatprep.subr.mxu0 0.0
        %3614 = vmatpush1.msra.mxu0 0.0
        %3615 = vmatprep.subr.mxu0 0.0
        %3616 = vmatpush1.msra.mxu0 0.0
        %3617 = vmatprep.subr.mxu0 0.0
        %3618 = vmatpush1.msra.mxu0 0.0
        %3619 = vmatprep.subr.mxu0 0.0
        %3620 = vmatpush1.msra.mxu0 0.0
        %3621 = vmatprep.subr.mxu0 0.0
        %3622 = vmatpush1.msra.mxu0 0.0
        %3623 = vmatprep.subr.mxu0 0.0
        %3624 = vmatpush1.msra.mxu0 0.0
        %3625 = vmatprep.subr.mxu0 0.0
        %3626 = vmatpush1.msra.mxu0 0.0
        %3627 = vmatprep.subr.mxu0 0.0
        %3628 = vmatpush1.msra.mxu0 0.0
        %3629 = vmatprep.subr.mxu0 0.0
        %3630 = vmatpush1.msra.mxu0 0.0
        %3631 = vmatprep.subr.mxu0 0.0
        %3632 = vmatpush1.msra.mxu0 0.0
        %3633 = vmatprep.subr.mxu0 0.0
        %3634 = vmatpush1.msra.mxu0 0.0
        %3635 = vmatprep.subr.mxu0 0.0
        %3636 = vmatpush1.msra.mxu0 0.0
        %3637 = vmatprep.subr.mxu0 0.0
        %3638 = vmatpush1.msra.mxu0 0.0
        %3639 = vmatprep.mubr.f32.mxu0 0.0
        %3640 = vmatmul.mubr.f32.gmra.mrb[0].mxu0 %v3567
        %v3641 = vpop.f32.mrb[0].mxu0
        %v3642 = vadd.f32 0.0, %v3641
        %v3643 = vpop.f32.mrb[0].mxu0
        %3644 = vmatprep.mubr.f32.mxu0 0.0
        %3645 = vmatmul.mubr.f32.gmra.mrb[0].mxu0 %v3569
        %v3646 = vpop.f32.mrb[0].mxu0
        %v3647 = vadd.f32 0.0, %v3646
        %v3648 = vpop.f32.mrb[0].mxu0
        %3649 = vmatprep.mubr.f32.mxu0 0.0
        %3650 = vmatmul.mubr.f32.gmra.mrb[0].mxu0 %v3571
        %v3651 = vpop.f32.mrb[0].mxu0
        %v3652 = vadd.f32 0.0, %v3651
        %v3653 = vpop.f32.mrb[0].mxu0
        %3654 = vmatprep.mubr.f32.mxu0 0.0
        %3655 = vmatmul.mubr.f32.gmra.mrb[0].mxu0 %v3573
        %v3656 = vpop.f32.mrb[0].mxu0
        %v3657 = vadd.f32 0.0, %v3656
        %v3658 = vpop.f32.mrb[0].mxu0
        %3659 = vdwg.mxu0
        %v3660 = vadd.f32 %v3554, %v3642
        %v3661 = vadd.f32 %v3555, %v3647
        %v3662 = vadd.f32 %v3556, %v3652
        %v3663 = vadd.f32 %v3557, %v3657
        %s3664 = scalar_lea.vmem %s2, 1088
        %v3665 = vld [vmem:[%s3664] sm:$0xff]
        %v3666 = vld [vmem:[%s3664 + $0x8] sm:$0xff]
        %v3667 = vld [vmem:[%s3664 + $0x10] sm:$0xff]
        %v3668 = vld [vmem:[%s3664 + $0x18] sm:$0xff]
        %v3669 = vld [vmem:[%s3664 + $0x20] sm:$0xff]
        %v3670 = vld [vmem:[%s3664 + $0x28] sm:$0xff]
        %v3671 = vld [vmem:[%s3664 + $0x30] sm:$0xff]
        %v3672 = vld [vmem:[%s3664 + $0x38] sm:$0xff]
        %v3673 = vrot.slane %v3434, 1
        %v3674 = vrot.slane %v3435, 1
        %v3675 = vsel %vm1213, %v3673, %v3674
        %v3676 = vrot.slane %v3436, 1
        %v3677 = vsel %vm1213, %v3674, %v3676
        %v3678 = vrot.slane %v3437, 1
        %v3679 = vsel %vm1213, %v3676, %v3678
        %v3680 = vsel %vm222, %v3675, 0
        %v3682 = vsel %vm222, %v3677, 0
        %v3684 = vsel %vm222, %v3679, 0
        %v3686 = vsel %vm222, %v3678, 0
        %3688 = vmatprep.subr.mxu0 0.0
        %3689 = vmatpush1.msra.mxu0 %v3665
        %3690 = vmatprep.subr.mxu0 0.0
        %3691 = vmatpush1.msra.mxu0 %v3666
        %3692 = vmatprep.subr.mxu0 0.0
        %3693 = vmatpush1.msra.mxu0 %v3667
        %3694 = vmatprep.subr.mxu0 0.0
        %3695 = vmatpush1.msra.mxu0 %v3668
        %3696 = vmatprep.subr.mxu0 0.0
        %3697 = vmatpush1.msra.mxu0 %v3669
        %3698 = vmatprep.subr.mxu0 0.0
        %3699 = vmatpush1.msra.mxu0 %v3670
        %3700 = vmatprep.subr.mxu0 0.0
        %3701 = vmatpush1.msra.mxu0 %v3671
        %3702 = vmatprep.subr.mxu0 0.0
        %3703 = vmatpush1.msra.mxu0 %v3672
        %3704 = vmatprep.subr.mxu0 0.0
        %3705 = vmatpush1.msra.mxu0 0.0
        %3706 = vmatprep.subr.mxu0 0.0
        %3707 = vmatpush1.msra.mxu0 0.0
        %3708 = vmatprep.subr.mxu0 0.0
        %3709 = vmatpush1.msra.mxu0 0.0
        %3710 = vmatprep.subr.mxu0 0.0
        %3711 = vmatpush1.msra.mxu0 0.0
        %3712 = vmatprep.subr.mxu0 0.0
        %3713 = vmatpush1.msra.mxu0 0.0
        %3714 = vmatprep.subr.mxu0 0.0
        %3715 = vmatpush1.msra.mxu0 0.0
        %3716 = vmatprep.subr.mxu0 0.0
        %3717 = vmatpush1.msra.mxu0 0.0
        %3718 = vmatprep.subr.mxu0 0.0
        %3719 = vmatpush1.msra.mxu0 0.0
        %3720 = vmatprep.subr.mxu0 0.0
        %3721 = vmatpush1.msra.mxu0 0.0
        %3722 = vmatprep.subr.mxu0 0.0
        %3723 = vmatpush1.msra.mxu0 0.0
        %3724 = vmatprep.subr.mxu0 0.0
        %3725 = vmatpush1.msra.mxu0 0.0
        %3726 = vmatprep.subr.mxu0 0.0
        %3727 = vmatpush1.msra.mxu0 0.0
        %3728 = vmatprep.subr.mxu0 0.0
        %3729 = vmatpush1.msra.mxu0 0.0
        %3730 = vmatprep.subr.mxu0 0.0
        %3731 = vmatpush1.msra.mxu0 0.0
        %3732 = vmatprep.subr.mxu0 0.0
        %3733 = vmatpush1.msra.mxu0 0.0
        %3734 = vmatprep.subr.mxu0 0.0
        %3735 = vmatpush1.msra.mxu0 0.0
        %3736 = vmatprep.subr.mxu0 0.0
        %3737 = vmatpush1.msra.mxu0 0.0
        %3738 = vmatprep.subr.mxu0 0.0
        %3739 = vmatpush1.msra.mxu0 0.0
        %3740 = vmatprep.subr.mxu0 0.0
        %3741 = vmatpush1.msra.mxu0 0.0
        %3742 = vmatprep.subr.mxu0 0.0
        %3743 = vmatpush1.msra.mxu0 0.0
        %3744 = vmatprep.subr.mxu0 0.0
        %3745 = vmatpush1.msra.mxu0 0.0
        %3746 = vmatprep.subr.mxu0 0.0
        %3747 = vmatpush1.msra.mxu0 0.0
        %3748 = vmatprep.subr.mxu0 0.0
        %3749 = vmatpush1.msra.mxu0 0.0
        %3750 = vmatprep.subr.mxu0 0.0
        %3751 = vmatpush1.msra.mxu0 0.0
        %3752 = vmatprep.mubr.f32.mxu0 0.0
        %3753 = vmatmul.mubr.f32.gmra.mrb[0].mxu0 %v3680
        %v3754 = vpop.f32.mrb[0].mxu0
        %v3755 = vadd.f32 0.0, %v3754
        %v3756 = vpop.f32.mrb[0].mxu0
        %3757 = vmatprep.mubr.f32.mxu0 0.0
        %3758 = vmatmul.mubr.f32.gmra.mrb[0].mxu0 %v3682
        %v3759 = vpop.f32.mrb[0].mxu0
        %v3760 = vadd.f32 0.0, %v3759
        %v3761 = vpop.f32.mrb[0].mxu0
        %3762 = vmatprep.mubr.f32.mxu0 0.0
        %3763 = vmatmul.mubr.f32.gmra.mrb[0].mxu0 %v3684
        %v3764 = vpop.f32.mrb[0].mxu0
        %v3765 = vadd.f32 0.0, %v3764
        %v3766 = vpop.f32.mrb[0].mxu0
        %3767 = vmatprep.mubr.f32.mxu0 0.0
        %3768 = vmatmul.mubr.f32.gmra.mrb[0].mxu0 %v3686
        %v3769 = vpop.f32.mrb[0].mxu0
        %v3770 = vadd.f32 0.0, %v3769
        %v3771 = vpop.f32.mrb[0].mxu0
        %3772 = vdwg.mxu0
        %v3773 = vadd.f32 %v3660, %v3755
        %v3774 = vadd.f32 %v3661, %v3760
        %v3775 = vadd.f32 %v3662, %v3765
        %v3776 = vadd.f32 %v3663, %v3770
        %v3778 = vlaneseq
        %v3779 = vshrl.u32 %v3778, 7
        %v3780 = vsub.s32 0, %v3779
        %v3781 = vrot.slane %v2750, %v3780
        %v3783 = vmul.f32 %v3773, %v3781
        %v3784 = vmul.f32 %v3774, %v3781
        %v3785 = vmul.f32 %v3775, %v3781
        %v3786 = vmul.f32 %v3776, %v3781
        %v3788 = vlaneseq
        %v3789 = vshrl.u32 %v3788, 7
        %v3790 = vsub.s32 0, %v3789
        %v3791 = vrot.slane %v2752, %v3790
        %v3793 = vadd.f32 %v3783, %v3791
        %v3794 = vadd.f32 %v3784, %v3791
        %v3795 = vadd.f32 %v3785, %v3791
        %v3796 = vadd.f32 %v3786, %v3791
        %v3797 = vmax.f32 %v3793, 0.0
        %v3798 = vmax.f32 %v3794, 0.0
        %v3799 = vmax.f32 %v3795, 0.0
        %v3800 = vmax.f32 %v3796, 0.0
        %v3801 = vmax.f32 %v3797, %v3798
        %3802 = vst.msk [vmem:[#allocation2] sm:$0xf] %vm2729, %v3801
        %v3803 = vld [vmem:[#allocation2] ss:$2 sm:$0x3]
        %v3804 = vld [vmem:[%s731] ss:$2 sm:$0x3]
        %v3805 = vmax.f32 %v3803, %v3804
        %vm3806 = vcmask 517120
        %3807 = vst.msk [vmem:[#allocation5 + $0x10] sm:$0x3] %vm3806, %v3805
        %v3808 = vmax.f32 %v3799, %v3800
        %3809 = vst.msk [vmem:[#allocation2] sm:$0xf] %vm2729, %v3808
        %v3810 = vld [vmem:[#allocation2] ss:$2 sm:$0x3]
        %v3811 = vld [vmem:[%s731] ss:$2 sm:$0x3]
        %v3812 = vmax.f32 %v3810, %v3811
        %3813 = vst.msk [vmem:[#allocation5 + $0x18] sm:$0x3] %vm3806, %v3812
        %s3814 = scalar_lea.vmem %s3, 3
        %v3815 = vld [vmem:[%s3814] sm:$0x1]
        %s3816 = scalar_lea.vmem %s4, 3
        %v3817 = vld [vmem:[%s3816] sm:$0x1]
        %v3818 = vld [vmem:[#allocation5] sm:$0xff]
        %v3819 = vld [vmem:[#allocation5 + $0x8] sm:$0xff]
        %v3820 = vld [vmem:[#allocation5 + $0x10] sm:$0xff]
        %s3821 = scalar_lea.vmem %s2, 1152
        %v3822 = vld [vmem:[%s3821] sm:$0xff]
        %v3823 = vld [vmem:[%s3821 + $0x8] sm:$0xff]
        %v3824 = vld [vmem:[%s3821 + $0x10] sm:$0xff]
        %v3825 = vld [vmem:[%s3821 + $0x18] sm:$0xff]
        %v3826 = vld [vmem:[%s3821 + $0x20] sm:$0xff]
        %v3827 = vld [vmem:[%s3821 + $0x28] sm:$0xff]
        %v3828 = vld [vmem:[%s3821 + $0x30] sm:$0xff]
        %v3829 = vld [vmem:[%s3821 + $0x38] sm:$0xff]
        %s3830 = scalar_lea.vmem %s2, 1216
        %v3831 = vld [vmem:[%s3830] sm:$0xff]
        %v3832 = vld [vmem:[%s3830 + $0x8] sm:$0xff]
        %v3833 = vld [vmem:[%s3830 + $0x10] sm:$0xff]
        %v3834 = vld [vmem:[%s3830 + $0x18] sm:$0xff]
        %v3835 = vld [vmem:[%s3830 + $0x20] sm:$0xff]
        %v3836 = vld [vmem:[%s3830 + $0x28] sm:$0xff]
        %v3837 = vld [vmem:[%s3830 + $0x30] sm:$0xff]
        %v3838 = vld [vmem:[%s3830 + $0x38] sm:$0xff]
        %v3840 = vsel %vm222, %v3819, 0
        %v3843 = vsel %vm222, %v3820, 0
        %3845 = vmatprep.subr.mxu0 0.0
        %3846 = vmatpush1.msra.mxu0 %v3831
        %3847 = vmatprep.subr.mxu0 0.0
        %3848 = vmatpush1.msra.mxu0 %v3832
        %3849 = vmatprep.subr.mxu0 0.0
        %3850 = vmatpush1.msra.mxu0 %v3833
        %3851 = vmatprep.subr.mxu0 0.0
        %3852 = vmatpush1.msra.mxu0 %v3834
        %3853 = vmatprep.subr.mxu0 0.0
        %3854 = vmatpush1.msra.mxu0 %v3835
        %3855 = vmatprep.subr.mxu0 0.0
        %3856 = vmatpush1.msra.mxu0 %v3836
        %3857 = vmatprep.subr.mxu0 0.0
        %3858 = vmatpush1.msra.mxu0 %v3837
        %3859 = vmatprep.subr.mxu0 0.0
        %3860 = vmatpush1.msra.mxu0 %v3838
        %3861 = vmatprep.subr.mxu0 0.0
        %3862 = vmatpush1.msra.mxu0 0.0
        %3863 = vmatprep.subr.mxu0 0.0
        %3864 = vmatpush1.msra.mxu0 0.0
        %3865 = vmatprep.subr.mxu0 0.0
        %3866 = vmatpush1.msra.mxu0 0.0
        %3867 = vmatprep.subr.mxu0 0.0
        %3868 = vmatpush1.msra.mxu0 0.0
        %3869 = vmatprep.subr.mxu0 0.0
        %3870 = vmatpush1.msra.mxu0 0.0
        %3871 = vmatprep.subr.mxu0 0.0
        %3872 = vmatpush1.msra.mxu0 0.0
        %3873 = vmatprep.subr.mxu0 0.0
        %3874 = vmatpush1.msra.mxu0 0.0
        %3875 = vmatprep.subr.mxu0 0.0
        %3876 = vmatpush1.msra.mxu0 0.0
        %3877 = vmatprep.subr.mxu0 0.0
        %3878 = vmatpush1.msra.mxu0 0.0
        %3879 = vmatprep.subr.mxu0 0.0
        %3880 = vmatpush1.msra.mxu0 0.0
        %3881 = vmatprep.subr.mxu0 0.0
        %3882 = vmatpush1.msra.mxu0 0.0
        %3883 = vmatprep.subr.mxu0 0.0
        %3884 = vmatpush1.msra.mxu0 0.0
        %3885 = vmatprep.subr.mxu0 0.0
        %3886 = vmatpush1.msra.mxu0 0.0
        %3887 = vmatprep.subr.mxu0 0.0
        %3888 = vmatpush1.msra.mxu0 0.0
        %3889 = vmatprep.subr.mxu0 0.0
        %3890 = vmatpush1.msra.mxu0 0.0
        %3891 = vmatprep.subr.mxu0 0.0
        %3892 = vmatpush1.msra.mxu0 0.0
        %3893 = vmatprep.subr.mxu0 0.0
        %3894 = vmatpush1.msra.mxu0 0.0
        %3895 = vmatprep.subr.mxu0 0.0
        %3896 = vmatpush1.msra.mxu0 0.0
        %3897 = vmatprep.subr.mxu0 0.0
        %3898 = vmatpush1.msra.mxu0 0.0
        %3899 = vmatprep.subr.mxu0 0.0
        %3900 = vmatpush1.msra.mxu0 0.0
        %3901 = vmatprep.subr.mxu0 0.0
        %3902 = vmatpush1.msra.mxu0 0.0
        %3903 = vmatprep.subr.mxu0 0.0
        %3904 = vmatpush1.msra.mxu0 0.0
        %3905 = vmatprep.subr.mxu0 0.0
        %3906 = vmatpush1.msra.mxu0 0.0
        %3907 = vmatprep.subr.mxu0 0.0
        %3908 = vmatpush1.msra.mxu0 0.0
        %3909 = vmatprep.mubr.f32.mxu0 0.0
        %3910 = vmatmul.mubr.f32.gmra.mrb[0].mxu0 %v3840
        %v3911 = vpop.f32.mrb[0].mxu0
        %v3912 = vadd.f32 0.0, %v3911
        %v3913 = vpop.f32.mrb[0].mxu0
        %3914 = vmatprep.mubr.f32.mxu0 0.0
        %3915 = vmatmul.mubr.f32.gmra.mrb[0].mxu0 %v3843
        %v3916 = vpop.f32.mrb[0].mxu0
        %v3917 = vadd.f32 0.0, %v3916
        %v3918 = vpop.f32.mrb[0].mxu0
        %3919 = vdwg.mxu0
        %v3921 = vrot.slane %v3818, 7
        %v3922 = vrot.slane %v3819, 7
        %v3923 = vsel %vm1008, %v3921, %v3922
        %v3924 = vrot.slane %v3820, 7
        %v3925 = vsel %vm1008, %v3922, %v3924
        %v3926 = vsel %vm222, %v3923, 0
        %v3928 = vsel %vm222, %v3925, 0
        %3930 = vmatprep.subr.mxu0 0.0
        %3931 = vmatpush1.msra.mxu0 %v3822
        %3932 = vmatprep.subr.mxu0 0.0
        %3933 = vmatpush1.msra.mxu0 %v3823
        %3934 = vmatprep.subr.mxu0 0.0
        %3935 = vmatpush1.msra.mxu0 %v3824
        %3936 = vmatprep.subr.mxu0 0.0
        %3937 = vmatpush1.msra.mxu0 %v3825
        %3938 = vmatprep.subr.mxu0 0.0
        %3939 = vmatpush1.msra.mxu0 %v3826
        %3940 = vmatprep.subr.mxu0 0.0
        %3941 = vmatpush1.msra.mxu0 %v3827
        %3942 = vmatprep.subr.mxu0 0.0
        %3943 = vmatpush1.msra.mxu0 %v3828
        %3944 = vmatprep.subr.mxu0 0.0
        %3945 = vmatpush1.msra.mxu0 %v3829
        %3946 = vmatprep.subr.mxu0 0.0
        %3947 = vmatpush1.msra.mxu0 0.0
        %3948 = vmatprep.subr.mxu0 0.0
        %3949 = vmatpush1.msra.mxu0 0.0
        %3950 = vmatprep.subr.mxu0 0.0
        %3951 = vmatpush1.msra.mxu0 0.0
        %3952 = vmatprep.subr.mxu0 0.0
        %3953 = vmatpush1.msra.mxu0 0.0
        %3954 = vmatprep.subr.mxu0 0.0
        %3955 = vmatpush1.msra.mxu0 0.0
        %3956 = vmatprep.subr.mxu0 0.0
        %3957 = vmatpush1.msra.mxu0 0.0
        %3958 = vmatprep.subr.mxu0 0.0
        %3959 = vmatpush1.msra.mxu0 0.0
        %3960 = vmatprep.subr.mxu0 0.0
        %3961 = vmatpush1.msra.mxu0 0.0
        %3962 = vmatprep.subr.mxu0 0.0
        %3963 = vmatpush1.msra.mxu0 0.0
        %3964 = vmatprep.subr.mxu0 0.0
        %3965 = vmatpush1.msra.mxu0 0.0
        %3966 = vmatprep.subr.mxu0 0.0
        %3967 = vmatpush1.msra.mxu0 0.0
        %3968 = vmatprep.subr.mxu0 0.0
        %3969 = vmatpush1.msra.mxu0 0.0
        %3970 = vmatprep.subr.mxu0 0.0
        %3971 = vmatpush1.msra.mxu0 0.0
        %3972 = vmatprep.subr.mxu0 0.0
        %3973 = vmatpush1.msra.mxu0 0.0
        %3974 = vmatprep.subr.mxu0 0.0
        %3975 = vmatpush1.msra.mxu0 0.0
        %3976 = vmatprep.subr.mxu0 0.0
        %3977 = vmatpush1.msra.mxu0 0.0
        %3978 = vmatprep.subr.mxu0 0.0
        %3979 = vmatpush1.msra.mxu0 0.0
        %3980 = vmatprep.subr.mxu0 0.0
        %3981 = vmatpush1.msra.mxu0 0.0
        %3982 = vmatprep.subr.mxu0 0.0
        %3983 = vmatpush1.msra.mxu0 0.0
        %3984 = vmatprep.subr.mxu0 0.0
        %3985 = vmatpush1.msra.mxu0 0.0
        %3986 = vmatprep.subr.mxu0 0.0
        %3987 = vmatpush1.msra.mxu0 0.0
        %3988 = vmatprep.subr.mxu0 0.0
        %3989 = vmatpush1.msra.mxu0 0.0
        %3990 = vmatprep.subr.mxu0 0.0
        %3991 = vmatpush1.msra.mxu0 0.0
        %3992 = vmatprep.subr.mxu0 0.0
        %3993 = vmatpush1.msra.mxu0 0.0
        %3994 = vmatprep.mubr.f32.mxu0 0.0
        %3995 = vmatmul.mubr.f32.gmra.mrb[0].mxu0 %v3926
        %v3996 = vpop.f32.mrb[0].mxu0
        %v3997 = vadd.f32 %v3912, %v3996
        %v3998 = vpop.f32.mrb[0].mxu0
        %3999 = vmatprep.mubr.f32.mxu0 0.0
        %4000 = vmatmul.mubr.f32.gmra.mrb[0].mxu0 %v3928
        %v4001 = vpop.f32.mrb[0].mxu0
        %v4002 = vadd.f32 %v3917, %v4001
        %v4003 = vpop.f32.mrb[0].mxu0
        %4004 = vdwg.mxu0
        %s4005 = scalar_lea.vmem %s2, 1280
        %v4006 = vld [vmem:[%s4005] sm:$0xff]
        %v4007 = vld [vmem:[%s4005 + $0x8] sm:$0xff]
        %v4008 = vld [vmem:[%s4005 + $0x10] sm:$0xff]
        %v4009 = vld [vmem:[%s4005 + $0x18] sm:$0xff]
        %v4010 = vld [vmem:[%s4005 + $0x20] sm:$0xff]
        %v4011 = vld [vmem:[%s4005 + $0x28] sm:$0xff]
        %v4012 = vld [vmem:[%s4005 + $0x30] sm:$0xff]
        %v4013 = vld [vmem:[%s4005 + $0x38] sm:$0xff]
        %v4014 = vrot.slane %v3819, 1
        %v4015 = vrot.slane %v3820, 1
        %v4016 = vsel %vm1213, %v4014, %v4015
        %v4017 = vsel %vm222, %v4016, 0
        %v4019 = vsel %vm222, %v4015, 0
        %4021 = vmatprep.subr.mxu0 0.0
        %4022 = vmatpush1.msra.mxu0 %v4006
        %4023 = vmatprep.subr.mxu0 0.0
        %4024 = vmatpush1.msra.mxu0 %v4007
        %4025 = vmatprep.subr.mxu0 0.0
        %4026 = vmatpush1.msra.mxu0 %v4008
        %4027 = vmatprep.subr.mxu0 0.0
        %4028 = vmatpush1.msra.mxu0 %v4009
        %4029 = vmatprep.subr.mxu0 0.0
        %4030 = vmatpush1.msra.mxu0 %v4010
        %4031 = vmatprep.subr.mxu0 0.0
        %4032 = vmatpush1.msra.mxu0 %v4011
        %4033 = vmatprep.subr.mxu0 0.0
        %4034 = vmatpush1.msra.mxu0 %v4012
        %4035 = vmatprep.subr.mxu0 0.0
        %4036 = vmatpush1.msra.mxu0 %v4013
        %4037 = vmatprep.subr.mxu0 0.0
        %4038 = vmatpush1.msra.mxu0 0.0
        %4039 = vmatprep.subr.mxu0 0.0
        %4040 = vmatpush1.msra.mxu0 0.0
        %4041 = vmatprep.subr.mxu0 0.0
        %4042 = vmatpush1.msra.mxu0 0.0
        %4043 = vmatprep.subr.mxu0 0.0
        %4044 = vmatpush1.msra.mxu0 0.0
        %4045 = vmatprep.subr.mxu0 0.0
        %4046 = vmatpush1.msra.mxu0 0.0
        %4047 = vmatprep.subr.mxu0 0.0
        %4048 = vmatpush1.msra.mxu0 0.0
        %4049 = vmatprep.subr.mxu0 0.0
        %4050 = vmatpush1.msra.mxu0 0.0
        %4051 = vmatprep.subr.mxu0 0.0
        %4052 = vmatpush1.msra.mxu0 0.0
        %4053 = vmatprep.subr.mxu0 0.0
        %4054 = vmatpush1.msra.mxu0 0.0
        %4055 = vmatprep.subr.mxu0 0.0
        %4056 = vmatpush1.msra.mxu0 0.0
        %4057 = vmatprep.subr.mxu0 0.0
        %4058 = vmatpush1.msra.mxu0 0.0
        %4059 = vmatprep.subr.mxu0 0.0
        %4060 = vmatpush1.msra.mxu0 0.0
        %4061 = vmatprep.subr.mxu0 0.0
        %4062 = vmatpush1.msra.mxu0 0.0
        %4063 = vmatprep.subr.mxu0 0.0
        %4064 = vmatpush1.msra.mxu0 0.0
        %4065 = vmatprep.subr.mxu0 0.0
        %4066 = vmatpush1.msra.mxu0 0.0
        %4067 = vmatprep.subr.mxu0 0.0
        %4068 = vmatpush1.msra.mxu0 0.0
        %4069 = vmatprep.subr.mxu0 0.0
        %4070 = vmatpush1.msra.mxu0 0.0
        %4071 = vmatprep.subr.mxu0 0.0
        %4072 = vmatpush1.msra.mxu0 0.0
        %4073 = vmatprep.subr.mxu0 0.0
        %4074 = vmatpush1.msra.mxu0 0.0
        %4075 = vmatprep.subr.mxu0 0.0
        %4076 = vmatpush1.msra.mxu0 0.0
        %4077 = vmatprep.subr.mxu0 0.0
        %4078 = vmatpush1.msra.mxu0 0.0
        %4079 = vmatprep.subr.mxu0 0.0
        %4080 = vmatpush1.msra.mxu0 0.0
        %4081 = vmatprep.subr.mxu0 0.0
        %4082 = vmatpush1.msra.mxu0 0.0
        %4083 = vmatprep.subr.mxu0 0.0
        %4084 = vmatpush1.msra.mxu0 0.0
        %4085 = vmatprep.mubr.f32.mxu0 0.0
        %4086 = vmatmul.mubr.f32.gmra.mrb[0].mxu0 %v4017
        %v4087 = vpop.f32.mrb[0].mxu0
        %v4088 = vadd.f32 0.0, %v4087
        %v4089 = vpop.f32.mrb[0].mxu0
        %4090 = vmatprep.mubr.f32.mxu0 0.0
        %4091 = vmatmul.mubr.f32.gmra.mrb[0].mxu0 %v4019
        %v4092 = vpop.f32.mrb[0].mxu0
        %v4093 = vadd.f32 0.0, %v4092
        %v4094 = vpop.f32.mrb[0].mxu0
        %4095 = vdwg.mxu0
        %v4096 = vadd.f32 %v3997, %v4088
        %v4097 = vadd.f32 %v4002, %v4093
        %v4098 = vld [vmem:[#allocation5 + $0x8] sm:$0xff]
        %v4099 = vld [vmem:[#allocation5 + $0x10] sm:$0xff]
        %v4100 = vld [vmem:[#allocation5 + $0x18] sm:$0xff]
        %s4101 = scalar_lea.vmem %s2, 1344
        %v4102 = vld [vmem:[%s4101] sm:$0xff]
        %v4103 = vld [vmem:[%s4101 + $0x8] sm:$0xff]
        %v4104 = vld [vmem:[%s4101 + $0x10] sm:$0xff]
        %v4105 = vld [vmem:[%s4101 + $0x18] sm:$0xff]
        %v4106 = vld [vmem:[%s4101 + $0x20] sm:$0xff]
        %v4107 = vld [vmem:[%s4101 + $0x28] sm:$0xff]
        %v4108 = vld [vmem:[%s4101 + $0x30] sm:$0xff]
        %v4109 = vld [vmem:[%s4101 + $0x38] sm:$0xff]
        %v4113 = vrot.slane %v4098, 7
        %v4114 = vrot.slane %v4099, 7
        %v4115 = vsel %vm1008, %v4113, %v4114
        %v4116 = vrot.slane %v4100, 7
        %v4117 = vsel %vm1008, %v4114, %v4116
        %v4118 = vsel %vm222, %v4115, 0
        %v4120 = vsel %vm222, %v4117, 0
        %4122 = vmatprep.subr.mxu0 0.0
        %4123 = vmatpush1.msra.mxu0 %v4102
        %4124 = vmatprep.subr.mxu0 0.0
        %4125 = vmatpush1.msra.mxu0 %v4103
        %4126 = vmatprep.subr.mxu0 0.0
        %4127 = vmatpush1.msra.mxu0 %v4104
        %4128 = vmatprep.subr.mxu0 0.0
        %4129 = vmatpush1.msra.mxu0 %v4105
        %4130 = vmatprep.subr.mxu0 0.0
        %4131 = vmatpush1.msra.mxu0 %v4106
        %4132 = vmatprep.subr.mxu0 0.0
        %4133 = vmatpush1.msra.mxu0 %v4107
        %4134 = vmatprep.subr.mxu0 0.0
        %4135 = vmatpush1.msra.mxu0 %v4108
        %4136 = vmatprep.subr.mxu0 0.0
        %4137 = vmatpush1.msra.mxu0 %v4109
        %4138 = vmatprep.subr.mxu0 0.0
        %4139 = vmatpush1.msra.mxu0 0.0
        %4140 = vmatprep.subr.mxu0 0.0
        %4141 = vmatpush1.msra.mxu0 0.0
        %4142 = vmatprep.subr.mxu0 0.0
        %4143 = vmatpush1.msra.mxu0 0.0
        %4144 = vmatprep.subr.mxu0 0.0
        %4145 = vmatpush1.msra.mxu0 0.0
        %4146 = vmatprep.subr.mxu0 0.0
        %4147 = vmatpush1.msra.mxu0 0.0
        %4148 = vmatprep.subr.mxu0 0.0
        %4149 = vmatpush1.msra.mxu0 0.0
        %4150 = vmatprep.subr.mxu0 0.0
        %4151 = vmatpush1.msra.mxu0 0.0
        %4152 = vmatprep.subr.mxu0 0.0
        %4153 = vmatpush1.msra.mxu0 0.0
        %4154 = vmatprep.subr.mxu0 0.0
        %4155 = vmatpush1.msra.mxu0 0.0
        %4156 = vmatprep.subr.mxu0 0.0
        %4157 = vmatpush1.msra.mxu0 0.0
        %4158 = vmatprep.subr.mxu0 0.0
        %4159 = vmatpush1.msra.mxu0 0.0
        %4160 = vmatprep.subr.mxu0 0.0
        %4161 = vmatpush1.msra.mxu0 0.0
        %4162 = vmatprep.subr.mxu0 0.0
        %4163 = vmatpush1.msra.mxu0 0.0
        %4164 = vmatprep.subr.mxu0 0.0
        %4165 = vmatpush1.msra.mxu0 0.0
        %4166 = vmatprep.subr.mxu0 0.0
        %4167 = vmatpush1.msra.mxu0 0.0
        %4168 = vmatprep.subr.mxu0 0.0
        %4169 = vmatpush1.msra.mxu0 0.0
        %4170 = vmatprep.subr.mxu0 0.0
        %4171 = vmatpush1.msra.mxu0 0.0
        %4172 = vmatprep.subr.mxu0 0.0
        %4173 = vmatpush1.msra.mxu0 0.0
        %4174 = vmatprep.subr.mxu0 0.0
        %4175 = vmatpush1.msra.mxu0 0.0
        %4176 = vmatprep.subr.mxu0 0.0
        %4177 = vmatpush1.msra.mxu0 0.0
        %4178 = vmatprep.subr.mxu0 0.0
        %4179 = vmatpush1.msra.mxu0 0.0
        %4180 = vmatprep.subr.mxu0 0.0
        %4181 = vmatpush1.msra.mxu0 0.0
        %4182 = vmatprep.subr.mxu0 0.0
        %4183 = vmatpush1.msra.mxu0 0.0
        %4184 = vmatprep.subr.mxu0 0.0
        %4185 = vmatpush1.msra.mxu0 0.0
        %4186 = vmatprep.mubr.f32.mxu0 0.0
        %4187 = vmatmul.mubr.f32.gmra.mrb[0].mxu0 %v4118
        %v4188 = vpop.f32.mrb[0].mxu0
        %v4189 = vadd.f32 0.0, %v4188
        %v4190 = vpop.f32.mrb[0].mxu0
        %4191 = vmatprep.mubr.f32.mxu0 0.0
        %4192 = vmatmul.mubr.f32.gmra.mrb[0].mxu0 %v4120
        %v4193 = vpop.f32.mrb[0].mxu0
        %v4194 = vadd.f32 0.0, %v4193
        %v4195 = vpop.f32.mrb[0].mxu0
        %4196 = vdwg.mxu0
        %v4197 = vadd.f32 %v4096, %v4189
        %v4198 = vadd.f32 %v4097, %v4194
        %s4199 = scalar_lea.vmem %s2, 1408
        %v4200 = vld [vmem:[%s4199] sm:$0xff]
        %v4201 = vld [vmem:[%s4199 + $0x8] sm:$0xff]
        %v4202 = vld [vmem:[%s4199 + $0x10] sm:$0xff]
        %v4203 = vld [vmem:[%s4199 + $0x18] sm:$0xff]
        %v4204 = vld [vmem:[%s4199 + $0x20] sm:$0xff]
        %v4205 = vld [vmem:[%s4199 + $0x28] sm:$0xff]
        %v4206 = vld [vmem:[%s4199 + $0x30] sm:$0xff]
        %v4207 = vld [vmem:[%s4199 + $0x38] sm:$0xff]
        %v4208 = vsel %vm222, %v4099, 0
        %v4210 = vsel %vm222, %v4100, 0
        %4212 = vmatprep.subr.mxu0 0.0
        %4213 = vmatpush1.msra.mxu0 %v4200
        %4214 = vmatprep.subr.mxu0 0.0
        %4215 = vmatpush1.msra.mxu0 %v4201
        %4216 = vmatprep.subr.mxu0 0.0
        %4217 = vmatpush1.msra.mxu0 %v4202
        %4218 = vmatprep.subr.mxu0 0.0
        %4219 = vmatpush1.msra.mxu0 %v4203
        %4220 = vmatprep.subr.mxu0 0.0
        %4221 = vmatpush1.msra.mxu0 %v4204
        %4222 = vmatprep.subr.mxu0 0.0
        %4223 = vmatpush1.msra.mxu0 %v4205
        %4224 = vmatprep.subr.mxu0 0.0
        %4225 = vmatpush1.msra.mxu0 %v4206
        %4226 = vmatprep.subr.mxu0 0.0
        %4227 = vmatpush1.msra.mxu0 %v4207
        %4228 = vmatprep.subr.mxu0 0.0
        %4229 = vmatpush1.msra.mxu0 0.0
        %4230 = vmatprep.subr.mxu0 0.0
        %4231 = vmatpush1.msra.mxu0 0.0
        %4232 = vmatprep.subr.mxu0 0.0
        %4233 = vmatpush1.msra.mxu0 0.0
        %4234 = vmatprep.subr.mxu0 0.0
        %4235 = vmatpush1.msra.mxu0 0.0
        %4236 = vmatprep.subr.mxu0 0.0
        %4237 = vmatpush1.msra.mxu0 0.0
        %4238 = vmatprep.subr.mxu0 0.0
        %4239 = vmatpush1.msra.mxu0 0.0
        %4240 = vmatprep.subr.mxu0 0.0
        %4241 = vmatpush1.msra.mxu0 0.0
        %4242 = vmatprep.subr.mxu0 0.0
        %4243 = vmatpush1.msra.mxu0 0.0
        %4244 = vmatprep.subr.mxu0 0.0
        %4245 = vmatpush1.msra.mxu0 0.0
        %4246 = vmatprep.subr.mxu0 0.0
        %4247 = vmatpush1.msra.mxu0 0.0
        %4248 = vmatprep.subr.mxu0 0.0
        %4249 = vmatpush1.msra.mxu0 0.0
        %4250 = vmatprep.subr.mxu0 0.0
        %4251 = vmatpush1.msra.mxu0 0.0
        %4252 = vmatprep.subr.mxu0 0.0
        %4253 = vmatpush1.msra.mxu0 0.0
        %4254 = vmatprep.subr.mxu0 0.0
        %4255 = vmatpush1.msra.mxu0 0.0
        %4256 = vmatprep.subr.mxu0 0.0
        %4257 = vmatpush1.msra.mxu0 0.0
        %4258 = vmatprep.subr.mxu0 0.0
        %4259 = vmatpush1.msra.mxu0 0.0
        %4260 = vmatprep.subr.mxu0 0.0
        %4261 = vmatpush1.msra.mxu0 0.0
        %4262 = vmatprep.subr.mxu0 0.0
        %4263 = vmatpush1.msra.mxu0 0.0
        %4264 = vmatprep.subr.mxu0 0.0
        %4265 = vmatpush1.msra.mxu0 0.0
        %4266 = vmatprep.subr.mxu0 0.0
        %4267 = vmatpush1.msra.mxu0 0.0
        %4268 = vmatprep.subr.mxu0 0.0
        %4269 = vmatpush1.msra.mxu0 0.0
        %4270 = vmatprep.subr.mxu0 0.0
        %4271 = vmatpush1.msra.mxu0 0.0
        %4272 = vmatprep.subr.mxu0 0.0
        %4273 = vmatpush1.msra.mxu0 0.0
        %4274 = vmatprep.subr.mxu0 0.0
        %4275 = vmatpush1.msra.mxu0 0.0
        %4276 = vmatprep.mubr.f32.mxu0 0.0
        %4277 = vmatmul.mubr.f32.gmra.mrb[0].mxu0 %v4208
        %v4278 = vpop.f32.mrb[0].mxu0
        %v4279 = vadd.f32 0.0, %v4278
        %v4280 = vpop.f32.mrb[0].mxu0
        %4281 = vmatprep.mubr.f32.mxu0 0.0
        %4282 = vmatmul.mubr.f32.gmra.mrb[0].mxu0 %v4210
        %v4283 = vpop.f32.mrb[0].mxu0
        %v4284 = vadd.f32 0.0, %v4283
        %v4285 = vpop.f32.mrb[0].mxu0
        %4286 = vdwg.mxu0
        %v4287 = vadd.f32 %v4197, %v4279
        %v4288 = vadd.f32 %v4198, %v4284
        %s4289 = scalar_lea.vmem %s2, 1472
        %v4290 = vld [vmem:[%s4289] sm:$0xff]
        %v4291 = vld [vmem:[%s4289 + $0x8] sm:$0xff]
        %v4292 = vld [vmem:[%s4289 + $0x10] sm:$0xff]
        %v4293 = vld [vmem:[%s4289 + $0x18] sm:$0xff]
        %v4294 = vld [vmem:[%s4289 + $0x20] sm:$0xff]
        %v4295 = vld [vmem:[%s4289 + $0x28] sm:$0xff]
        %v4296 = vld [vmem:[%s4289 + $0x30] sm:$0xff]
        %v4297 = vld [vmem:[%s4289 + $0x38] sm:$0xff]
        %v4298 = vrot.slane %v4099, 1
        %v4299 = vrot.slane %v4100, 1
        %v4300 = vsel %vm1213, %v4298, %v4299
        %v4301 = vsel %vm222, %v4300, 0
        %v4303 = vsel %vm222, %v4299, 0
        %4305 = vmatprep.subr.mxu0 0.0
        %4306 = vmatpush1.msra.mxu0 %v4290
        %4307 = vmatprep.subr.mxu0 0.0
        %4308 = vmatpush1.msra.mxu0 %v4291
        %4309 = vmatprep.subr.mxu0 0.0
        %4310 = vmatpush1.msra.mxu0 %v4292
        %4311 = vmatprep.subr.mxu0 0.0
        %4312 = vmatpush1.msra.mxu0 %v4293
        %4313 = vmatprep.subr.mxu0 0.0
        %4314 = vmatpush1.msra.mxu0 %v4294
        %4315 = vmatprep.subr.mxu0 0.0
        %4316 = vmatpush1.msra.mxu0 %v4295
        %4317 = vmatprep.subr.mxu0 0.0
        %4318 = vmatpush1.msra.mxu0 %v4296
        %4319 = vmatprep.subr.mxu0 0.0
        %4320 = vmatpush1.msra.mxu0 %v4297
        %4321 = vmatprep.subr.mxu0 0.0
        %4322 = vmatpush1.msra.mxu0 0.0
        %4323 = vmatprep.subr.mxu0 0.0
        %4324 = vmatpush1.msra.mxu0 0.0
        %4325 = vmatprep.subr.mxu0 0.0
        %4326 = vmatpush1.msra.mxu0 0.0
        %4327 = vmatprep.subr.mxu0 0.0
        %4328 = vmatpush1.msra.mxu0 0.0
        %4329 = vmatprep.subr.mxu0 0.0
        %4330 = vmatpush1.msra.mxu0 0.0
        %4331 = vmatprep.subr.mxu0 0.0
        %4332 = vmatpush1.msra.mxu0 0.0
        %4333 = vmatprep.subr.mxu0 0.0
        %4334 = vmatpush1.msra.mxu0 0.0
        %4335 = vmatprep.subr.mxu0 0.0
        %4336 = vmatpush1.msra.mxu0 0.0
        %4337 = vmatprep.subr.mxu0 0.0
        %4338 = vmatpush1.msra.mxu0 0.0
        %4339 = vmatprep.subr.mxu0 0.0
        %4340 = vmatpush1.msra.mxu0 0.0
        %4341 = vmatprep.subr.mxu0 0.0
        %4342 = vmatpush1.msra.mxu0 0.0
        %4343 = vmatprep.subr.mxu0 0.0
        %4344 = vmatpush1.msra.mxu0 0.0
        %4345 = vmatprep.subr.mxu0 0.0
        %4346 = vmatpush1.msra.mxu0 0.0
        %4347 = vmatprep.subr.mxu0 0.0
        %4348 = vmatpush1.msra.mxu0 0.0
        %4349 = vmatprep.subr.mxu0 0.0
        %4350 = vmatpush1.msra.mxu0 0.0
        %4351 = vmatprep.subr.mxu0 0.0
        %4352 = vmatpush1.msra.mxu0 0.0
        %4353 = vmatprep.subr.mxu0 0.0
        %4354 = vmatpush1.msra.mxu0 0.0
        %4355 = vmatprep.subr.mxu0 0.0
        %4356 = vmatpush1.msra.mxu0 0.0
        %4357 = vmatprep.subr.mxu0 0.0
        %4358 = vmatpush1.msra.mxu0 0.0
        %4359 = vmatprep.subr.mxu0 0.0
        %4360 = vmatpush1.msra.mxu0 0.0
        %4361 = vmatprep.subr.mxu0 0.0
        %4362 = vmatpush1.msra.mxu0 0.0
        %4363 = vmatprep.subr.mxu0 0.0
        %4364 = vmatpush1.msra.mxu0 0.0
        %4365 = vmatprep.subr.mxu0 0.0
        %4366 = vmatpush1.msra.mxu0 0.0
        %4367 = vmatprep.subr.mxu0 0.0
        %4368 = vmatpush1.msra.mxu0 0.0
        %4369 = vmatprep.mubr.f32.mxu0 0.0
        %4370 = vmatmul.mubr.f32.gmra.mrb[0].mxu0 %v4301
        %v4371 = vpop.f32.mrb[0].mxu0
        %v4372 = vadd.f32 0.0, %v4371
        %v4373 = vpop.f32.mrb[0].mxu0
        %4374 = vmatprep.mubr.f32.mxu0 0.0
        %4375 = vmatmul.mubr.f32.gmra.mrb[0].mxu0 %v4303
        %v4376 = vpop.f32.mrb[0].mxu0
        %v4377 = vadd.f32 0.0, %v4376
        %v4378 = vpop.f32.mrb[0].mxu0
        %4379 = vdwg.mxu0
        %v4380 = vadd.f32 %v4287, %v4372
        %v4381 = vadd.f32 %v4288, %v4377
        %v4382 = vld [vmem:[#allocation5 + $0x10] sm:$0xff]
        %v4383 = vld [vmem:[#allocation5 + $0x18] sm:$0xff]
        %v4384 = vld [vmem:[#allocation5 + $0x20] sm:$0xff]
        %s4385 = scalar_lea.vmem %s2, 1536
        %v4386 = vld [vmem:[%s4385] sm:$0xff]
        %v4387 = vld [vmem:[%s4385 + $0x8] sm:$0xff]
        %v4388 = vld [vmem:[%s4385 + $0x10] sm:$0xff]
        %v4389 = vld [vmem:[%s4385 + $0x18] sm:$0xff]
        %v4390 = vld [vmem:[%s4385 + $0x20] sm:$0xff]
        %v4391 = vld [vmem:[%s4385 + $0x28] sm:$0xff]
        %v4392 = vld [vmem:[%s4385 + $0x30] sm:$0xff]
        %v4393 = vld [vmem:[%s4385 + $0x38] sm:$0xff]
        %v4397 = vrot.slane %v4382, 7
        %v4398 = vrot.slane %v4383, 7
        %v4399 = vsel %vm1008, %v4397, %v4398
        %v4400 = vrot.slane %v4384, 7
        %v4401 = vsel %vm1008, %v4398, %v4400
        %v4402 = vsel %vm222, %v4399, 0
        %v4404 = vsel %vm222, %v4401, 0
        %4406 = vmatprep.subr.mxu0 0.0
        %4407 = vmatpush1.msra.mxu0 %v4386
        %4408 = vmatprep.subr.mxu0 0.0
        %4409 = vmatpush1.msra.mxu0 %v4387
        %4410 = vmatprep.subr.mxu0 0.0
        %4411 = vmatpush1.msra.mxu0 %v4388
        %4412 = vmatprep.subr.mxu0 0.0
        %4413 = vmatpush1.msra.mxu0 %v4389
        %4414 = vmatprep.subr.mxu0 0.0
        %4415 = vmatpush1.msra.mxu0 %v4390
        %4416 = vmatprep.subr.mxu0 0.0
        %4417 = vmatpush1.msra.mxu0 %v4391
        %4418 = vmatprep.subr.mxu0 0.0
        %4419 = vmatpush1.msra.mxu0 %v4392
        %4420 = vmatprep.subr.mxu0 0.0
        %4421 = vmatpush1.msra.mxu0 %v4393
        %4422 = vmatprep.subr.mxu0 0.0
        %4423 = vmatpush1.msra.mxu0 0.0
        %4424 = vmatprep.subr.mxu0 0.0
        %4425 = vmatpush1.msra.mxu0 0.0
        %4426 = vmatprep.subr.mxu0 0.0
        %4427 = vmatpush1.msra.mxu0 0.0
        %4428 = vmatprep.subr.mxu0 0.0
        %4429 = vmatpush1.msra.mxu0 0.0
        %4430 = vmatprep.subr.mxu0 0.0
        %4431 = vmatpush1.msra.mxu0 0.0
        %4432 = vmatprep.subr.mxu0 0.0
        %4433 = vmatpush1.msra.mxu0 0.0
        %4434 = vmatprep.subr.mxu0 0.0
        %4435 = vmatpush1.msra.mxu0 0.0
        %4436 = vmatprep.subr.mxu0 0.0
        %4437 = vmatpush1.msra.mxu0 0.0
        %4438 = vmatprep.subr.mxu0 0.0
        %4439 = vmatpush1.msra.mxu0 0.0
        %4440 = vmatprep.subr.mxu0 0.0
        %4441 = vmatpush1.msra.mxu0 0.0
        %4442 = vmatprep.subr.mxu0 0.0
        %4443 = vmatpush1.msra.mxu0 0.0
        %4444 = vmatprep.subr.mxu0 0.0
        %4445 = vmatpush1.msra.mxu0 0.0
        %4446 = vmatprep.subr.mxu0 0.0
        %4447 = vmatpush1.msra.mxu0 0.0
        %4448 = vmatprep.subr.mxu0 0.0
        %4449 = vmatpush1.msra.mxu0 0.0
        %4450 = vmatprep.subr.mxu0 0.0
        %4451 = vmatpush1.msra.mxu0 0.0
        %4452 = vmatprep.subr.mxu0 0.0
        %4453 = vmatpush1.msra.mxu0 0.0
        %4454 = vmatprep.subr.mxu0 0.0
        %4455 = vmatpush1.msra.mxu0 0.0
        %4456 = vmatprep.subr.mxu0 0.0
        %4457 = vmatpush1.msra.mxu0 0.0
        %4458 = vmatprep.subr.mxu0 0.0
        %4459 = vmatpush1.msra.mxu0 0.0
        %4460 = vmatprep.subr.mxu0 0.0
        %4461 = vmatpush1.msra.mxu0 0.0
        %4462 = vmatprep.subr.mxu0 0.0
        %4463 = vmatpush1.msra.mxu0 0.0
        %4464 = vmatprep.subr.mxu0 0.0
        %4465 = vmatpush1.msra.mxu0 0.0
        %4466 = vmatprep.subr.mxu0 0.0
        %4467 = vmatpush1.msra.mxu0 0.0
        %4468 = vmatprep.subr.mxu0 0.0
        %4469 = vmatpush1.msra.mxu0 0.0
        %4470 = vmatprep.mubr.f32.mxu0 0.0
        %4471 = vmatmul.mubr.f32.gmra.mrb[0].mxu0 %v4402
        %v4472 = vpop.f32.mrb[0].mxu0
        %v4473 = vadd.f32 0.0, %v4472
        %v4474 = vpop.f32.mrb[0].mxu0
        %4475 = vmatprep.mubr.f32.mxu0 0.0
        %4476 = vmatmul.mubr.f32.gmra.mrb[0].mxu0 %v4404
        %v4477 = vpop.f32.mrb[0].mxu0
        %v4478 = vadd.f32 0.0, %v4477
        %v4479 = vpop.f32.mrb[0].mxu0
        %4480 = vdwg.mxu0
        %v4481 = vadd.f32 %v4380, %v4473
        %v4482 = vadd.f32 %v4381, %v4478
        %s4483 = scalar_lea.vmem %s2, 1600
        %v4484 = vld [vmem:[%s4483] sm:$0xff]
        %v4485 = vld [vmem:[%s4483 + $0x8] sm:$0xff]
        %v4486 = vld [vmem:[%s4483 + $0x10] sm:$0xff]
        %v4487 = vld [vmem:[%s4483 + $0x18] sm:$0xff]
        %v4488 = vld [vmem:[%s4483 + $0x20] sm:$0xff]
        %v4489 = vld [vmem:[%s4483 + $0x28] sm:$0xff]
        %v4490 = vld [vmem:[%s4483 + $0x30] sm:$0xff]
        %v4491 = vld [vmem:[%s4483 + $0x38] sm:$0xff]
        %v4492 = vsel %vm222, %v4383, 0
        %v4494 = vsel %vm222, %v4384, 0
        %4496 = vmatprep.subr.mxu0 0.0
        %4497 = vmatpush1.msra.mxu0 %v4484
        %4498 = vmatprep.subr.mxu0 0.0
        %4499 = vmatpush1.msra.mxu0 %v4485
        %4500 = vmatprep.subr.mxu0 0.0
        %4501 = vmatpush1.msra.mxu0 %v4486
        %4502 = vmatprep.subr.mxu0 0.0
        %4503 = vmatpush1.msra.mxu0 %v4487
        %4504 = vmatprep.subr.mxu0 0.0
        %4505 = vmatpush1.msra.mxu0 %v4488
        %4506 = vmatprep.subr.mxu0 0.0
        %4507 = vmatpush1.msra.mxu0 %v4489
        %4508 = vmatprep.subr.mxu0 0.0
        %4509 = vmatpush1.msra.mxu0 %v4490
        %4510 = vmatprep.subr.mxu0 0.0
        %4511 = vmatpush1.msra.mxu0 %v4491
        %4512 = vmatprep.subr.mxu0 0.0
        %4513 = vmatpush1.msra.mxu0 0.0
        %4514 = vmatprep.subr.mxu0 0.0
        %4515 = vmatpush1.msra.mxu0 0.0
        %4516 = vmatprep.subr.mxu0 0.0
        %4517 = vmatpush1.msra.mxu0 0.0
        %4518 = vmatprep.subr.mxu0 0.0
        %4519 = vmatpush1.msra.mxu0 0.0
        %4520 = vmatprep.subr.mxu0 0.0
        %4521 = vmatpush1.msra.mxu0 0.0
        %4522 = vmatprep.subr.mxu0 0.0
        %4523 = vmatpush1.msra.mxu0 0.0
        %4524 = vmatprep.subr.mxu0 0.0
        %4525 = vmatpush1.msra.mxu0 0.0
        %4526 = vmatprep.subr.mxu0 0.0
        %4527 = vmatpush1.msra.mxu0 0.0
        %4528 = vmatprep.subr.mxu0 0.0
        %4529 = vmatpush1.msra.mxu0 0.0
        %4530 = vmatprep.subr.mxu0 0.0
        %4531 = vmatpush1.msra.mxu0 0.0
        %4532 = vmatprep.subr.mxu0 0.0
        %4533 = vmatpush1.msra.mxu0 0.0
        %4534 = vmatprep.subr.mxu0 0.0
        %4535 = vmatpush1.msra.mxu0 0.0
        %4536 = vmatprep.subr.mxu0 0.0
        %4537 = vmatpush1.msra.mxu0 0.0
        %4538 = vmatprep.subr.mxu0 0.0
        %4539 = vmatpush1.msra.mxu0 0.0
        %4540 = vmatprep.subr.mxu0 0.0
        %4541 = vmatpush1.msra.mxu0 0.0
        %4542 = vmatprep.subr.mxu0 0.0
        %4543 = vmatpush1.msra.mxu0 0.0
        %4544 = vmatprep.subr.mxu0 0.0
        %4545 = vmatpush1.msra.mxu0 0.0
        %4546 = vmatprep.subr.mxu0 0.0
        %4547 = vmatpush1.msra.mxu0 0.0
        %4548 = vmatprep.subr.mxu0 0.0
        %4549 = vmatpush1.msra.mxu0 0.0
        %4550 = vmatprep.subr.mxu0 0.0
        %4551 = vmatpush1.msra.mxu0 0.0
        %4552 = vmatprep.subr.mxu0 0.0
        %4553 = vmatpush1.msra.mxu0 0.0
        %4554 = vmatprep.subr.mxu0 0.0
        %4555 = vmatpush1.msra.mxu0 0.0
        %4556 = vmatprep.subr.mxu0 0.0
        %4557 = vmatpush1.msra.mxu0 0.0
        %4558 = vmatprep.subr.mxu0 0.0
        %4559 = vmatpush1.msra.mxu0 0.0
        %4560 = vmatprep.mubr.f32.mxu0 0.0
        %4561 = vmatmul.mubr.f32.gmra.mrb[0].mxu0 %v4492
        %v4562 = vpop.f32.mrb[0].mxu0
        %v4563 = vadd.f32 0.0, %v4562
        %v4564 = vpop.f32.mrb[0].mxu0
        %4565 = vmatprep.mubr.f32.mxu0 0.0
        %4566 = vmatmul.mubr.f32.gmra.mrb[0].mxu0 %v4494
        %v4567 = vpop.f32.mrb[0].mxu0
        %v4568 = vadd.f32 0.0, %v4567
        %v4569 = vpop.f32.mrb[0].mxu0
        %4570 = vdwg.mxu0
        %v4571 = vadd.f32 %v4481, %v4563
        %v4572 = vadd.f32 %v4482, %v4568
        %s4573 = scalar_lea.vmem %s2, 1664
        %v4574 = vld [vmem:[%s4573] sm:$0xff]
        %v4575 = vld [vmem:[%s4573 + $0x8] sm:$0xff]
        %v4576 = vld [vmem:[%s4573 + $0x10] sm:$0xff]
        %v4577 = vld [vmem:[%s4573 + $0x18] sm:$0xff]
        %v4578 = vld [vmem:[%s4573 + $0x20] sm:$0xff]
        %v4579 = vld [vmem:[%s4573 + $0x28] sm:$0xff]
        %v4580 = vld [vmem:[%s4573 + $0x30] sm:$0xff]
        %v4581 = vld [vmem:[%s4573 + $0x38] sm:$0xff]
        %v4582 = vrot.slane %v4383, 1
        %v4583 = vrot.slane %v4384, 1
        %v4584 = vsel %vm1213, %v4582, %v4583
        %v4585 = vsel %vm222, %v4584, 0
        %v4587 = vsel %vm222, %v4583, 0
        %4589 = vmatprep.subr.mxu0 0.0
        %4590 = vmatpush1.msra.mxu0 %v4574
        %4591 = vmatprep.subr.mxu0 0.0
        %4592 = vmatpush1.msra.mxu0 %v4575
        %4593 = vmatprep.subr.mxu0 0.0
        %4594 = vmatpush1.msra.mxu0 %v4576
        %4595 = vmatprep.subr.mxu0 0.0
        %4596 = vmatpush1.msra.mxu0 %v4577
        %4597 = vmatprep.subr.mxu0 0.0
        %4598 = vmatpush1.msra.mxu0 %v4578
        %4599 = vmatprep.subr.mxu0 0.0
        %4600 = vmatpush1.msra.mxu0 %v4579
        %4601 = vmatprep.subr.mxu0 0.0
        %4602 = vmatpush1.msra.mxu0 %v4580
        %4603 = vmatprep.subr.mxu0 0.0
        %4604 = vmatpush1.msra.mxu0 %v4581
        %4605 = vmatprep.subr.mxu0 0.0
        %4606 = vmatpush1.msra.mxu0 0.0
        %4607 = vmatprep.subr.mxu0 0.0
        %4608 = vmatpush1.msra.mxu0 0.0
        %4609 = vmatprep.subr.mxu0 0.0
        %4610 = vmatpush1.msra.mxu0 0.0
        %4611 = vmatprep.subr.mxu0 0.0
        %4612 = vmatpush1.msra.mxu0 0.0
        %4613 = vmatprep.subr.mxu0 0.0
        %4614 = vmatpush1.msra.mxu0 0.0
        %4615 = vmatprep.subr.mxu0 0.0
        %4616 = vmatpush1.msra.mxu0 0.0
        %4617 = vmatprep.subr.mxu0 0.0
        %4618 = vmatpush1.msra.mxu0 0.0
        %4619 = vmatprep.subr.mxu0 0.0
        %4620 = vmatpush1.msra.mxu0 0.0
        %4621 = vmatprep.subr.mxu0 0.0
        %4622 = vmatpush1.msra.mxu0 0.0
        %4623 = vmatprep.subr.mxu0 0.0
        %4624 = vmatpush1.msra.mxu0 0.0
        %4625 = vmatprep.subr.mxu0 0.0
        %4626 = vmatpush1.msra.mxu0 0.0
        %4627 = vmatprep.subr.mxu0 0.0
        %4628 = vmatpush1.msra.mxu0 0.0
        %4629 = vmatprep.subr.mxu0 0.0
        %4630 = vmatpush1.msra.mxu0 0.0
        %4631 = vmatprep.subr.mxu0 0.0
        %4632 = vmatpush1.msra.mxu0 0.0
        %4633 = vmatprep.subr.mxu0 0.0
        %4634 = vmatpush1.msra.mxu0 0.0
        %4635 = vmatprep.subr.mxu0 0.0
        %4636 = vmatpush1.msra.mxu0 0.0
        %4637 = vmatprep.subr.mxu0 0.0
        %4638 = vmatpush1.msra.mxu0 0.0
        %4639 = vmatprep.subr.mxu0 0.0
        %4640 = vmatpush1.msra.mxu0 0.0
        %4641 = vmatprep.subr.mxu0 0.0
        %4642 = vmatpush1.msra.mxu0 0.0
        %4643 = vmatprep.subr.mxu0 0.0
        %4644 = vmatpush1.msra.mxu0 0.0
        %4645 = vmatprep.subr.mxu0 0.0
        %4646 = vmatpush1.msra.mxu0 0.0
        %4647 = vmatprep.subr.mxu0 0.0
        %4648 = vmatpush1.msra.mxu0 0.0
        %4649 = vmatprep.subr.mxu0 0.0
        %4650 = vmatpush1.msra.mxu0 0.0
        %4651 = vmatprep.subr.mxu0 0.0
        %4652 = vmatpush1.msra.mxu0 0.0
        %4653 = vmatprep.mubr.f32.mxu0 0.0
        %4654 = vmatmul.mubr.f32.gmra.mrb[0].mxu0 %v4585
        %v4655 = vpop.f32.mrb[0].mxu0
        %v4656 = vadd.f32 0.0, %v4655
        %v4657 = vpop.f32.mrb[0].mxu0
        %4658 = vmatprep.mubr.f32.mxu0 0.0
        %4659 = vmatmul.mubr.f32.gmra.mrb[0].mxu0 %v4587
        %v4660 = vpop.f32.mrb[0].mxu0
        %v4661 = vadd.f32 0.0, %v4660
        %v4662 = vpop.f32.mrb[0].mxu0
        %4663 = vdwg.mxu0
        %v4664 = vadd.f32 %v4571, %v4656
        %v4665 = vadd.f32 %v4572, %v4661
        %v4667 = vlaneseq
        %v4668 = vshrl.u32 %v4667, 7
        %v4669 = vsub.s32 0, %v4668
        %v4670 = vrot.slane %v3815, %v4669
        %v4672 = vmul.f32 %v4664, %v4670
        %v4673 = vmul.f32 %v4665, %v4670
        %v4675 = vlaneseq
        %v4676 = vshrl.u32 %v4675, 7
        %v4677 = vsub.s32 0, %v4676
        %v4678 = vrot.slane %v3817, %v4677
        %v4680 = vadd.f32 %v4672, %v4678
        %v4681 = vadd.f32 %v4673, %v4678
        %v4682 = vmax.f32 %v4680, 0.0
        %v4683 = vmax.f32 %v4681, 0.0
        %v4684 = vmax.f32 %v4682, %v4683
        %v4686 = vrot.slane %v4684, 1
        %v4688 = vmax.f32 %v4684, %v4686
        %vm4689 = vcmask 516096
        %4690 = vst.msk [vmem:[%s216] sm:$0x1] %vm4689, %v4688
        %s4691 = sand.u32 %s137, 1
        %s4692 = scalar_lea.sflag [#allocation7], %s4691
        %s4693 = sand.u32 %s137, 1
        %s4694 = scalar_lea.vmem [#allocation6], %s4693
        // Predicated region
        $region41: #{proto_net_embedding.1} parent=39 // pred_check
          %p4695 = pneg %p147
        $region42: #{proto_net_embedding.1} parent=39 // pred_check_branch
          %4697 = sbr.rel (%p4695) target = $region44
        $region43: #{proto_net_embedding.1} parent=39 // pred_region
          %s4699 = ssub.s32 16, 16
          %4700 = vsyncadd %s4692, %s4699
          %s4701 = smul.addr %s19, 16
          %s4702 = scalar_lea.hbm %s5, %s4701
          %s4704 = sshll.u32 %s4694, 4
          %s4705 = int_to_ptr.vmem [resolvable:$true] %s4704
          %4707 = dma.vmem_to_hbm [thread:$0]  %s4705, 16, %s4702, %s4692
        $region44: #{proto_net_embedding.1} parent=39 // pred_fallthru
          _
      $region40: #{proto_net_embedding.1} parent=5 // pred_fallthru
        _
      %p4708 = scmp.le.s32.totalorder 2, %s14
      // Predicated region
      $region45: #{proto_net_embedding.1} parent=5 // pred_check
        %p4709 = pneg %p4708
      $region46: #{proto_net_embedding.1} parent=5 // pred_check_branch
        %4711 = sbr.rel (%p4709) target = $region48
      $region47: #{proto_net_embedding.1} parent=5 // pred_region
        %s4712 = ssub.s32 %s14, 2
        // Predicated region
        $region49: #{proto_net_embedding.1} parent=47 // pred_check
          %p4713 = pneg %p153
        $region50: #{proto_net_embedding.1} parent=47 // pred_check_branch
          %4715 = sbr.rel (%p4713) target = $region52
        $region51: #{proto_net_embedding.1} parent=47 // pred_region
          %s4716 = sand.u32 %s138, 1
          %s4717 = scalar_lea.sflag [#allocation7], %s4716
          %s4718 = sand.u32 %s138, 1
          %s4719 = scalar_lea.vmem [#allocation6], %s4718
          %4720 = dma.done %s4717, 16
        $region52: #{proto_net_embedding.1} parent=47 // pred_fallthru
          _
      $region48: #{proto_net_embedding.1} parent=5 // pred_fallthru
        _
    $region6: #{proto_net_embedding.1} parent=1 // loop_footer
      %s18 = sadd.s32 1, %s14
    $region7: #{proto_net_embedding.1} parent=1 // loop_footer_branch
      %13 = sbr.rel target = $region3
    $region8: #{proto_net_embedding.1} parent=1 // loop_exit
      _
    %4721 = vsyncpa [#allocation7], 1
    %s4722 = scalar_lea.sflag [#allocation7], 1
    %4723 = vsyncpa %s4722, 1

</llo_original>
